<compile_context>
chip_gen: v7x
topology: tpu7x:2x2x1
jax: 0.10.0
libtpu: 0.0.40
codegen_flags: <defaults>
</compile_context>

<pallas_src>
import jax
import jax.numpy as jnp
from jax.experimental import pallas as pl
from jax.experimental.pallas import tpu as pltpu


def _round_up(x, m):
    return ((x + m - 1) // m) * m


# -----------------------------------------------------------------------------
# Fused encoder + softmax-gate kernel (all layers in one grid step)
# -----------------------------------------------------------------------------
def fused_encoder_kernel(x_ref, bias_ref, gate_ref, wqkv_ref, wo_ref, w1_ref,
                         w2_ref, h_ref, fq_ref):
    """One grid step = all L encoder layers applied to one batch block.

    x_ref   : (bb, T, HP)     initial activations (queries prepended, padded) f32
    bias_ref: (bb, 1, T)      additive attention bias (0 keep / -1e9 masked)  f32
    gate_ref: (L, 1, HP)      softmax(layer_weights_lb) per layer             f32
    wqkv_ref: (L, HP, 3*HP)   fused Q/K/V weights (scale folded into Wq)      bf16
    wo_ref  : (L, HP, HP)     output projection                               bf16
    w1_ref  : (L, HP, FP)     FFN in                                          bf16
    w2_ref  : (L, FP, HP)     FFN out                                         bf16
    h_ref   : (bb, T, HP)     output: last hidden state (aliases x in HBM)    f32
    fq_ref  : (bb, QP, HP)    output: softmax-gated query fusion (rows >= Q junk)
    """
    bb, T, HP = x_ref.shape
    QP = fq_ref.shape[1]
    L = wqkv_ref.shape[0]

    bias = bias_ref[...]                          # (bb, 1, T)
    h = x_ref[...]                                # (bb, T, HP) f32 carry
    fq = jnp.zeros((bb, QP, HP), jnp.float32)     # gated-query accumulator carry

    # L is tiny & static -> unrolled Python loop: weight slices are static (free) and
    # the LLO scheduler sees the whole body.  For deep models, stream layers instead.
    for l in range(L):
        x2d = h.reshape(bb * T, HP)

        # Fused QKV projection: one (bb*T, HP) x (HP, 3*HP) bf16 MXU matmul, f32 acc.
        qkv = jnp.dot(x2d.astype(jnp.bfloat16), wqkv_ref[l],
                      preferred_element_type=jnp.float32).reshape(bb, T, 3 * HP)
        # Lane-aligned slices (HP is a multiple of 128 -> offsets 0/HP/2HP are tiles).
        q = qkv[:, :, 0 * HP:1 * HP]
        k = qkv[:, :, 1 * HP:2 * HP]
        v = qkv[:, :, 2 * HP:3 * HP]

        # Scores without materializing k^T; 1/sqrt(H) already folded into Wq.
        scores = jnp.einsum("bqd,bkd->bqk", q.astype(jnp.bfloat16),
                            k.astype(jnp.bfloat16),
                            preferred_element_type=jnp.float32)        # (bb, T, T)
        scores = scores + bias

        m = jnp.max(scores, axis=-1, keepdims=True)
        p = jnp.exp(scores - m)
        p = p / jnp.sum(p, axis=-1, keepdims=True)   # exact normalize (ref parity)

        attn = jnp.einsum("bqk,bkd->bqd", p.astype(jnp.bfloat16),
                          v.astype(jnp.bfloat16),
                          preferred_element_type=jnp.float32)          # (bb, T, HP)
        attn_o = jnp.dot(attn.reshape(bb * T, HP).astype(jnp.bfloat16), wo_ref[l],
                         preferred_element_type=jnp.float32)
        h2d = x2d + attn_o                                             # residual

        ff_in = jnp.dot(h2d.astype(jnp.bfloat16), w1_ref[l],
                        preferred_element_type=jnp.float32)
        ff = jnp.dot(jnp.maximum(ff_in, 0.0).astype(jnp.bfloat16), w2_ref[l],
                     preferred_element_type=jnp.float32)
        h = (h2d + ff).reshape(bb, T, HP)                              # residual

        # Online softmax-gated fusion of the query-token states (rows >= Q discarded
        # in the wrapper; QP=8 kept only for sublane alignment).
        fq = fq + gate_ref[l][None, :, :] * h[:, :QP, :]

    h_ref[...] = h
    fq_ref[...] = fq


def fused_encoder(x, bias, gate, wqkv, wo, w1, w2, *, qp=8):
    """All L layers + the softmax gate in a single pallas_call.

    x: (B, T, HP) f32   bias: (B, 1, T) f32   gate: (L, 1, HP) f32
    wqkv: (L, HP, 3*HP) bf16   wo: (L, HP, HP) bf16   w1: (L, HP, FP) bf16
    w2: (L, FP, HP) bf16
    returns (last_hidden (B, T, HP) f32, fused_query_acc (B, qp, HP) f32)
    """
    B, T, HP = x.shape
    L = wqkv.shape[0]
    FP = w1.shape[2]

    bb = 1                       # >= 2 grid blocks for B >= 2 -> both v7x TCs busy
    nb = pl.cdiv(B, bb)

    flops_layer = (2 * B * T * HP * 3 * HP      # QKV
                   + 4 * B * T * T * HP         # scores + p@v
                   + 2 * B * T * HP * HP        # out proj
                   + 4 * B * T * HP * FP)       # FFN
    cost = pl.CostEstimate(
        flops=L * flops_layer,
        transcendentals=L * B * T * T,
        bytes_accessed=(4 * (2 * B * T * HP + B * T + B * qp * HP + L * HP)
                        + 2 * L * (3 * HP * HP + HP * HP + 2 * HP * FP)))

    return pl.pallas_call(
        fused_encoder_kernel,
        out_shape=(jax.ShapeDtypeStruct((B, T, HP), jnp.float32),
                   jax.ShapeDtypeStruct((B, qp, HP), jnp.float32)),
        grid_spec=pltpu.PrefetchScalarGridSpec(
            num_scalar_prefetch=0,
            grid=(nb,),
            in_specs=[
                pl.BlockSpec((bb, T, HP), lambda b: (b, 0, 0)),
                pl.BlockSpec((bb, 1, T), lambda b: (b, 0, 0)),
                # Whole (tiny) weight stack resident in VMEM; same block every step
                # so it is fetched once.
                pl.BlockSpec((L, 1, HP), lambda b: (0, 0, 0)),
                pl.BlockSpec((L, HP, 3 * HP), lambda b: (0, 0, 0)),
                pl.BlockSpec((L, HP, HP), lambda b: (0, 0, 0)),
                pl.BlockSpec((L, HP, FP), lambda b: (0, 0, 0)),
                pl.BlockSpec((L, FP, HP), lambda b: (0, 0, 0)),
            ],
            out_specs=[
                pl.BlockSpec((bb, T, HP), lambda b: (b, 0, 0)),
                pl.BlockSpec((bb, qp, HP), lambda b: (b, 0, 0)),
            ],
        ),
        compiler_params=pltpu.CompilerParams(dimension_semantics=("parallel",)),
        input_output_aliases={0: 0},   # x buffer reused for the last-hidden output
        cost_estimate=cost,
    )(x, bias, gate, wqkv, wo, w1, w2)


# -----------------------------------------------------------------------------
# Parameters: logical init + one-time kernel-layout preparation
# -----------------------------------------------------------------------------
def init_params(key, *, vocab=100, hidden=32, ffn=64, num_layers=4,
                num_embedding_tokens=1):
    ks = jax.random.split(key, 8)
    return {
        "embed_table": jax.random.normal(ks[0], (vocab, hidden), jnp.float32) * 0.1,
        "queries": jax.random.normal(ks[1], (num_embedding_tokens, hidden),
                                     jnp.float32),
        # nn.Parameter(torch.full((num_layers, hidden), 3e-5))
        "layer_weights_lb": jnp.full((num_layers, hidden), 3e-5, jnp.float32),
        "wq": jax.random.normal(ks[2], (num_layers, hidden, hidden), jnp.float32) * 0.1,
        "wk": jax.random.normal(ks[3], (num_layers, hidden, hidden), jnp.float32) * 0.1,
        "wv": jax.random.normal(ks[4], (num_layers, hidden, hidden), jnp.float32) * 0.1,
        "wo": jax.random.normal(ks[5], (num_layers, hidden, hidden), jnp.float32) * 0.1,
        "w1": jax.random.normal(ks[6], (num_layers, hidden, ffn), jnp.float32) * 0.1,
        "w2": jax.random.normal(ks[7], (num_layers, ffn, hidden), jnp.float32) * 0.1,
    }


def prepare_kernel_params(params, *, lane=128):
    """One-time transform: fold attention scale into Wq, zero-pad hidden/ffn dims to a
    lane multiple (128), fuse Q/K/V, cast weights to bf16."""
    L, H, _ = params["wq"].shape
    F = params["w1"].shape[2]
    HP = _round_up(max(H, lane), lane)
    FP = _round_up(max(F, lane), lane)

    scale = 1.0 / jnp.sqrt(jnp.float32(H))
    wq = params["wq"] * scale                     # fold 1/sqrt(H) into Wq columns

    def pad3(w, rows, cols):
        return jnp.pad(w, ((0, 0), (0, rows - w.shape[1]), (0, cols - w.shape[2])))

    wq_p = pad3(wq, HP, HP)
    wk_p = pad3(params["wk"], HP, HP)
    wv_p = pad3(params["wv"], HP, HP)

    return {
        "wqkv": jnp.concatenate([wq_p, wk_p, wv_p], axis=2).astype(jnp.bfloat16),
        "wo": pad3(params["wo"], HP, HP).astype(jnp.bfloat16),
        "w1": pad3(params["w1"], HP, FP).astype(jnp.bfloat16),
        "w2": pad3(params["w2"], FP, HP).astype(jnp.bfloat16),
        "embed_table": jnp.pad(params["embed_table"], ((0, 0), (0, HP - H))),
        "queries": jnp.pad(params["queries"], ((0, 0), (0, HP - H))),
        "layer_weights_lb": params["layer_weights_lb"],   # (L, H) logical, f32
    }


# -----------------------------------------------------------------------------
# Forward (glue in plain JAX, hot path in the fused Pallas kernel)
# -----------------------------------------------------------------------------
@jax.jit
def smlb_forward(kp, input_ids, attention_mask):
    """Equivalent of SMLBMultilingualEmbeddingModel.forward (softmax_gated path).

    input_ids      : (B, S) int32
    attention_mask : (B, S) int32 (1 = real token, 0 = pad)
    returns (full_embeddings (B, Q+S, H), combined_attention_mask (B, Q+S))
    """
    embed_table = kp["embed_table"]               # (V, HP)
    queries = kp["queries"]                       # (Q, HP)
    lwlb = kp["layer_weights_lb"]                 # (L, H) logical
    B, S = input_ids.shape
    Q, HP = queries.shape
    H = lwlb.shape[1]

    # get_input_embeddings (glue: gather)
    inputs_embeds = jnp.take(embed_table, input_ids, axis=0)          # (B, S, HP)

    # prepend expanded query tokens + extend attention mask
    expanded_queries = jnp.broadcast_to(queries[None], (B, Q, HP))
    x = jnp.concatenate([expanded_queries, inputs_embeds], axis=1)    # (B, T, HP)
    query_mask = jnp.ones((B, Q), dtype=attention_mask.dtype)
    comb_mask = jnp.concatenate([query_mask, attention_mask], axis=1)  # (B, T)

    # pad sequence dim to a multiple of 8 (sublane alignment)
    T = Q + S
    T_pad = max(8, _round_up(T, 8))
    QP = 8
    assert Q <= QP <= T_pad, "num_embedding_tokens must fit in the padded query block"
    x_p = jnp.pad(x, ((0, 0), (0, T_pad - T), (0, 0)))                 # (B, Tp, HP)
    mask_p = jnp.pad(comb_mask, ((0, 0), (0, T_pad - T)))
    bias = ((1.0 - mask_p.astype(jnp.float32)) * jnp.float32(-1e9))[:, None, :]

    # batch-independent softmax gate over the layer axis, padded to lane width
    gate = jax.nn.softmax(lwlb, axis=0)                                # (L, H)
    gate = jnp.pad(gate, ((0, 0), (0, HP - H)))[:, None, :]            # (L, 1, HP)

    last_hidden, fq_acc = fused_encoder(
        x_p, bias, gate, kp["wqkv"], kp["wo"], kp["w1"], kp["w2"], qp=QP)

    fused_queries = fq_acc[:, :Q, :H]                                  # (B, Q, H)
    full_embeddings = jnp.concatenate(
        [fused_queries, last_hidden[:, Q:T, :H]], axis=1)              # (B, Q+S, H)
    return full_embeddings, comb_mask


if __name__ == "__main__":
    B, S, H, FFN, L, VOCAB, Q = 2, 8, 32, 64, 4, 100, 1

    key = jax.random.PRNGKey(0)
    pkey, ikey = jax.random.split(key)
    params = init_params(pkey, vocab=VOCAB, hidden=H, ffn=FFN,
                         num_layers=L, num_embedding_tokens=Q)
    kparams = prepare_kernel_params(params)

    input_ids = jax.random.randint(ikey, (B, S), 0, VOCAB, dtype=jnp.int32)
    # second example has two trailing pad tokens
    attention_mask = jnp.array(
        [[1] * S,
         [1] * (S - 2) + [0, 0]], dtype=jnp.int32)

    full_embeddings, comb_mask = smlb_forward(kparams, input_ids, attention_mask)
    jax.block_until_ready((full_embeddings, comb_mask))

    assert full_embeddings.shape == (B, Q + S, H)
    assert comb_mask.shape == (B, Q + S)
    assert bool(jnp.all(jnp.isfinite(full_embeddings)))
    print("KERNEL_OK")
</pallas_src>

<mosaic_0001>
module attributes {stable_mosaic.version = 11 : i64} {
  func.func @fused_encoder_kernel(%arg0: i32, %arg1: memref<1x16x128xf32, #tpu.memory_space<vmem>>, %arg2: memref<1x1x16xf32, #tpu.memory_space<vmem>>, %arg3: memref<4x1x128xf32, #tpu.memory_space<vmem>>, %arg4: memref<4x128x384xbf16, #tpu.memory_space<vmem>>, %arg5: memref<4x128x128xbf16, #tpu.memory_space<vmem>>, %arg6: memref<4x128x128xbf16, #tpu.memory_space<vmem>>, %arg7: memref<4x128x128xbf16, #tpu.memory_space<vmem>>, %arg8: memref<1x16x128xf32, #tpu.memory_space<vmem>>, %arg9: memref<1x8x128xf32, #tpu.memory_space<vmem>>) attributes {dimension_semantics = [#tpu.dimension_semantics<parallel>], iteration_bounds = array<i64: 2>, scalar_prefetch = 0 : i64, scratch_operands = 0 : i64, tpu.core_type = #tpu.core_type<tc>, window_params = [{transform_indices = @transform_0, window_bounds = array<i64: 1, 16, 128>}, {transform_indices = @transform_1, window_bounds = array<i64: 1, 1, 16>}, {pipeline_mode = #tpu.pipeline_mode<synchronous>, transform_indices = @transform_2, window_bounds = array<i64: 4, 1, 128>}, {pipeline_mode = #tpu.pipeline_mode<synchronous>, transform_indices = @transform_3, window_bounds = array<i64: 4, 128, 384>}, {pipeline_mode = #tpu.pipeline_mode<synchronous>, transform_indices = @transform_4, window_bounds = array<i64: 4, 128, 128>}, {pipeline_mode = #tpu.pipeline_mode<synchronous>, transform_indices = @transform_5, window_bounds = array<i64: 4, 128, 128>}, {pipeline_mode = #tpu.pipeline_mode<synchronous>, transform_indices = @transform_6, window_bounds = array<i64: 4, 128, 128>}, {transform_indices = @transform_7, window_bounds = array<i64: 1, 16, 128>}, {transform_indices = @transform_8, window_bounds = array<i64: 1, 8, 128>}]} {
    %c0 = arith.constant 0 : index
    %c0_0 = arith.constant 0 : index
    %c0_1 = arith.constant 0 : index
    %0 = vector.load %arg2[%c0, %c0_0, %c0_1] : memref<1x1x16xf32, #tpu.memory_space<vmem>>, vector<1x1x16xf32>
    %c0_2 = arith.constant 0 : index
    %c0_3 = arith.constant 0 : index
    %c0_4 = arith.constant 0 : index
    %1 = vector.load %arg1[%c0_2, %c0_3, %c0_4] : memref<1x16x128xf32, #tpu.memory_space<vmem>>, vector<1x16x128xf32>
    %cst = arith.constant 0.000000e+00 : f32
    %2 = vector.broadcast %cst : f32 to vector<1x8x128xf32>
    %3 = vector.shape_cast %1 : vector<1x16x128xf32> to vector<16x128xf32>
    %4 = arith.truncf %3 : vector<16x128xf32> to vector<16x128xbf16>
    %c0_5 = arith.constant 0 : index
    %c0_6 = arith.constant 0 : index
    %c0_7 = arith.constant 0 : index
    %5 = vector.load %arg4[%c0_5, %c0_6, %c0_7] : memref<4x128x384xbf16, #tpu.memory_space<vmem>>, vector<1x128x384xbf16>
    %6 = vector.shape_cast %5 : vector<1x128x384xbf16> to vector<128x384xbf16>
    %cst_8 = arith.constant dense<0.000000e+00> : vector<16x384xf32>
    %7 = tpu.matmul %4, %6, %cst_8 {dimension_numbers = #tpu.dot_dimension_numbers<[1], [0], [0], [1], [0, 0, 1, 1], [], []>} : vector<16x128xbf16>, vector<128x384xbf16>, vector<16x384xf32> -> vector<16x384xf32>
    %8 = vector.shape_cast %7 : vector<16x384xf32> to vector<1x16x384xf32>
    %9 = vector.extract_strided_slice %8 {offsets = [0, 0, 0], sizes = [1, 16, 128], strides = [1, 1, 1]} : vector<1x16x384xf32> to vector<1x16x128xf32>
    %10 = vector.extract_strided_slice %8 {offsets = [0, 0, 128], sizes = [1, 16, 128], strides = [1, 1, 1]} : vector<1x16x384xf32> to vector<1x16x128xf32>
    %11 = vector.extract_strided_slice %8 {offsets = [0, 0, 256], sizes = [1, 16, 128], strides = [1, 1, 1]} : vector<1x16x384xf32> to vector<1x16x128xf32>
    %12 = arith.truncf %9 : vector<1x16x128xf32> to vector<1x16x128xbf16>
    %13 = arith.truncf %10 : vector<1x16x128xf32> to vector<1x16x128xbf16>
    "tpu.trace_start"() <{level = 10 : i32, message = "bqd,bkd->bqk"}> : () -> ()
    %cst_9 = arith.constant dense<0.000000e+00> : vector<1x16x16xf32>
    %14 = tpu.matmul %12, %13, %cst_9 {dimension_numbers = #tpu.dot_dimension_numbers<[2], [2], [1], [1], [0, 0, 0, 1, 1, 1], [0], [0]>} : vector<1x16x128xbf16>, vector<1x16x128xbf16>, vector<1x16x16xf32> -> vector<1x16x16xf32>
    "tpu.trace_stop"() : () -> ()
    %15 = vector.broadcast %0 : vector<1x1x16xf32> to vector<1x16x16xf32>
    %16 = arith.addf %14, %15 : vector<1x16x16xf32>
    %cst_10 = arith.constant dense<0xFF800000> : vector<1x16xf32>
    %17 = vector.multi_reduction <maximumf>, %16, %cst_10 [2] : vector<1x16x16xf32> to vector<1x16xf32>
    %18 = vector.shape_cast %17 : vector<1x16xf32> to vector<1x16x1xf32>
    %19 = vector.broadcast %18 : vector<1x16x1xf32> to vector<1x16x16xf32>
    %20 = arith.subf %16, %19 : vector<1x16x16xf32>
    %21 = math.exp %20 : vector<1x16x16xf32>
    %cst_11 = arith.constant dense<0.000000e+00> : vector<1x16xf32>
    %22 = vector.multi_reduction <add>, %21, %cst_11 [2] : vector<1x16x16xf32> to vector<1x16xf32>
    %23 = vector.shape_cast %22 : vector<1x16xf32> to vector<1x16x1xf32>
    %24 = vector.broadcast %23 : vector<1x16x1xf32> to vector<1x16x16xf32>
    %25 = arith.divf %21, %24 : vector<1x16x16xf32>
    %26 = arith.truncf %25 : vector<1x16x16xf32> to vector<1x16x16xbf16>
    %27 = arith.truncf %11 : vector<1x16x128xf32> to vector<1x16x128xbf16>
    "tpu.trace_start"() <{level = 10 : i32, message = "bqk,bkd->bqd"}> : () -> ()
    %cst_12 = arith.constant dense<0.000000e+00> : vector<1x16x128xf32>
    %28 = tpu.matmul %26, %27, %cst_12 {dimension_numbers = #tpu.dot_dimension_numbers<[2], [1], [1], [2], [0, 0, 0, 1, 1, 2], [0], [0]>} : vector<1x16x16xbf16>, vector<1x16x128xbf16>, vector<1x16x128xf32> -> vector<1x16x128xf32>
    "tpu.trace_stop"() : () -> ()
    %29 = vector.shape_cast %28 : vector<1x16x128xf32> to vector<16x128xf32>
    %30 = arith.truncf %29 : vector<16x128xf32> to vector<16x128xbf16>
    %c0_13 = arith.constant 0 : index
    %c0_14 = arith.constant 0 : index
    %c0_15 = arith.constant 0 : index
    %31 = vector.load %arg5[%c0_13, %c0_14, %c0_15] : memref<4x128x128xbf16, #tpu.memory_space<vmem>>, vector<1x128x128xbf16>
    %32 = vector.shape_cast %31 : vector<1x128x128xbf16> to vector<128x128xbf16>
    %cst_16 = arith.constant dense<0.000000e+00> : vector<16x128xf32>
    %33 = tpu.matmul %30, %32, %cst_16 {dimension_numbers = #tpu.dot_dimension_numbers<[1], [0], [0], [1], [0, 0, 1, 1], [], []>} : vector<16x128xbf16>, vector<128x128xbf16>, vector<16x128xf32> -> vector<16x128xf32>
    %34 = arith.addf %3, %33 : vector<16x128xf32>
    %35 = arith.truncf %34 : vector<16x128xf32> to vector<16x128xbf16>
    %c0_17 = arith.constant 0 : index
    %c0_18 = arith.constant 0 : index
    %c0_19 = arith.constant 0 : index
    %36 = vector.load %arg6[%c0_17, %c0_18, %c0_19] : memref<4x128x128xbf16, #tpu.memory_space<vmem>>, vector<1x128x128xbf16>
    %37 = vector.shape_cast %36 : vector<1x128x128xbf16> to vector<128x128xbf16>
    %cst_20 = arith.constant dense<0.000000e+00> : vector<16x128xf32>
    %38 = tpu.matmul %35, %37, %cst_20 {dimension_numbers = #tpu.dot_dimension_numbers<[1], [0], [0], [1], [0, 0, 1, 1], [], []>} : vector<16x128xbf16>, vector<128x128xbf16>, vector<16x128xf32> -> vector<16x128xf32>
    %cst_21 = arith.constant 0.000000e+00 : f32
    %39 = vector.broadcast %cst_21 : f32 to vector<16x128xf32>
    %40 = arith.maximumf %38, %39 : vector<16x128xf32>
    %41 = arith.truncf %40 : vector<16x128xf32> to vector<16x128xbf16>
    %c0_22 = arith.constant 0 : index
    %c0_23 = arith.constant 0 : index
    %c0_24 = arith.constant 0 : index
    %42 = vector.load %arg7[%c0_22, %c0_23, %c0_24] : memref<4x128x128xbf16, #tpu.memory_space<vmem>>, vector<1x128x128xbf16>
    %43 = vector.shape_cast %42 : vector<1x128x128xbf16> to vector<128x128xbf16>
    %cst_25 = arith.constant dense<0.000000e+00> : vector<16x128xf32>
    %44 = tpu.matmul %41, %43, %cst_25 {dimension_numbers = #tpu.dot_dimension_numbers<[1], [0], [0], [1], [0, 0, 1, 1], [], []>} : vector<16x128xbf16>, vector<128x128xbf16>, vector<16x128xf32> -> vector<16x128xf32>
    %45 = arith.addf %34, %44 : vector<16x128xf32>
    %46 = vector.shape_cast %45 : vector<16x128xf32> to vector<1x16x128xf32>
    %c0_26 = arith.constant 0 : index
    %c0_27 = arith.constant 0 : index
    %c0_28 = arith.constant 0 : index
    %47 = vector.load %arg3[%c0_26, %c0_27, %c0_28] : memref<4x1x128xf32, #tpu.memory_space<vmem>>, vector<1x1x128xf32>
    %48 = vector.shape_cast %47 : vector<1x1x128xf32> to vector<1x128xf32>
    %49 = vector.shape_cast %48 : vector<1x128xf32> to vector<1x1x128xf32>
    %50 = vector.extract_strided_slice %46 {offsets = [0, 0, 0], sizes = [1, 8, 128], strides = [1, 1, 1]} : vector<1x16x128xf32> to vector<1x8x128xf32>
    %51 = vector.broadcast %49 : vector<1x1x128xf32> to vector<1x8x128xf32>
    %52 = arith.mulf %51, %50 : vector<1x8x128xf32>
    %53 = arith.addf %2, %52 : vector<1x8x128xf32>
    %54 = vector.shape_cast %46 : vector<1x16x128xf32> to vector<16x128xf32>
    %55 = arith.truncf %54 : vector<16x128xf32> to vector<16x128xbf16>
    %c1 = arith.constant 1 : index
    %c0_29 = arith.constant 0 : index
    %c0_30 = arith.constant 0 : index
    %56 = vector.load %arg4[%c1, %c0_29, %c0_30] : memref<4x128x384xbf16, #tpu.memory_space<vmem>>, vector<1x128x384xbf16>
    %57 = vector.shape_cast %56 : vector<1x128x384xbf16> to vector<128x384xbf16>
    %cst_31 = arith.constant dense<0.000000e+00> : vector<16x384xf32>
    %58 = tpu.matmul %55, %57, %cst_31 {dimension_numbers = #tpu.dot_dimension_numbers<[1], [0], [0], [1], [0, 0, 1, 1], [], []>} : vector<16x128xbf16>, vector<128x384xbf16>, vector<16x384xf32> -> vector<16x384xf32>
    %59 = vector.shape_cast %58 : vector<16x384xf32> to vector<1x16x384xf32>
    %60 = vector.extract_strided_slice %59 {offsets = [0, 0, 0], sizes = [1, 16, 128], strides = [1, 1, 1]} : vector<1x16x384xf32> to vector<1x16x128xf32>
    %61 = vector.extract_strided_slice %59 {offsets = [0, 0, 128], sizes = [1, 16, 128], strides = [1, 1, 1]} : vector<1x16x384xf32> to vector<1x16x128xf32>
    %62 = vector.extract_strided_slice %59 {offsets = [0, 0, 256], sizes = [1, 16, 128], strides = [1, 1, 1]} : vector<1x16x384xf32> to vector<1x16x128xf32>
    %63 = arith.truncf %60 : vector<1x16x128xf32> to vector<1x16x128xbf16>
    %64 = arith.truncf %61 : vector<1x16x128xf32> to vector<1x16x128xbf16>
    "tpu.trace_start"() <{level = 10 : i32, message = "bqd,bkd->bqk"}> : () -> ()
    %cst_32 = arith.constant dense<0.000000e+00> : vector<1x16x16xf32>
    %65 = tpu.matmul %63, %64, %cst_32 {dimension_numbers = #tpu.dot_dimension_numbers<[2], [2], [1], [1], [0, 0, 0, 1, 1, 1], [0], [0]>} : vector<1x16x128xbf16>, vector<1x16x128xbf16>, vector<1x16x16xf32> -> vector<1x16x16xf32>
    "tpu.trace_stop"() : () -> ()
    %66 = vector.broadcast %0 : vector<1x1x16xf32> to vector<1x16x16xf32>
    %67 = arith.addf %65, %66 : vector<1x16x16xf32>
    %cst_33 = arith.constant dense<0xFF800000> : vector<1x16xf32>
    %68 = vector.multi_reduction <maximumf>, %67, %cst_33 [2] : vector<1x16x16xf32> to vector<1x16xf32>
    %69 = vector.shape_cast %68 : vector<1x16xf32> to vector<1x16x1xf32>
    %70 = vector.broadcast %69 : vector<1x16x1xf32> to vector<1x16x16xf32>
    %71 = arith.subf %67, %70 : vector<1x16x16xf32>
    %72 = math.exp %71 : vector<1x16x16xf32>
    %cst_34 = arith.constant dense<0.000000e+00> : vector<1x16xf32>
    %73 = vector.multi_reduction <add>, %72, %cst_34 [2] : vector<1x16x16xf32> to vector<1x16xf32>
    %74 = vector.shape_cast %73 : vector<1x16xf32> to vector<1x16x1xf32>
    %75 = vector.broadcast %74 : vector<1x16x1xf32> to vector<1x16x16xf32>
    %76 = arith.divf %72, %75 : vector<1x16x16xf32>
    %77 = arith.truncf %76 : vector<1x16x16xf32> to vector<1x16x16xbf16>
    %78 = arith.truncf %62 : vector<1x16x128xf32> to vector<1x16x128xbf16>
    "tpu.trace_start"() <{level = 10 : i32, message = "bqk,bkd->bqd"}> : () -> ()
    %cst_35 = arith.constant dense<0.000000e+00> : vector<1x16x128xf32>
    %79 = tpu.matmul %77, %78, %cst_35 {dimension_numbers = #tpu.dot_dimension_numbers<[2], [1], [1], [2], [0, 0, 0, 1, 1, 2], [0], [0]>} : vector<1x16x16xbf16>, vector<1x16x128xbf16>, vector<1x16x128xf32> -> vector<1x16x128xf32>
    "tpu.trace_stop"() : () -> ()
    %80 = vector.shape_cast %79 : vector<1x16x128xf32> to vector<16x128xf32>
    %81 = arith.truncf %80 : vector<16x128xf32> to vector<16x128xbf16>
    %c1_36 = arith.constant 1 : index
    %c0_37 = arith.constant 0 : index
    %c0_38 = arith.constant 0 : index
    %82 = vector.load %arg5[%c1_36, %c0_37, %c0_38] : memref<4x128x128xbf16, #tpu.memory_space<vmem>>, vector<1x128x128xbf16>
    %83 = vector.shape_cast %82 : vector<1x128x128xbf16> to vector<128x128xbf16>
    %cst_39 = arith.constant dense<0.000000e+00> : vector<16x128xf32>
    %84 = tpu.matmul %81, %83, %cst_39 {dimension_numbers = #tpu.dot_dimension_numbers<[1], [0], [0], [1], [0, 0, 1, 1], [], []>} : vector<16x128xbf16>, vector<128x128xbf16>, vector<16x128xf32> -> vector<16x128xf32>
    %85 = arith.addf %54, %84 : vector<16x128xf32>
    %86 = arith.truncf %85 : vector<16x128xf32> to vector<16x128xbf16>
    %c1_40 = arith.constant 1 : index
    %c0_41 = arith.constant 0 : index
    %c0_42 = arith.constant 0 : index
    %87 = vector.load %arg6[%c1_40, %c0_41, %c0_42] : memref<4x128x128xbf16, #tpu.memory_space<vmem>>, vector<1x128x128xbf16>
    %88 = vector.shape_cast %87 : vector<1x128x128xbf16> to vector<128x128xbf16>
    %cst_43 = arith.constant dense<0.000000e+00> : vector<16x128xf32>
    %89 = tpu.matmul %86, %88, %cst_43 {dimension_numbers = #tpu.dot_dimension_numbers<[1], [0], [0], [1], [0, 0, 1, 1], [], []>} : vector<16x128xbf16>, vector<128x128xbf16>, vector<16x128xf32> -> vector<16x128xf32>
    %cst_44 = arith.constant 0.000000e+00 : f32
    %90 = vector.broadcast %cst_44 : f32 to vector<16x128xf32>
    %91 = arith.maximumf %89, %90 : vector<16x128xf32>
    %92 = arith.truncf %91 : vector<16x128xf32> to vector<16x128xbf16>
    %c1_45 = arith.constant 1 : index
    %c0_46 = arith.constant 0 : index
    %c0_47 = arith.constant 0 : index
    %93 = vector.load %arg7[%c1_45, %c0_46, %c0_47] : memref<4x128x128xbf16, #tpu.memory_space<vmem>>, vector<1x128x128xbf16>
    %94 = vector.shape_cast %93 : vector<1x128x128xbf16> to vector<128x128xbf16>
    %cst_48 = arith.constant dense<0.000000e+00> : vector<16x128xf32>
    %95 = tpu.matmul %92, %94, %cst_48 {dimension_numbers = #tpu.dot_dimension_numbers<[1], [0], [0], [1], [0, 0, 1, 1], [], []>} : vector<16x128xbf16>, vector<128x128xbf16>, vector<16x128xf32> -> vector<16x128xf32>
    %96 = arith.addf %85, %95 : vector<16x128xf32>
    %97 = vector.shape_cast %96 : vector<16x128xf32> to vector<1x16x128xf32>
    %c1_49 = arith.constant 1 : index
    %c0_50 = arith.constant 0 : index
    %c0_51 = arith.constant 0 : index
    %98 = vector.load %arg3[%c1_49, %c0_50, %c0_51] : memref<4x1x128xf32, #tpu.memory_space<vmem>>, vector<1x1x128xf32>
    %99 = vector.shape_cast %98 : vector<1x1x128xf32> to vector<1x128xf32>
    %100 = vector.shape_cast %99 : vector<1x128xf32> to vector<1x1x128xf32>
    %101 = vector.extract_strided_slice %97 {offsets = [0, 0, 0], sizes = [1, 8, 128], strides = [1, 1, 1]} : vector<1x16x128xf32> to vector<1x8x128xf32>
    %102 = vector.broadcast %100 : vector<1x1x128xf32> to vector<1x8x128xf32>
    %103 = arith.mulf %102, %101 : vector<1x8x128xf32>
    %104 = arith.addf %53, %103 : vector<1x8x128xf32>
    %105 = vector.shape_cast %97 : vector<1x16x128xf32> to vector<16x128xf32>
    %106 = arith.truncf %105 : vector<16x128xf32> to vector<16x128xbf16>
    %c2 = arith.constant 2 : index
    %c0_52 = arith.constant 0 : index
    %c0_53 = arith.constant 0 : index
    %107 = vector.load %arg4[%c2, %c0_52, %c0_53] : memref<4x128x384xbf16, #tpu.memory_space<vmem>>, vector<1x128x384xbf16>
    %108 = vector.shape_cast %107 : vector<1x128x384xbf16> to vector<128x384xbf16>
    %cst_54 = arith.constant dense<0.000000e+00> : vector<16x384xf32>
    %109 = tpu.matmul %106, %108, %cst_54 {dimension_numbers = #tpu.dot_dimension_numbers<[1], [0], [0], [1], [0, 0, 1, 1], [], []>} : vector<16x128xbf16>, vector<128x384xbf16>, vector<16x384xf32> -> vector<16x384xf32>
    %110 = vector.shape_cast %109 : vector<16x384xf32> to vector<1x16x384xf32>
    %111 = vector.extract_strided_slice %110 {offsets = [0, 0, 0], sizes = [1, 16, 128], strides = [1, 1, 1]} : vector<1x16x384xf32> to vector<1x16x128xf32>
    %112 = vector.extract_strided_slice %110 {offsets = [0, 0, 128], sizes = [1, 16, 128], strides = [1, 1, 1]} : vector<1x16x384xf32> to vector<1x16x128xf32>
    %113 = vector.extract_strided_slice %110 {offsets = [0, 0, 256], sizes = [1, 16, 128], strides = [1, 1, 1]} : vector<1x16x384xf32> to vector<1x16x128xf32>
    %114 = arith.truncf %111 : vector<1x16x128xf32> to vector<1x16x128xbf16>
    %115 = arith.truncf %112 : vector<1x16x128xf32> to vector<1x16x128xbf16>
    "tpu.trace_start"() <{level = 10 : i32, message = "bqd,bkd->bqk"}> : () -> ()
    %cst_55 = arith.constant dense<0.000000e+00> : vector<1x16x16xf32>
    %116 = tpu.matmul %114, %115, %cst_55 {dimension_numbers = #tpu.dot_dimension_numbers<[2], [2], [1], [1], [0, 0, 0, 1, 1, 1], [0], [0]>} : vector<1x16x128xbf16>, vector<1x16x128xbf16>, vector<1x16x16xf32> -> vector<1x16x16xf32>
    "tpu.trace_stop"() : () -> ()
    %117 = vector.broadcast %0 : vector<1x1x16xf32> to vector<1x16x16xf32>
    %118 = arith.addf %116, %117 : vector<1x16x16xf32>
    %cst_56 = arith.constant dense<0xFF800000> : vector<1x16xf32>
    %119 = vector.multi_reduction <maximumf>, %118, %cst_56 [2] : vector<1x16x16xf32> to vector<1x16xf32>
    %120 = vector.shape_cast %119 : vector<1x16xf32> to vector<1x16x1xf32>
    %121 = vector.broadcast %120 : vector<1x16x1xf32> to vector<1x16x16xf32>
    %122 = arith.subf %118, %121 : vector<1x16x16xf32>
    %123 = math.exp %122 : vector<1x16x16xf32>
    %cst_57 = arith.constant dense<0.000000e+00> : vector<1x16xf32>
    %124 = vector.multi_reduction <add>, %123, %cst_57 [2] : vector<1x16x16xf32> to vector<1x16xf32>
    %125 = vector.shape_cast %124 : vector<1x16xf32> to vector<1x16x1xf32>
    %126 = vector.broadcast %125 : vector<1x16x1xf32> to vector<1x16x16xf32>
    %127 = arith.divf %123, %126 : vector<1x16x16xf32>
    %128 = arith.truncf %127 : vector<1x16x16xf32> to vector<1x16x16xbf16>
    %129 = arith.truncf %113 : vector<1x16x128xf32> to vector<1x16x128xbf16>
    "tpu.trace_start"() <{level = 10 : i32, message = "bqk,bkd->bqd"}> : () -> ()
    %cst_58 = arith.constant dense<0.000000e+00> : vector<1x16x128xf32>
    %130 = tpu.matmul %128, %129, %cst_58 {dimension_numbers = #tpu.dot_dimension_numbers<[2], [1], [1], [2], [0, 0, 0, 1, 1, 2], [0], [0]>} : vector<1x16x16xbf16>, vector<1x16x128xbf16>, vector<1x16x128xf32> -> vector<1x16x128xf32>
    "tpu.trace_stop"() : () -> ()
    %131 = vector.shape_cast %130 : vector<1x16x128xf32> to vector<16x128xf32>
    %132 = arith.truncf %131 : vector<16x128xf32> to vector<16x128xbf16>
    %c2_59 = arith.constant 2 : index
    %c0_60 = arith.constant 0 : index
    %c0_61 = arith.constant 0 : index
    %133 = vector.load %arg5[%c2_59, %c0_60, %c0_61] : memref<4x128x128xbf16, #tpu.memory_space<vmem>>, vector<1x128x128xbf16>
    %134 = vector.shape_cast %133 : vector<1x128x128xbf16> to vector<128x128xbf16>
    %cst_62 = arith.constant dense<0.000000e+00> : vector<16x128xf32>
    %135 = tpu.matmul %132, %134, %cst_62 {dimension_numbers = #tpu.dot_dimension_numbers<[1], [0], [0], [1], [0, 0, 1, 1], [], []>} : vector<16x128xbf16>, vector<128x128xbf16>, vector<16x128xf32> -> vector<16x128xf32>
    %136 = arith.addf %105, %135 : vector<16x128xf32>
    %137 = arith.truncf %136 : vector<16x128xf32> to vector<16x128xbf16>
    %c2_63 = arith.constant 2 : index
    %c0_64 = arith.constant 0 : index
    %c0_65 = arith.constant 0 : index
    %138 = vector.load %arg6[%c2_63, %c0_64, %c0_65] : memref<4x128x128xbf16, #tpu.memory_space<vmem>>, vector<1x128x128xbf16>
    %139 = vector.shape_cast %138 : vector<1x128x128xbf16> to vector<128x128xbf16>
    %cst_66 = arith.constant dense<0.000000e+00> : vector<16x128xf32>
    %140 = tpu.matmul %137, %139, %cst_66 {dimension_numbers = #tpu.dot_dimension_numbers<[1], [0], [0], [1], [0, 0, 1, 1], [], []>} : vector<16x128xbf16>, vector<128x128xbf16>, vector<16x128xf32> -> vector<16x128xf32>
    %cst_67 = arith.constant 0.000000e+00 : f32
    %141 = vector.broadcast %cst_67 : f32 to vector<16x128xf32>
    %142 = arith.maximumf %140, %141 : vector<16x128xf32>
    %143 = arith.truncf %142 : vector<16x128xf32> to vector<16x128xbf16>
    %c2_68 = arith.constant 2 : index
    %c0_69 = arith.constant 0 : index
    %c0_70 = arith.constant 0 : index
    %144 = vector.load %arg7[%c2_68, %c0_69, %c0_70] : memref<4x128x128xbf16, #tpu.memory_space<vmem>>, vector<1x128x128xbf16>
    %145 = vector.shape_cast %144 : vector<1x128x128xbf16> to vector<128x128xbf16>
    %cst_71 = arith.constant dense<0.000000e+00> : vector<16x128xf32>
    %146 = tpu.matmul %143, %145, %cst_71 {dimension_numbers = #tpu.dot_dimension_numbers<[1], [0], [0], [1], [0, 0, 1, 1], [], []>} : vector<16x128xbf16>, vector<128x128xbf16>, vector<16x128xf32> -> vector<16x128xf32>
    %147 = arith.addf %136, %146 : vector<16x128xf32>
    %148 = vector.shape_cast %147 : vector<16x128xf32> to vector<1x16x128xf32>
    %c2_72 = arith.constant 2 : index
    %c0_73 = arith.constant 0 : index
    %c0_74 = arith.constant 0 : index
    %149 = vector.load %arg3[%c2_72, %c0_73, %c0_74] : memref<4x1x128xf32, #tpu.memory_space<vmem>>, vector<1x1x128xf32>
    %150 = vector.shape_cast %149 : vector<1x1x128xf32> to vector<1x128xf32>
    %151 = vector.shape_cast %150 : vector<1x128xf32> to vector<1x1x128xf32>
    %152 = vector.extract_strided_slice %148 {offsets = [0, 0, 0], sizes = [1, 8, 128], strides = [1, 1, 1]} : vector<1x16x128xf32> to vector<1x8x128xf32>
    %153 = vector.broadcast %151 : vector<1x1x128xf32> to vector<1x8x128xf32>
    %154 = arith.mulf %153, %152 : vector<1x8x128xf32>
    %155 = arith.addf %104, %154 : vector<1x8x128xf32>
    %156 = vector.shape_cast %148 : vector<1x16x128xf32> to vector<16x128xf32>
    %157 = arith.truncf %156 : vector<16x128xf32> to vector<16x128xbf16>
    %c3 = arith.constant 3 : index
    %c0_75 = arith.constant 0 : index
    %c0_76 = arith.constant 0 : index
    %158 = vector.load %arg4[%c3, %c0_75, %c0_76] : memref<4x128x384xbf16, #tpu.memory_space<vmem>>, vector<1x128x384xbf16>
    %159 = vector.shape_cast %158 : vector<1x128x384xbf16> to vector<128x384xbf16>
    %cst_77 = arith.constant dense<0.000000e+00> : vector<16x384xf32>
    %160 = tpu.matmul %157, %159, %cst_77 {dimension_numbers = #tpu.dot_dimension_numbers<[1], [0], [0], [1], [0, 0, 1, 1], [], []>} : vector<16x128xbf16>, vector<128x384xbf16>, vector<16x384xf32> -> vector<16x384xf32>
    %161 = vector.shape_cast %160 : vector<16x384xf32> to vector<1x16x384xf32>
    %162 = vector.extract_strided_slice %161 {offsets = [0, 0, 0], sizes = [1, 16, 128], strides = [1, 1, 1]} : vector<1x16x384xf32> to vector<1x16x128xf32>
    %163 = vector.extract_strided_slice %161 {offsets = [0, 0, 128], sizes = [1, 16, 128], strides = [1, 1, 1]} : vector<1x16x384xf32> to vector<1x16x128xf32>
    %164 = vector.extract_strided_slice %161 {offsets = [0, 0, 256], sizes = [1, 16, 128], strides = [1, 1, 1]} : vector<1x16x384xf32> to vector<1x16x128xf32>
    %165 = arith.truncf %162 : vector<1x16x128xf32> to vector<1x16x128xbf16>
    %166 = arith.truncf %163 : vector<1x16x128xf32> to vector<1x16x128xbf16>
    "tpu.trace_start"() <{level = 10 : i32, message = "bqd,bkd->bqk"}> : () -> ()
    %cst_78 = arith.constant dense<0.000000e+00> : vector<1x16x16xf32>
    %167 = tpu.matmul %165, %166, %cst_78 {dimension_numbers = #tpu.dot_dimension_numbers<[2], [2], [1], [1], [0, 0, 0, 1, 1, 1], [0], [0]>} : vector<1x16x128xbf16>, vector<1x16x128xbf16>, vector<1x16x16xf32> -> vector<1x16x16xf32>
    "tpu.trace_stop"() : () -> ()
    %168 = vector.broadcast %0 : vector<1x1x16xf32> to vector<1x16x16xf32>
    %169 = arith.addf %167, %168 : vector<1x16x16xf32>
    %cst_79 = arith.constant dense<0xFF800000> : vector<1x16xf32>
    %170 = vector.multi_reduction <maximumf>, %169, %cst_79 [2] : vector<1x16x16xf32> to vector<1x16xf32>
    %171 = vector.shape_cast %170 : vector<1x16xf32> to vector<1x16x1xf32>
    %172 = vector.broadcast %171 : vector<1x16x1xf32> to vector<1x16x16xf32>
    %173 = arith.subf %169, %172 : vector<1x16x16xf32>
    %174 = math.exp %173 : vector<1x16x16xf32>
    %cst_80 = arith.constant dense<0.000000e+00> : vector<1x16xf32>
    %175 = vector.multi_reduction <add>, %174, %cst_80 [2] : vector<1x16x16xf32> to vector<1x16xf32>
    %176 = vector.shape_cast %175 : vector<1x16xf32> to vector<1x16x1xf32>
    %177 = vector.broadcast %176 : vector<1x16x1xf32> to vector<1x16x16xf32>
    %178 = arith.divf %174, %177 : vector<1x16x16xf32>
    %179 = arith.truncf %178 : vector<1x16x16xf32> to vector<1x16x16xbf16>
    %180 = arith.truncf %164 : vector<1x16x128xf32> to vector<1x16x128xbf16>
    "tpu.trace_start"() <{level = 10 : i32, message = "bqk,bkd->bqd"}> : () -> ()
    %cst_81 = arith.constant dense<0.000000e+00> : vector<1x16x128xf32>
    %181 = tpu.matmul %179, %180, %cst_81 {dimension_numbers = #tpu.dot_dimension_numbers<[2], [1], [1], [2], [0, 0, 0, 1, 1, 2], [0], [0]>} : vector<1x16x16xbf16>, vector<1x16x128xbf16>, vector<1x16x128xf32> -> vector<1x16x128xf32>
    "tpu.trace_stop"() : () -> ()
    %182 = vector.shape_cast %181 : vector<1x16x128xf32> to vector<16x128xf32>
    %183 = arith.truncf %182 : vector<16x128xf32> to vector<16x128xbf16>
    %c3_82 = arith.constant 3 : index
    %c0_83 = arith.constant 0 : index
    %c0_84 = arith.constant 0 : index
    %184 = vector.load %arg5[%c3_82, %c0_83, %c0_84] : memref<4x128x128xbf16, #tpu.memory_space<vmem>>, vector<1x128x128xbf16>
    %185 = vector.shape_cast %184 : vector<1x128x128xbf16> to vector<128x128xbf16>
    %cst_85 = arith.constant dense<0.000000e+00> : vector<16x128xf32>
    %186 = tpu.matmul %183, %185, %cst_85 {dimension_numbers = #tpu.dot_dimension_numbers<[1], [0], [0], [1], [0, 0, 1, 1], [], []>} : vector<16x128xbf16>, vector<128x128xbf16>, vector<16x128xf32> -> vector<16x128xf32>
    %187 = arith.addf %156, %186 : vector<16x128xf32>
    %188 = arith.truncf %187 : vector<16x128xf32> to vector<16x128xbf16>
    %c3_86 = arith.constant 3 : index
    %c0_87 = arith.constant 0 : index
    %c0_88 = arith.constant 0 : index
    %189 = vector.load %arg6[%c3_86, %c0_87, %c0_88] : memref<4x128x128xbf16, #tpu.memory_space<vmem>>, vector<1x128x128xbf16>
    %190 = vector.shape_cast %189 : vector<1x128x128xbf16> to vector<128x128xbf16>
    %cst_89 = arith.constant dense<0.000000e+00> : vector<16x128xf32>
    %191 = tpu.matmul %188, %190, %cst_89 {dimension_numbers = #tpu.dot_dimension_numbers<[1], [0], [0], [1], [0, 0, 1, 1], [], []>} : vector<16x128xbf16>, vector<128x128xbf16>, vector<16x128xf32> -> vector<16x128xf32>
    %cst_90 = arith.constant 0.000000e+00 : f32
    %192 = vector.broadcast %cst_90 : f32 to vector<16x128xf32>
    %193 = arith.maximumf %191, %192 : vector<16x128xf32>
    %194 = arith.truncf %193 : vector<16x128xf32> to vector<16x128xbf16>
    %c3_91 = arith.constant 3 : index
    %c0_92 = arith.constant 0 : index
    %c0_93 = arith.constant 0 : index
    %195 = vector.load %arg7[%c3_91, %c0_92, %c0_93] : memref<4x128x128xbf16, #tpu.memory_space<vmem>>, vector<1x128x128xbf16>
    %196 = vector.shape_cast %195 : vector<1x128x128xbf16> to vector<128x128xbf16>
    %cst_94 = arith.constant dense<0.000000e+00> : vector<16x128xf32>
    %197 = tpu.matmul %194, %196, %cst_94 {dimension_numbers = #tpu.dot_dimension_numbers<[1], [0], [0], [1], [0, 0, 1, 1], [], []>} : vector<16x128xbf16>, vector<128x128xbf16>, vector<16x128xf32> -> vector<16x128xf32>
    %198 = arith.addf %187, %197 : vector<16x128xf32>
    %199 = vector.shape_cast %198 : vector<16x128xf32> to vector<1x16x128xf32>
    %c3_95 = arith.constant 3 : index
    %c0_96 = arith.constant 0 : index
    %c0_97 = arith.constant 0 : index
    %200 = vector.load %arg3[%c3_95, %c0_96, %c0_97] : memref<4x1x128xf32, #tpu.memory_space<vmem>>, vector<1x1x128xf32>
    %201 = vector.shape_cast %200 : vector<1x1x128xf32> to vector<1x128xf32>
    %202 = vector.shape_cast %201 : vector<1x128xf32> to vector<1x1x128xf32>
    %203 = vector.extract_strided_slice %199 {offsets = [0, 0, 0], sizes = [1, 8, 128], strides = [1, 1, 1]} : vector<1x16x128xf32> to vector<1x8x128xf32>
    %204 = vector.broadcast %202 : vector<1x1x128xf32> to vector<1x8x128xf32>
    %205 = arith.mulf %204, %203 : vector<1x8x128xf32>
    %206 = arith.addf %155, %205 : vector<1x8x128xf32>
    %c0_98 = arith.constant 0 : index
    %c0_99 = arith.constant 0 : index
    %c0_100 = arith.constant 0 : index
    %207 = vector.load %arg8[%c0_98, %c0_99, %c0_100] : memref<1x16x128xf32, #tpu.memory_space<vmem>>, vector<1x16x128xf32>
    tpu.vector_store %arg8[%c0_98, %c0_99, %c0_100], %199 {strides = array<i32>} : memref<1x16x128xf32, #tpu.memory_space<vmem>>, vector<1x16x128xf32>,
    %c0_101 = arith.constant 0 : index
    %c0_102 = arith.constant 0 : index
    %c0_103 = arith.constant 0 : index
    %208 = vector.load %arg9[%c0_101, %c0_102, %c0_103] : memref<1x8x128xf32, #tpu.memory_space<vmem>>, vector<1x8x128xf32>
    tpu.vector_store %arg9[%c0_101, %c0_102, %c0_103], %206 {strides = array<i32>} : memref<1x8x128xf32, #tpu.memory_space<vmem>>, vector<1x8x128xf32>,
    return
  }
  func.func @transform_0(%arg0: i32) -> (i32, i32, i32) {
    %c0_i32 = arith.constant 0 : i32
    %c0_i32_0 = arith.constant 0 : i32
    %c0_i32_1 = arith.constant 0 : i32
    return %arg0, %c0_i32, %c0_i32_0 : i32, i32, i32
  }
  func.func @transform_1(%arg0: i32) -> (i32, i32, i32) {
    %c0_i32 = arith.constant 0 : i32
    %c0_i32_0 = arith.constant 0 : i32
    %c0_i32_1 = arith.constant 0 : i32
    return %arg0, %c0_i32, %c0_i32_0 : i32, i32, i32
  }
  func.func @transform_2(%arg0: i32) -> (i32, i32, i32) {
    %c0_i32 = arith.constant 0 : i32
    %c0_i32_0 = arith.constant 0 : i32
    %c0_i32_1 = arith.constant 0 : i32
    %c0_i32_2 = arith.constant 0 : i32
    return %c0_i32, %c0_i32_0, %c0_i32_1 : i32, i32, i32
  }
  func.func @transform_3(%arg0: i32) -> (i32, i32, i32) {
    %c0_i32 = arith.constant 0 : i32
    %c0_i32_0 = arith.constant 0 : i32
    %c0_i32_1 = arith.constant 0 : i32
    %c0_i32_2 = arith.constant 0 : i32
    return %c0_i32, %c0_i32_0, %c0_i32_1 : i32, i32, i32
  }
  func.func @transform_4(%arg0: i32) -> (i32, i32, i32) {
    %c0_i32 = arith.constant 0 : i32
    %c0_i32_0 = arith.constant 0 : i32
    %c0_i32_1 = arith.constant 0 : i32
    %c0_i32_2 = arith.constant 0 : i32
    return %c0_i32, %c0_i32_0, %c0_i32_1 : i32, i32, i32
  }
  func.func @transform_5(%arg0: i32) -> (i32, i32, i32) {
    %c0_i32 = arith.constant 0 : i32
    %c0_i32_0 = arith.constant 0 : i32
    %c0_i32_1 = arith.constant 0 : i32
    %c0_i32_2 = arith.constant 0 : i32
    return %c0_i32, %c0_i32_0, %c0_i32_1 : i32, i32, i32
  }
  func.func @transform_6(%arg0: i32) -> (i32, i32, i32) {
    %c0_i32 = arith.constant 0 : i32
    %c0_i32_0 = arith.constant 0 : i32
    %c0_i32_1 = arith.constant 0 : i32
    %c0_i32_2 = arith.constant 0 : i32
    return %c0_i32, %c0_i32_0, %c0_i32_1 : i32, i32, i32
  }
  func.func @transform_7(%arg0: i32) -> (i32, i32, i32) {
    %c0_i32 = arith.constant 0 : i32
    %c0_i32_0 = arith.constant 0 : i32
    %c0_i32_1 = arith.constant 0 : i32
    return %arg0, %c0_i32, %c0_i32_0 : i32, i32, i32
  }
  func.func @transform_8(%arg0: i32) -> (i32, i32, i32) {
    %c0_i32 = arith.constant 0 : i32
    %c0_i32_0 = arith.constant 0 : i32
    %c0_i32_1 = arith.constant 0 : i32
    return %arg0, %c0_i32, %c0_i32_0 : i32, i32, i32
  }
}

</mosaic_0001>

<llo_original>
// kernel: smlb_forward.1
$region0: #{smlb_forward.1}
  #allocation0 [shape = 'u32[]', space=smem, size = 0x4, offset = 0x4, fixed_abs, tag = 'smem constant byte address 0x4 - core index']
  #allocation1 [shape = 'u32[144,128]{1,0:T(1,128)}', space=vmem, size = 0x12000, scoped, tag = 'internal scratch']
  %s0 = inlined_call_operand.vmem [shape: f32[2,16,128], index: 0, kind: input, shape index: {}, may-alias: {0,7}]
  %s1 = inlined_call_operand.vmem [shape: f32[2,1,16], index: 1, kind: input, shape index: {}]
  %s2 = inlined_call_operand.vmem [shape: f32[4,1,128], index: 2, kind: input, shape index: {}]
  %s3 = inlined_call_operand.hbm [shape: bf16[4,128,384], index: 3, kind: input, shape index: {}]
  %s4 = inlined_call_operand.vmem [shape: bf16[4,128,128], index: 4, kind: input, shape index: {}]
  %s5 = inlined_call_operand.hbm [shape: bf16[4,128,128], index: 5, kind: input, shape index: {}]
  %s6 = inlined_call_operand.hbm [shape: bf16[4,128,128], index: 6, kind: input, shape index: {}]
  %s7 = inlined_call_operand.vmem [shape: f32[2,16,128], index: 7, kind: output, shape index: {0}, may-alias: {0,7}]
  %s8 = inlined_call_operand.vmem [shape: f32[2,8,128], index: 8, kind: output, shape index: {1}]
  %9 = xla_tuple %s7, %s8
  %s10 = sld [smem:[#allocation0]]
  $region81: #{smlb_forward.1} parent=0
    _
  %s12 = ssub.s32 1, %s10
  %s13 = scalar_select 0, %s12, %s10
  $region1: #{smlb_forward.1} parent=0
    #allocation2 [shape = 'u8[393216]{0}', space=vmem, size = 0x60000, scoped, tag = 'input window, operand 3, single buffered']
    #allocation3 [shape = 's32[2]{0}', space=sflag, size = 0x8, scoped, tag = 'scoped memory for smlb_forward.1']
    #allocation4 [shape = 'u8[131072]{0}', space=vmem, size = 0x20000, scoped, tag = 'input window, operand 5, single buffered']
    #allocation5 [shape = 's32[1]{0}', space=sflag, size = 0x4, scoped, tag = 'scoped memory for smlb_forward.1']
    #allocation6 [shape = 'u8[131072]{0}', space=vmem, size = 0x20000, scoped, tag = 'input window, operand 6, single buffered']
    %14 = vsyncpa [#allocation3], 0
    %15 = vsyncpa [#allocation5], 0
    loop: start=0, step=1, limit=4
    $region2: #{smlb_forward.1} parent=1 // loop_pre_header
      _
    $region3: #{smlb_forward.1} parent=1 // loop_header
      %s17 = sphi 0, %s21
      %p18 = scmp.ge.s32.totalorder %s17, 4
      %s27 = sphi 0, %s29
      %s30 = sphi 0, %s27
      %s31 = sphi 0, %s30
      %s47 = sphi 0, %s31
      %s53 = sphi 0, %s55
      %s56 = sphi 0, %s53
      %s57 = sphi 0, %s56
      %s73 = sphi 0, %s57
      %s77 = sphi 0, %s77
      %s79 = sphi 0, %s77
      %s80 = sphi 0, %s79
      %s94 = sphi 0, %s80
      %s98 = sphi 0, %s98
      %s100 = sphi 0, %s98
      %s101 = sphi 0, %s100
      %s115 = sphi 0, %s101
      %s119 = sphi 0, %s119
      %s121 = sphi 0, %s119
      %s122 = sphi 0, %s121
      %s136 = sphi 0, %s122
      %s140 = sphi 0, %s140
      %s142 = sphi 0, %s140
      %s143 = sphi 0, %s142
      %s157 = sphi 0, %s143
      %s161 = sphi 0, %s161
      %s163 = sphi 0, %s161
      %s164 = sphi 0, %s163
      %s178 = sphi 0, %s164
      %s184 = sphi 0, %s186
      %s187 = sphi 0, %s184
      %s188 = sphi 0, %s187
      %s204 = sphi 0, %s188
      %s210 = sphi 0, %s212
      %s213 = sphi 0, %s210
      %s214 = sphi 0, %s213
      %s230 = sphi 0, %s214
    $region4: #{smlb_forward.1} parent=1 // loop_header_branch
      %20 = sbr.rel (%p18) target = $region8
    $region5: #{smlb_forward.1} parent=1 // loop_body
      %s22 = ssub.s32 %s17, 1
      %s23 = ssub.s32 %s17, 2
      %s24 = sadd.s32 %s17, 1
      %s25 = ssub.s32 %s17, %s24
      %p26 = scmp.eq.s32.totalorder %s25, 0
      %s28 = sadd.s32 %s27, 1
      %s29 = scalar_select %p26, %s27, %s28
      %p32 = pneg %p26
      %p33 = scmp.eq.s32.totalorder %s17, 1
      %p34 = por %p32, %p33
      %p35 = scmp.ne.s32.totalorder %s27, %s30
      %p36 = scmp.eq.s32.totalorder %s17, 0
      %p37 = por %p35, %p36
      %p38 = scmp.ne.s32.totalorder %s27, %s30
      %p39 = scmp.eq.s32.totalorder %s22, 1
      %p40 = por %p38, %p39
      %p41 = scmp.ne.s32.totalorder %s30, %s31
      %p42 = scmp.eq.s32.totalorder %s22, 0
      %p43 = por %p41, %p42
      %p44 = scmp.ne.s32.totalorder %s30, %s31
      %p45 = scmp.eq.s32.totalorder %s23, 1
      %p46 = por %p44, %p45
      %p48 = scmp.ne.s32.totalorder %s31, %s47
      %p49 = scmp.eq.s32.totalorder %s23, 0
      %p50 = por %p48, %p49
      %s51 = ssub.s32 %s17, %s24
      %p52 = scmp.eq.s32.totalorder %s51, 0
      %s54 = sadd.s32 %s53, 1
      %s55 = scalar_select %p52, %s53, %s54
      %p58 = pneg %p52
      %p59 = scmp.eq.s32.totalorder %s17, 1
      %p60 = por %p58, %p59
      %p61 = scmp.ne.s32.totalorder %s53, %s56
      %p62 = scmp.eq.s32.totalorder %s17, 0
      %p63 = por %p61, %p62
      %p64 = scmp.ne.s32.totalorder %s53, %s56
      %p65 = scmp.eq.s32.totalorder %s22, 1
      %p66 = por %p64, %p65
      %p67 = scmp.ne.s32.totalorder %s56, %s57
      %p68 = scmp.eq.s32.totalorder %s22, 0
      %p69 = por %p67, %p68
      %p70 = scmp.ne.s32.totalorder %s56, %s57
      %p71 = scmp.eq.s32.totalorder %s23, 1
      %p72 = por %p70, %p71
      %p74 = scmp.ne.s32.totalorder %s57, %s73
      %p75 = scmp.eq.s32.totalorder %s23, 0
      %p76 = por %p74, %p75
      %s78 = sadd.s32 %s77, 1
      %p81 = scmp.eq.s32.totalorder %s17, 1
      %p82 = scmp.ne.s32.totalorder %s77, %s79
      %p83 = scmp.eq.s32.totalorder %s17, 0
      %p84 = por %p82, %p83
      %p85 = scmp.ne.s32.totalorder %s77, %s79
      %p86 = scmp.eq.s32.totalorder %s22, 1
      %p87 = por %p85, %p86
      %p88 = scmp.ne.s32.totalorder %s79, %s80
      %p89 = scmp.eq.s32.totalorder %s22, 0
      %p90 = por %p88, %p89
      %p91 = scmp.ne.s32.totalorder %s79, %s80
      %p92 = scmp.eq.s32.totalorder %s23, 1
      %p93 = por %p91, %p92
      %p95 = scmp.ne.s32.totalorder %s80, %s94
      %p96 = scmp.eq.s32.totalorder %s23, 0
      %p97 = por %p95, %p96
      %s99 = sadd.s32 %s98, 1
      %p102 = scmp.eq.s32.totalorder %s17, 1
      %p103 = scmp.ne.s32.totalorder %s98, %s100
      %p104 = scmp.eq.s32.totalorder %s17, 0
      %p105 = por %p103, %p104
      %p106 = scmp.ne.s32.totalorder %s98, %s100
      %p107 = scmp.eq.s32.totalorder %s22, 1
      %p108 = por %p106, %p107
      %p109 = scmp.ne.s32.totalorder %s100, %s101
      %p110 = scmp.eq.s32.totalorder %s22, 0
      %p111 = por %p109, %p110
      %p112 = scmp.ne.s32.totalorder %s100, %s101
      %p113 = scmp.eq.s32.totalorder %s23, 1
      %p114 = por %p112, %p113
      %p116 = scmp.ne.s32.totalorder %s101, %s115
      %p117 = scmp.eq.s32.totalorder %s23, 0
      %p118 = por %p116, %p117
      %s120 = sadd.s32 %s119, 1
      %p123 = scmp.eq.s32.totalorder %s17, 1
      %p124 = scmp.ne.s32.totalorder %s119, %s121
      %p125 = scmp.eq.s32.totalorder %s17, 0
      %p126 = por %p124, %p125
      %p127 = scmp.ne.s32.totalorder %s119, %s121
      %p128 = scmp.eq.s32.totalorder %s22, 1
      %p129 = por %p127, %p128
      %p130 = scmp.ne.s32.totalorder %s121, %s122
      %p131 = scmp.eq.s32.totalorder %s22, 0
      %p132 = por %p130, %p131
      %p133 = scmp.ne.s32.totalorder %s121, %s122
      %p134 = scmp.eq.s32.totalorder %s23, 1
      %p135 = por %p133, %p134
      %p137 = scmp.ne.s32.totalorder %s122, %s136
      %p138 = scmp.eq.s32.totalorder %s23, 0
      %p139 = por %p137, %p138
      %s141 = sadd.s32 %s140, 1
      %p144 = scmp.eq.s32.totalorder %s17, 1
      %p145 = scmp.ne.s32.totalorder %s140, %s142
      %p146 = scmp.eq.s32.totalorder %s17, 0
      %p147 = por %p145, %p146
      %p148 = scmp.ne.s32.totalorder %s140, %s142
      %p149 = scmp.eq.s32.totalorder %s22, 1
      %p150 = por %p148, %p149
      %p151 = scmp.ne.s32.totalorder %s142, %s143
      %p152 = scmp.eq.s32.totalorder %s22, 0
      %p153 = por %p151, %p152
      %p154 = scmp.ne.s32.totalorder %s142, %s143
      %p155 = scmp.eq.s32.totalorder %s23, 1
      %p156 = por %p154, %p155
      %p158 = scmp.ne.s32.totalorder %s143, %s157
      %p159 = scmp.eq.s32.totalorder %s23, 0
      %p160 = por %p158, %p159
      %s162 = sadd.s32 %s161, 1
      %p165 = scmp.eq.s32.totalorder %s17, 1
      %p166 = scmp.ne.s32.totalorder %s161, %s163
      %p167 = scmp.eq.s32.totalorder %s17, 0
      %p168 = por %p166, %p167
      %p169 = scmp.ne.s32.totalorder %s161, %s163
      %p170 = scmp.eq.s32.totalorder %s22, 1
      %p171 = por %p169, %p170
      %p172 = scmp.ne.s32.totalorder %s163, %s164
      %p173 = scmp.eq.s32.totalorder %s22, 0
      %p174 = por %p172, %p173
      %p175 = scmp.ne.s32.totalorder %s163, %s164
      %p176 = scmp.eq.s32.totalorder %s23, 1
      %p177 = por %p175, %p176
      %p179 = scmp.ne.s32.totalorder %s164, %s178
      %p180 = scmp.eq.s32.totalorder %s23, 0
      %p181 = por %p179, %p180
      %s182 = ssub.s32 %s17, %s24
      %p183 = scmp.eq.s32.totalorder %s182, 0
      %s185 = sadd.s32 %s184, 1
      %s186 = scalar_select %p183, %s184, %s185
      %p189 = pneg %p183
      %p190 = scmp.eq.s32.totalorder %s17, 1
      %p191 = por %p189, %p190
      %p192 = scmp.ne.s32.totalorder %s184, %s187
      %p193 = scmp.eq.s32.totalorder %s17, 0
      %p194 = por %p192, %p193
      %p195 = scmp.ne.s32.totalorder %s184, %s187
      %p196 = scmp.eq.s32.totalorder %s22, 1
      %p197 = por %p195, %p196
      %p198 = scmp.ne.s32.totalorder %s187, %s188
      %p199 = scmp.eq.s32.totalorder %s22, 0
      %p200 = por %p198, %p199
      %p201 = scmp.ne.s32.totalorder %s187, %s188
      %p202 = scmp.eq.s32.totalorder %s23, 1
      %p203 = por %p201, %p202
      %p205 = scmp.ne.s32.totalorder %s188, %s204
      %p206 = scmp.eq.s32.totalorder %s23, 0
      %p207 = por %p205, %p206
      %s208 = ssub.s32 %s17, %s24
      %p209 = scmp.eq.s32.totalorder %s208, 0
      %s211 = sadd.s32 %s210, 1
      %s212 = scalar_select %p209, %s210, %s211
      %p215 = pneg %p209
      %p216 = scmp.eq.s32.totalorder %s17, 1
      %p217 = por %p215, %p216
      %p218 = scmp.ne.s32.totalorder %s210, %s213
      %p219 = scmp.eq.s32.totalorder %s17, 0
      %p220 = por %p218, %p219
      %p221 = scmp.ne.s32.totalorder %s210, %s213
      %p222 = scmp.eq.s32.totalorder %s22, 1
      %p223 = por %p221, %p222
      %p224 = scmp.ne.s32.totalorder %s213, %s214
      %p225 = scmp.eq.s32.totalorder %s22, 0
      %p226 = por %p224, %p225
      %p227 = scmp.ne.s32.totalorder %s213, %s214
      %p228 = scmp.eq.s32.totalorder %s23, 1
      %p229 = por %p227, %p228
      %p231 = scmp.ne.s32.totalorder %s214, %s230
      %p232 = scmp.eq.s32.totalorder %s23, 0
      %p233 = por %p231, %p232
      %p234 = scmp.le.s32.totalorder 1, %s17
      %p235 = scmp.lt.s32.totalorder %s17, 3
      %p236 = pnand %p234, %p235
      %p237 = pneg %p236
      // Predicated region
      $region9: #{smlb_forward.1} parent=5 // pred_check
        _
      $region10: #{smlb_forward.1} parent=5 // pred_check_branch
        %239 = sbr.rel (%p236) target = $region12
      $region11: #{smlb_forward.1} parent=5 // pred_region
        %s240 = ssub.s32 %s17, 1
        // Predicated region
        $region13: #{smlb_forward.1} parent=11 // pred_check
          %p241 = pneg %p90
        $region14: #{smlb_forward.1} parent=11 // pred_check_branch
          %243 = sbr.rel (%p241) target = $region16
        $region15: #{smlb_forward.1} parent=11 // pred_region
          _
        $region16: #{smlb_forward.1} parent=11 // pred_fallthru
          _
        // Predicated region
        $region17: #{smlb_forward.1} parent=11 // pred_check
          %p244 = pneg %p111
        $region18: #{smlb_forward.1} parent=11 // pred_check_branch
          %246 = sbr.rel (%p244) target = $region20
        $region19: #{smlb_forward.1} parent=11 // pred_region
          %s248 = ssub.s32 12288, 12288
          %249 = vsyncadd [#allocation3], %s248
          %s250 = sshll.u32 [#allocation2], 4
          %s251 = int_to_ptr.vmem [resolvable:$true] %s250
          %256 = dma.hbm_to_vmem [thread:$0]  %s3, 12288, %s251, [#allocation3], 192, 192, 12
        $region20: #{smlb_forward.1} parent=11 // pred_fallthru
          _
        // Predicated region
        $region21: #{smlb_forward.1} parent=11 // pred_check
          %p257 = pneg %p132
        $region22: #{smlb_forward.1} parent=11 // pred_check_branch
          %259 = sbr.rel (%p257) target = $region24
        $region23: #{smlb_forward.1} parent=11 // pred_region
          _
        $region24: #{smlb_forward.1} parent=11 // pred_fallthru
          _
        // Predicated region
        $region25: #{smlb_forward.1} parent=11 // pred_check
          %p260 = pneg %p153
        $region26: #{smlb_forward.1} parent=11 // pred_check_branch
          %262 = sbr.rel (%p260) target = $region28
        $region27: #{smlb_forward.1} parent=11 // pred_region
          %s264 = ssub.s32 4096, 4096
          %265 = vsyncadd [#allocation5], %s264
          %s266 = sshll.u32 [#allocation4], 4
          %s267 = int_to_ptr.vmem [resolvable:$true] %s266
          %272 = dma.hbm_to_vmem [thread:$0]  %s5, 4096, %s267, [#allocation5], 64, 64, 4
        $region28: #{smlb_forward.1} parent=11 // pred_fallthru
          _
        // Predicated region
        $region29: #{smlb_forward.1} parent=11 // pred_check
          %p273 = pneg %p174
        $region30: #{smlb_forward.1} parent=11 // pred_check_branch
          %275 = sbr.rel (%p273) target = $region32
        $region31: #{smlb_forward.1} parent=11 // pred_region
          %s277 = ssub.s32 4096, 4096
          %278 = vsyncadd [#allocation5], %s277
          %s279 = sshll.u32 [#allocation6], 4
          %s280 = int_to_ptr.vmem [resolvable:$true] %s279
          %285 = dma.hbm_to_vmem [thread:$0]  %s6, 4096, %s280, [#allocation5], 64, 64, 4
        $region32: #{smlb_forward.1} parent=11 // pred_fallthru
          _
      $region12: #{smlb_forward.1} parent=5 // pred_fallthru
        _
      %p286 = scmp.lt.s32.totalorder %s17, 2
      // Predicated region
      $region33: #{smlb_forward.1} parent=5 // pred_check
        %p287 = pneg %p286
      $region34: #{smlb_forward.1} parent=5 // pred_check_branch
        %289 = sbr.rel (%p287) target = $region36
      $region35: #{smlb_forward.1} parent=5 // pred_region
        // Predicated region
        $region37: #{smlb_forward.1} parent=35 // pred_check
          %p290 = pneg %p37
        $region38: #{smlb_forward.1} parent=35 // pred_check_branch
          %292 = sbr.rel (%p290) target = $region40
        $region39: #{smlb_forward.1} parent=35 // pred_region
          %p293 = scmp.lt.s32.totalorder %s17, 1
          %s294 = scalar_select %p293, %s17, 1
          %s295 = smul.addr %s294, 2
          %s296 = smul.addr %s295, 8
          %s297 = scalar_lea.vmem %s0, %s296
        $region40: #{smlb_forward.1} parent=35 // pred_fallthru
          _
        // Predicated region
        $region41: #{smlb_forward.1} parent=35 // pred_check
          %p298 = pneg %p63
        $region42: #{smlb_forward.1} parent=35 // pred_check_branch
          %300 = sbr.rel (%p298) target = $region44
        $region43: #{smlb_forward.1} parent=35 // pred_region
          %p301 = scmp.lt.s32.totalorder %s17, 1
          %s302 = scalar_select %p301, %s17, 1
          %s303 = scalar_lea.vmem %s1, %s302
        $region44: #{smlb_forward.1} parent=35 // pred_fallthru
          _
      $region36: #{smlb_forward.1} parent=5 // pred_fallthru
        _
      %p304 = scmp.le.s32.totalorder 1, %s17
      %p305 = scmp.lt.s32.totalorder %s17, 3
      %p306 = pnand %p304, %p305
      %p307 = pneg %p306
      // Predicated region
      $region45: #{smlb_forward.1} parent=5 // pred_check
        _
      $region46: #{smlb_forward.1} parent=5 // pred_check_branch
        %309 = sbr.rel (%p306) target = $region48
      $region47: #{smlb_forward.1} parent=5 // pred_region
        %s310 = ssub.s32 %s17, 1
        // Predicated region
        $region49: #{smlb_forward.1} parent=47 // pred_check
          %p311 = pneg %p111
        $region50: #{smlb_forward.1} parent=47 // pred_check_branch
          %313 = sbr.rel (%p311) target = $region52
        $region51: #{smlb_forward.1} parent=47 // pred_region
          %314 = dma.done [#allocation3], 12288
        $region52: #{smlb_forward.1} parent=47 // pred_fallthru
          _
        // Predicated region
        $region53: #{smlb_forward.1} parent=47 // pred_check
          %p315 = pneg %p153
        $region54: #{smlb_forward.1} parent=47 // pred_check_branch
          %317 = sbr.rel (%p315) target = $region56
        $region55: #{smlb_forward.1} parent=47 // pred_region
          %318 = dma.done [#allocation5], 4096
        $region56: #{smlb_forward.1} parent=47 // pred_fallthru
          _
        // Predicated region
        $region57: #{smlb_forward.1} parent=47 // pred_check
          %p319 = pneg %p174
        $region58: #{smlb_forward.1} parent=47 // pred_check_branch
          %321 = sbr.rel (%p319) target = $region60
        $region59: #{smlb_forward.1} parent=47 // pred_region
          %322 = dma.done [#allocation5], 4096
        $region60: #{smlb_forward.1} parent=47 // pred_fallthru
          _
        %p323 = scmp.lt.s32.totalorder %s22, 1
        %s324 = scalar_select %p323, %s22, 1
        %s325 = smul.addr %s324, 2
        %s326 = smul.addr %s325, 8
        %s327 = scalar_lea.vmem %s0, %s326
        %p328 = pneg %p43
        %p329 = pneg %p40
        %p330 = scmp.lt.s32.totalorder %s22, 1
        %s331 = scalar_select %p330, %s22, 1
        %s332 = scalar_lea.vmem %s1, %s331
        %p333 = pneg %p69
        %p334 = pneg %p66
        %p335 = pneg %p90
        %p336 = pneg %p87
        %p337 = pneg %p111
        %p338 = pneg %p108
        %p339 = pneg %p132
        %p340 = pneg %p129
        %p341 = pneg %p153
        %p342 = pneg %p150
        %p343 = pneg %p174
        %p344 = pneg %p171
        %p345 = pneg %p200
        %p346 = pneg %p197
        %p347 = scmp.lt.s32.totalorder %s22, 1
        %s348 = scalar_select %p347, %s22, 1
        %s349 = smul.addr %s348, 2
        %s350 = smul.addr %s349, 8
        %s351 = scalar_lea.vmem %s7, %s350
        %p352 = pneg %p226
        %p353 = pneg %p223
        %p354 = scmp.lt.s32.totalorder %s22, 1
        %s355 = scalar_select %p354, %s22, 1
        %s356 = smul.addr %s355, 8
        %s357 = scalar_lea.vmem %s8, %s356
        %p358 = scmp.lt.s32.totalorder %s22, 1
        %s359 = scalar_select %p358, %s22, 1
        %s360 = smul.addr %s359, 2
        %s361 = smul.addr %s360, 8
        %s362 = scalar_lea.vmem %s0, %s361
        %p363 = scmp.lt.s32.totalorder %s22, 1
        %s364 = scalar_select %p363, %s22, 1
        %s365 = scalar_lea.vmem %s1, %s364
        %p366 = scmp.lt.s32.totalorder %s22, 1
        %s367 = scalar_select %p366, %s22, 1
        %s368 = smul.addr %s367, 2
        %s369 = smul.addr %s368, 8
        %s370 = scalar_lea.vmem %s7, %s369
        %p371 = scmp.lt.s32.totalorder %s22, 1
        %s372 = scalar_select %p371, %s22, 1
        %s373 = smul.addr %s372, 8
        %s374 = scalar_lea.vmem %s8, %s373
        %v376 = vld [vmem:[%s365] sm:$0x1]
        %v377 = vld [vmem:[%s362] sm:$0xff]
        %v378 = vld [vmem:[%s362 + $0x8] sm:$0xff]
        %v379 = vpack.c.bf16 %v378, %v377
        %v380 = vld [vmem:[#allocation2] sm:$0xff]
        %v381 = vld [vmem:[#allocation2 + $0x8] sm:$0xf]
        %v382 = vld [vmem:[#allocation2 + $0xc] sm:$0xff]
        %v383 = vld [vmem:[#allocation2 + $0x14] sm:$0xf]
        %v384 = vld [vmem:[#allocation2 + $0x18] sm:$0xff]
        %v385 = vld [vmem:[#allocation2 + $0x20] sm:$0xf]
        %v386 = vld [vmem:[#allocation2 + $0x24] sm:$0xff]
        %v387 = vld [vmem:[#allocation2 + $0x2c] sm:$0xf]
        %v388 = vld [vmem:[#allocation2 + $0x30] sm:$0xff]
        %v389 = vld [vmem:[#allocation2 + $0x38] sm:$0xf]
        %v390 = vld [vmem:[#allocation2 + $0x3c] sm:$0xff]
        %v391 = vld [vmem:[#allocation2 + $0x44] sm:$0xf]
        %v392 = vld [vmem:[#allocation2 + $0x48] sm:$0xff]
        %v393 = vld [vmem:[#allocation2 + $0x50] sm:$0xf]
        %v394 = vld [vmem:[#allocation2 + $0x54] sm:$0xff]
        %v395 = vld [vmem:[#allocation2 + $0x5c] sm:$0xf]
        %v396 = vld [vmem:[#allocation2 + $0x60] sm:$0xff]
        %v397 = vld [vmem:[#allocation2 + $0x68] sm:$0xf]
        %v398 = vld [vmem:[#allocation2 + $0x6c] sm:$0xff]
        %v399 = vld [vmem:[#allocation2 + $0x74] sm:$0xf]
        %v400 = vld [vmem:[#allocation2 + $0x78] sm:$0xff]
        %v401 = vld [vmem:[#allocation2 + $0x80] sm:$0xf]
        %v402 = vld [vmem:[#allocation2 + $0x84] sm:$0xff]
        %v403 = vld [vmem:[#allocation2 + $0x8c] sm:$0xf]
        %v404 = vld [vmem:[#allocation2 + $0x90] sm:$0xff]
        %v405 = vld [vmem:[#allocation2 + $0x98] sm:$0xf]
        %v406 = vld [vmem:[#allocation2 + $0x9c] sm:$0xff]
        %v407 = vld [vmem:[#allocation2 + $0xa4] sm:$0xf]
        %v408 = vld [vmem:[#allocation2 + $0xa8] sm:$0xff]
        %v409 = vld [vmem:[#allocation2 + $0xb0] sm:$0xf]
        %v410 = vld [vmem:[#allocation2 + $0xb4] sm:$0xff]
        %v411 = vld [vmem:[#allocation2 + $0xbc] sm:$0xf]
        %v444 = vunpack.c.l.b16 %v380
        %v445 = vunpack.c.h.b16 %v380
        %v446 = vunpack.c.l.b16 %v381
        %v447 = vunpack.c.l.b16 %v382
        %v448 = vunpack.c.h.b16 %v382
        %v449 = vunpack.c.l.b16 %v383
        %v450 = vunpack.c.l.b16 %v384
        %v451 = vunpack.c.h.b16 %v384
        %v452 = vunpack.c.l.b16 %v385
        %v453 = vunpack.c.l.b16 %v386
        %v454 = vunpack.c.h.b16 %v386
        %v455 = vunpack.c.l.b16 %v387
        %v456 = vunpack.c.l.b16 %v388
        %v457 = vunpack.c.h.b16 %v388
        %v458 = vunpack.c.l.b16 %v389
        %v459 = vunpack.c.l.b16 %v390
        %v460 = vunpack.c.h.b16 %v390
        %v461 = vunpack.c.l.b16 %v391
        %v462 = vunpack.c.l.b16 %v392
        %v463 = vunpack.c.h.b16 %v392
        %v464 = vunpack.c.l.b16 %v393
        %v465 = vunpack.c.l.b16 %v394
        %v466 = vunpack.c.h.b16 %v394
        %v467 = vunpack.c.l.b16 %v395
        %v468 = vunpack.c.l.b16 %v396
        %v469 = vunpack.c.h.b16 %v396
        %v470 = vunpack.c.l.b16 %v397
        %v471 = vunpack.c.l.b16 %v398
        %v472 = vunpack.c.h.b16 %v398
        %v473 = vunpack.c.l.b16 %v399
        %v474 = vunpack.c.l.b16 %v400
        %v475 = vunpack.c.h.b16 %v400
        %v476 = vunpack.c.l.b16 %v401
        %v477 = vunpack.c.l.b16 %v402
        %v478 = vunpack.c.h.b16 %v402
        %v479 = vunpack.c.l.b16 %v403
        %v480 = vunpack.c.l.b16 %v404
        %v481 = vunpack.c.h.b16 %v404
        %v482 = vunpack.c.l.b16 %v405
        %v483 = vunpack.c.l.b16 %v406
        %v484 = vunpack.c.h.b16 %v406
        %v485 = vunpack.c.l.b16 %v407
        %v486 = vunpack.c.l.b16 %v408
        %v487 = vunpack.c.h.b16 %v408
        %v488 = vunpack.c.l.b16 %v409
        %v489 = vunpack.c.l.b16 %v410
        %v490 = vunpack.c.h.b16 %v410
        %v491 = vunpack.c.l.b16 %v411
        %v492 = vpack.c.b16 %v447, %v444
        %v493 = vpack.c.b16 %v448, %v445
        %v494 = vpack.c.b16 %v449, %v446
        %v495 = vpack.c.b16 %v453, %v450
        %v496 = vpack.c.b16 %v454, %v451
        %v497 = vpack.c.b16 %v455, %v452
        %v498 = vpack.c.b16 %v459, %v456
        %v499 = vpack.c.b16 %v460, %v457
        %v500 = vpack.c.b16 %v461, %v458
        %v501 = vpack.c.b16 %v465, %v462
        %v502 = vpack.c.b16 %v466, %v463
        %v503 = vpack.c.b16 %v467, %v464
        %v504 = vpack.c.b16 %v471, %v468
        %v505 = vpack.c.b16 %v472, %v469
        %v506 = vpack.c.b16 %v473, %v470
        %v507 = vpack.c.b16 %v477, %v474
        %v508 = vpack.c.b16 %v478, %v475
        %v509 = vpack.c.b16 %v479, %v476
        %v510 = vpack.c.b16 %v483, %v480
        %v511 = vpack.c.b16 %v484, %v481
        %v512 = vpack.c.b16 %v485, %v482
        %v513 = vpack.c.b16 %v489, %v486
        %v514 = vpack.c.b16 %v490, %v487
        %v515 = vpack.c.b16 %v491, %v488
        %540 = vmatprep.subr.bf16.mxu0 %v493
        %541 = vmatpush1.bf16.msra.mxu0 %v492
        %542 = vmatprep.subr.bf16.mxu0 %v496
        %543 = vmatpush1.bf16.msra.mxu0 %v495
        %544 = vmatprep.subr.bf16.mxu0 %v499
        %545 = vmatpush1.bf16.msra.mxu0 %v498
        %546 = vmatprep.subr.bf16.mxu0 %v502
        %547 = vmatpush1.bf16.msra.mxu0 %v501
        %548 = vmatprep.subr.bf16.mxu0 %v505
        %549 = vmatpush1.bf16.msra.mxu0 %v504
        %550 = vmatprep.subr.bf16.mxu0 %v508
        %551 = vmatpush1.bf16.msra.mxu0 %v507
        %552 = vmatprep.subr.bf16.mxu0 %v511
        %553 = vmatpush1.bf16.msra.mxu0 %v510
        %554 = vmatprep.subr.bf16.mxu0 %v514
        %555 = vmatpush1.bf16.msra.mxu0 %v513
        %556 = vmatprep.subr.bf16.mxu0 0
        %557 = vmatpush1.bf16.msra.mxu0 0
        %558 = vmatprep.subr.bf16.mxu0 0
        %559 = vmatpush1.bf16.msra.mxu0 0
        %560 = vmatprep.subr.bf16.mxu0 0
        %561 = vmatpush1.bf16.msra.mxu0 0
        %562 = vmatprep.subr.bf16.mxu0 0
        %563 = vmatpush1.bf16.msra.mxu0 0
        %564 = vmatprep.subr.bf16.mxu0 0
        %565 = vmatpush1.bf16.msra.mxu0 0
        %566 = vmatprep.subr.bf16.mxu0 0
        %567 = vmatpush1.bf16.msra.mxu0 0
        %568 = vmatprep.subr.bf16.mxu0 0
        %569 = vmatpush1.bf16.msra.mxu0 0
        %570 = vmatprep.subr.bf16.mxu0 0
        %571 = vmatpush1.bf16.msra.mxu0 0
        %572 = vmatprep.mubr.bf16.mxu0 0
        %573 = vmatmul.mubr.bf16.gmra.mrb[0].mxu0 %v379
        %v574 = vpop.f32.mrb[0].mxu0
        %v575 = vadd.f32 0.0, %v574
        %v576 = vpop.f32.mrb[0].mxu0
        %v577 = vadd.f32 0.0, %v576
        %v578 = vpop.f32.mrb[0].mxu0
        %v579 = vadd.f32 0.0, %v578
        %v580 = vpop.f32.mrb[0].mxu0
        %v581 = vadd.f32 0.0, %v580
        %582 = vdwg.mxu0
        %583 = vmatprep.subr.bf16.mxu0 0
        %584 = vmatpush1.bf16.msra.mxu0 %v494
        %585 = vmatprep.subr.bf16.mxu0 0
        %586 = vmatpush1.bf16.msra.mxu0 %v497
        %587 = vmatprep.subr.bf16.mxu0 0
        %588 = vmatpush1.bf16.msra.mxu0 %v500
        %589 = vmatprep.subr.bf16.mxu0 0
        %590 = vmatpush1.bf16.msra.mxu0 %v503
        %591 = vmatprep.subr.bf16.mxu0 0
        %592 = vmatpush1.bf16.msra.mxu0 %v506
        %593 = vmatprep.subr.bf16.mxu0 0
        %594 = vmatpush1.bf16.msra.mxu0 %v509
        %595 = vmatprep.subr.bf16.mxu0 0
        %596 = vmatpush1.bf16.msra.mxu0 %v512
        %597 = vmatprep.subr.bf16.mxu0 0
        %598 = vmatpush1.bf16.msra.mxu0 %v515
        %599 = vmatprep.subr.bf16.mxu0 0
        %600 = vmatpush1.bf16.msra.mxu0 0
        %601 = vmatprep.subr.bf16.mxu0 0
        %602 = vmatpush1.bf16.msra.mxu0 0
        %603 = vmatprep.subr.bf16.mxu0 0
        %604 = vmatpush1.bf16.msra.mxu0 0
        %605 = vmatprep.subr.bf16.mxu0 0
        %606 = vmatpush1.bf16.msra.mxu0 0
        %607 = vmatprep.subr.bf16.mxu0 0
        %608 = vmatpush1.bf16.msra.mxu0 0
        %609 = vmatprep.subr.bf16.mxu0 0
        %610 = vmatpush1.bf16.msra.mxu0 0
        %611 = vmatprep.subr.bf16.mxu0 0
        %612 = vmatpush1.bf16.msra.mxu0 0
        %613 = vmatprep.subr.bf16.mxu0 0
        %614 = vmatpush1.bf16.msra.mxu0 0
        %615 = vmatprep.mubr.bf16.mxu0 0
        %616 = vmatmul.mubr.bf16.gmra.mrb[0].mxu0 %v379
        %v617 = vpop.f32.mrb[0].mxu0
        %v618 = vadd.f32 0.0, %v617
        %v619 = vpop.f32.mrb[0].mxu0
        %v620 = vpop.f32.mrb[0].mxu0
        %v621 = vadd.f32 0.0, %v620
        %v622 = vpop.f32.mrb[0].mxu0
        %623 = vdwg.mxu0
        %v624 = vpack.c.bf16 %v579, %v575
        %v625 = vpack.c.bf16 %v581, %v577
        %v627 = vlaneseq
        %v628 = vshrl.u32 %v627, 7
        %v629 = vsub.s32 0, %v628
        %v630 = vrot.slane %v376, %v629
        %632 = vmatprep.subr.bf16.mxu0 0
        %633 = vmatpush1.bf16.xpose.msra.mxu0 %v625
        %634 = vmatprep.subr.bf16.mxu0 0
        %635 = vmatpush1.bf16.xpose.msra.mxu0 0
        %636 = vmatprep.subr.bf16.mxu0 0
        %637 = vmatpush1.bf16.xpose.msra.mxu0 0
        %638 = vmatprep.subr.bf16.mxu0 0
        %639 = vmatpush1.bf16.xpose.msra.mxu0 0
        %640 = vmatprep.subr.bf16.mxu0 0
        %641 = vmatpush1.bf16.xpose.msra.mxu0 0
        %642 = vmatprep.subr.bf16.mxu0 0
        %643 = vmatpush1.bf16.xpose.msra.mxu0 0
        %644 = vmatprep.subr.bf16.mxu0 0
        %645 = vmatpush1.bf16.xpose.msra.mxu0 0
        %646 = vmatprep.subr.bf16.mxu0 0
        %647 = vmatpush1.bf16.xpose.msra.mxu0 0
        %648 = vmatprep.subr.bf16.mxu0 0
        %649 = vmatpush1.bf16.xpose.msra.mxu0 0
        %650 = vmatprep.subr.bf16.mxu0 0
        %651 = vmatpush1.bf16.xpose.msra.mxu0 0
        %652 = vmatprep.subr.bf16.mxu0 0
        %653 = vmatpush1.bf16.xpose.msra.mxu0 0
        %654 = vmatprep.subr.bf16.mxu0 0
        %655 = vmatpush1.bf16.xpose.msra.mxu0 0
        %656 = vmatprep.subr.bf16.mxu0 0
        %657 = vmatpush1.bf16.xpose.msra.mxu0 0
        %658 = vmatprep.subr.bf16.mxu0 0
        %659 = vmatpush1.bf16.xpose.msra.mxu0 0
        %660 = vmatprep.subr.bf16.mxu0 0
        %661 = vmatpush1.bf16.xpose.msra.mxu0 0
        %662 = vmatprep.subr.bf16.mxu0 0
        %663 = vmatpush1.bf16.xpose.msra.mxu0 0
        %664 = vmatprep.mubr.bf16.mxu0 0
        %665 = vmatmul.mubr.bf16.gmra.mrb[0].mxu0 %v624
        %v666 = vpop.f32.mrb[0].mxu0
        %v667 = vadd.f32 %v630, %v666
        %v668 = vpop.f32.mrb[0].mxu0
        %v669 = vpop.f32.mrb[0].mxu0
        %v670 = vadd.f32 %v630, %v669
        %v671 = vpop.f32.mrb[0].mxu0
        %672 = vdwg.mxu0
        %vm673 = vcmask 130048
        %v674 = vsel %vm673, %v667, -inf
        %675 = vmax.xlane.f32.xlu0 %v674
        %v676 = vpop.xlane.xlu0 %675
        %v677 = vsel %vm673, %v670, -inf
        %678 = vmax.xlane.f32.xlu0 %v677
        %v679 = vpop.xlane.xlu0 %678
        %v680 = vsub.f32 %v667, %v676
        %v681 = vsub.f32 %v670, %v679
        %v682 = vmul.f32 %v680, 1.442695
        %v683 = vpow.pop %v682
        %v684 = vmul.f32 %v681, 1.442695
        %v685 = vpow.pop %v684
        %v686 = vsel %vm673, %v683, 0.0
        %687 = vadd.xlane.f32.xlu0 %v686
        %v688 = vpop.xlane.xlu0 %687
        %v689 = vsel %vm673, %v685, 0.0
        %690 = vadd.xlane.f32.xlu0 %v689
        %v691 = vpop.xlane.xlu0 %690
        %v692 = vrcp.pop %v688
        %v693 = vmul.f32 %v683, %v692
        %v694 = vrcp.pop %v691
        %v695 = vmul.f32 %v685, %v694
        %v696 = vpack.c.bf16 %v695, %v693
        %v697 = vpack.c.bf16 %v621, %v618
        %v699 = vsel %vm673, %v696, 0
        %701 = vmatprep.subr.bf16.mxu0 0
        %702 = vmatpush1.bf16.msra.mxu0 %v697
        %703 = vmatprep.subr.bf16.mxu0 0
        %704 = vmatpush1.bf16.msra.mxu0 0
        %705 = vmatprep.subr.bf16.mxu0 0
        %706 = vmatpush1.bf16.msra.mxu0 0
        %707 = vmatprep.subr.bf16.mxu0 0
        %708 = vmatpush1.bf16.msra.mxu0 0
        %709 = vmatprep.subr.bf16.mxu0 0
        %710 = vmatpush1.bf16.msra.mxu0 0
        %711 = vmatprep.subr.bf16.mxu0 0
        %712 = vmatpush1.bf16.msra.mxu0 0
        %713 = vmatprep.subr.bf16.mxu0 0
        %714 = vmatpush1.bf16.msra.mxu0 0
        %715 = vmatprep.subr.bf16.mxu0 0
        %716 = vmatpush1.bf16.msra.mxu0 0
        %717 = vmatprep.subr.bf16.mxu0 0
        %718 = vmatpush1.bf16.msra.mxu0 0
        %719 = vmatprep.subr.bf16.mxu0 0
        %720 = vmatpush1.bf16.msra.mxu0 0
        %721 = vmatprep.subr.bf16.mxu0 0
        %722 = vmatpush1.bf16.msra.mxu0 0
        %723 = vmatprep.subr.bf16.mxu0 0
        %724 = vmatpush1.bf16.msra.mxu0 0
        %725 = vmatprep.subr.bf16.mxu0 0
        %726 = vmatpush1.bf16.msra.mxu0 0
        %727 = vmatprep.subr.bf16.mxu0 0
        %728 = vmatpush1.bf16.msra.mxu0 0
        %729 = vmatprep.subr.bf16.mxu0 0
        %730 = vmatpush1.bf16.msra.mxu0 0
        %731 = vmatprep.subr.bf16.mxu0 0
        %732 = vmatpush1.bf16.msra.mxu0 0
        %733 = vmatprep.mubr.bf16.mxu0 0
        %734 = vmatmul.mubr.bf16.gmra.mrb[0].mxu0 %v699
        %v735 = vpop.f32.mrb[0].mxu0
        %v736 = vadd.f32 0.0, %v735
        %v737 = vpop.f32.mrb[0].mxu0
        %v738 = vpop.f32.mrb[0].mxu0
        %v739 = vadd.f32 0.0, %v738
        %v740 = vpop.f32.mrb[0].mxu0
        %741 = vdwg.mxu0
        %v742 = vpack.c.bf16 %v739, %v736
        %v743 = vld [vmem:[%s4] sm:$0xf]
        %v744 = vld [vmem:[%s4 + $0x4] sm:$0xf]
        %v745 = vld [vmem:[%s4 + $0x8] sm:$0xf]
        %v746 = vld [vmem:[%s4 + $0xc] sm:$0xf]
        %v747 = vld [vmem:[%s4 + $0x10] sm:$0xf]
        %v748 = vld [vmem:[%s4 + $0x14] sm:$0xf]
        %v749 = vld [vmem:[%s4 + $0x18] sm:$0xf]
        %v750 = vld [vmem:[%s4 + $0x1c] sm:$0xf]
        %v751 = vld [vmem:[%s4 + $0x20] sm:$0xf]
        %v752 = vld [vmem:[%s4 + $0x24] sm:$0xf]
        %v753 = vld [vmem:[%s4 + $0x28] sm:$0xf]
        %v754 = vld [vmem:[%s4 + $0x2c] sm:$0xf]
        %v755 = vld [vmem:[%s4 + $0x30] sm:$0xf]
        %v756 = vld [vmem:[%s4 + $0x34] sm:$0xf]
        %v757 = vld [vmem:[%s4 + $0x38] sm:$0xf]
        %v758 = vld [vmem:[%s4 + $0x3c] sm:$0xf]
        %v775 = vunpack.c.l.b16 %v743
        %v776 = vunpack.c.l.b16 %v744
        %v777 = vunpack.c.l.b16 %v745
        %v778 = vunpack.c.l.b16 %v746
        %v779 = vunpack.c.l.b16 %v747
        %v780 = vunpack.c.l.b16 %v748
        %v781 = vunpack.c.l.b16 %v749
        %v782 = vunpack.c.l.b16 %v750
        %v783 = vunpack.c.l.b16 %v751
        %v784 = vunpack.c.l.b16 %v752
        %v785 = vunpack.c.l.b16 %v753
        %v786 = vunpack.c.l.b16 %v754
        %v787 = vunpack.c.l.b16 %v755
        %v788 = vunpack.c.l.b16 %v756
        %v789 = vunpack.c.l.b16 %v757
        %v790 = vunpack.c.l.b16 %v758
        %v791 = vpack.c.b16 %v776, %v775
        %v792 = vpack.c.b16 %v778, %v777
        %v793 = vpack.c.b16 %v780, %v779
        %v794 = vpack.c.b16 %v782, %v781
        %v795 = vpack.c.b16 %v784, %v783
        %v796 = vpack.c.b16 %v786, %v785
        %v797 = vpack.c.b16 %v788, %v787
        %v798 = vpack.c.b16 %v790, %v789
        %807 = vmatprep.subr.bf16.mxu0 0
        %808 = vmatpush1.bf16.msra.mxu0 %v791
        %809 = vmatprep.subr.bf16.mxu0 0
        %810 = vmatpush1.bf16.msra.mxu0 %v792
        %811 = vmatprep.subr.bf16.mxu0 0
        %812 = vmatpush1.bf16.msra.mxu0 %v793
        %813 = vmatprep.subr.bf16.mxu0 0
        %814 = vmatpush1.bf16.msra.mxu0 %v794
        %815 = vmatprep.subr.bf16.mxu0 0
        %816 = vmatpush1.bf16.msra.mxu0 %v795
        %817 = vmatprep.subr.bf16.mxu0 0
        %818 = vmatpush1.bf16.msra.mxu0 %v796
        %819 = vmatprep.subr.bf16.mxu0 0
        %820 = vmatpush1.bf16.msra.mxu0 %v797
        %821 = vmatprep.subr.bf16.mxu0 0
        %822 = vmatpush1.bf16.msra.mxu0 %v798
        %823 = vmatprep.subr.bf16.mxu0 0
        %824 = vmatpush1.bf16.msra.mxu0 0
        %825 = vmatprep.subr.bf16.mxu0 0
        %826 = vmatpush1.bf16.msra.mxu0 0
        %827 = vmatprep.subr.bf16.mxu0 0
        %828 = vmatpush1.bf16.msra.mxu0 0
        %829 = vmatprep.subr.bf16.mxu0 0
        %830 = vmatpush1.bf16.msra.mxu0 0
        %831 = vmatprep.subr.bf16.mxu0 0
        %832 = vmatpush1.bf16.msra.mxu0 0
        %833 = vmatprep.subr.bf16.mxu0 0
        %834 = vmatpush1.bf16.msra.mxu0 0
        %835 = vmatprep.subr.bf16.mxu0 0
        %836 = vmatpush1.bf16.msra.mxu0 0
        %837 = vmatprep.subr.bf16.mxu0 0
        %838 = vmatpush1.bf16.msra.mxu0 0
        %839 = vmatprep.mubr.bf16.mxu0 0
        %840 = vmatmul.mubr.bf16.gmra.mrb[0].mxu0 %v742
        %v841 = vpop.f32.mrb[0].mxu0
        %v842 = vadd.f32 0.0, %v841
        %v843 = vpop.f32.mrb[0].mxu0
        %v844 = vpop.f32.mrb[0].mxu0
        %v845 = vadd.f32 0.0, %v844
        %v846 = vpop.f32.mrb[0].mxu0
        %847 = vdwg.mxu0
        %v848 = vadd.f32 %v377, %v842
        %v849 = vadd.f32 %v378, %v845
        %v850 = vpack.c.bf16 %v849, %v848
        %v851 = vld [vmem:[#allocation4] sm:$0xf]
        %v852 = vld [vmem:[#allocation4 + $0x4] sm:$0xf]
        %v853 = vld [vmem:[#allocation4 + $0x8] sm:$0xf]
        %v854 = vld [vmem:[#allocation4 + $0xc] sm:$0xf]
        %v855 = vld [vmem:[#allocation4 + $0x10] sm:$0xf]
        %v856 = vld [vmem:[#allocation4 + $0x14] sm:$0xf]
        %v857 = vld [vmem:[#allocation4 + $0x18] sm:$0xf]
        %v858 = vld [vmem:[#allocation4 + $0x1c] sm:$0xf]
        %v859 = vld [vmem:[#allocation4 + $0x20] sm:$0xf]
        %v860 = vld [vmem:[#allocation4 + $0x24] sm:$0xf]
        %v861 = vld [vmem:[#allocation4 + $0x28] sm:$0xf]
        %v862 = vld [vmem:[#allocation4 + $0x2c] sm:$0xf]
        %v863 = vld [vmem:[#allocation4 + $0x30] sm:$0xf]
        %v864 = vld [vmem:[#allocation4 + $0x34] sm:$0xf]
        %v865 = vld [vmem:[#allocation4 + $0x38] sm:$0xf]
        %v866 = vld [vmem:[#allocation4 + $0x3c] sm:$0xf]
        %v883 = vunpack.c.l.b16 %v851
        %v884 = vunpack.c.l.b16 %v852
        %v885 = vunpack.c.l.b16 %v853
        %v886 = vunpack.c.l.b16 %v854
        %v887 = vunpack.c.l.b16 %v855
        %v888 = vunpack.c.l.b16 %v856
        %v889 = vunpack.c.l.b16 %v857
        %v890 = vunpack.c.l.b16 %v858
        %v891 = vunpack.c.l.b16 %v859
        %v892 = vunpack.c.l.b16 %v860
        %v893 = vunpack.c.l.b16 %v861
        %v894 = vunpack.c.l.b16 %v862
        %v895 = vunpack.c.l.b16 %v863
        %v896 = vunpack.c.l.b16 %v864
        %v897 = vunpack.c.l.b16 %v865
        %v898 = vunpack.c.l.b16 %v866
        %v899 = vpack.c.b16 %v884, %v883
        %v900 = vpack.c.b16 %v886, %v885
        %v901 = vpack.c.b16 %v888, %v887
        %v902 = vpack.c.b16 %v890, %v889
        %v903 = vpack.c.b16 %v892, %v891
        %v904 = vpack.c.b16 %v894, %v893
        %v905 = vpack.c.b16 %v896, %v895
        %v906 = vpack.c.b16 %v898, %v897
        %915 = vmatprep.subr.bf16.mxu0 0
        %916 = vmatpush1.bf16.msra.mxu0 %v899
        %917 = vmatprep.subr.bf16.mxu0 0
        %918 = vmatpush1.bf16.msra.mxu0 %v900
        %919 = vmatprep.subr.bf16.mxu0 0
        %920 = vmatpush1.bf16.msra.mxu0 %v901
        %921 = vmatprep.subr.bf16.mxu0 0
        %922 = vmatpush1.bf16.msra.mxu0 %v902
        %923 = vmatprep.subr.bf16.mxu0 0
        %924 = vmatpush1.bf16.msra.mxu0 %v903
        %925 = vmatprep.subr.bf16.mxu0 0
        %926 = vmatpush1.bf16.msra.mxu0 %v904
        %927 = vmatprep.subr.bf16.mxu0 0
        %928 = vmatpush1.bf16.msra.mxu0 %v905
        %929 = vmatprep.subr.bf16.mxu0 0
        %930 = vmatpush1.bf16.msra.mxu0 %v906
        %931 = vmatprep.subr.bf16.mxu0 0
        %932 = vmatpush1.bf16.msra.mxu0 0
        %933 = vmatprep.subr.bf16.mxu0 0
        %934 = vmatpush1.bf16.msra.mxu0 0
        %935 = vmatprep.subr.bf16.mxu0 0
        %936 = vmatpush1.bf16.msra.mxu0 0
        %937 = vmatprep.subr.bf16.mxu0 0
        %938 = vmatpush1.bf16.msra.mxu0 0
        %939 = vmatprep.subr.bf16.mxu0 0
        %940 = vmatpush1.bf16.msra.mxu0 0
        %941 = vmatprep.subr.bf16.mxu0 0
        %942 = vmatpush1.bf16.msra.mxu0 0
        %943 = vmatprep.subr.bf16.mxu0 0
        %944 = vmatpush1.bf16.msra.mxu0 0
        %945 = vmatprep.subr.bf16.mxu0 0
        %946 = vmatpush1.bf16.msra.mxu0 0
        %947 = vmatprep.mubr.bf16.mxu0 0
        %948 = vmatmul.mubr.bf16.gmra.mrb[0].mxu0 %v850
        %v949 = vpop.f32.mrb[0].mxu0
        %v950 = vadd.f32 0.0, %v949
        %v951 = vpop.f32.mrb[0].mxu0
        %v952 = vpop.f32.mrb[0].mxu0
        %v953 = vadd.f32 0.0, %v952
        %v954 = vpop.f32.mrb[0].mxu0
        %955 = vdwg.mxu0
        %v956 = vmax.f32 %v950, 0.0
        %v957 = vmax.f32 %v953, 0.0
        %v958 = vpack.c.bf16 %v957, %v956
        %v959 = vld [vmem:[#allocation6] sm:$0xf]
        %v960 = vld [vmem:[#allocation6 + $0x4] sm:$0xf]
        %v961 = vld [vmem:[#allocation6 + $0x8] sm:$0xf]
        %v962 = vld [vmem:[#allocation6 + $0xc] sm:$0xf]
        %v963 = vld [vmem:[#allocation6 + $0x10] sm:$0xf]
        %v964 = vld [vmem:[#allocation6 + $0x14] sm:$0xf]
        %v965 = vld [vmem:[#allocation6 + $0x18] sm:$0xf]
        %v966 = vld [vmem:[#allocation6 + $0x1c] sm:$0xf]
        %v967 = vld [vmem:[#allocation6 + $0x20] sm:$0xf]
        %v968 = vld [vmem:[#allocation6 + $0x24] sm:$0xf]
        %v969 = vld [vmem:[#allocation6 + $0x28] sm:$0xf]
        %v970 = vld [vmem:[#allocation6 + $0x2c] sm:$0xf]
        %v971 = vld [vmem:[#allocation6 + $0x30] sm:$0xf]
        %v972 = vld [vmem:[#allocation6 + $0x34] sm:$0xf]
        %v973 = vld [vmem:[#allocation6 + $0x38] sm:$0xf]
        %v974 = vld [vmem:[#allocation6 + $0x3c] sm:$0xf]
        %v991 = vunpack.c.l.b16 %v959
        %v992 = vunpack.c.l.b16 %v960
        %v993 = vunpack.c.l.b16 %v961
        %v994 = vunpack.c.l.b16 %v962
        %v995 = vunpack.c.l.b16 %v963
        %v996 = vunpack.c.l.b16 %v964
        %v997 = vunpack.c.l.b16 %v965
        %v998 = vunpack.c.l.b16 %v966
        %v999 = vunpack.c.l.b16 %v967
        %v1000 = vunpack.c.l.b16 %v968
        %v1001 = vunpack.c.l.b16 %v969
        %v1002 = vunpack.c.l.b16 %v970
        %v1003 = vunpack.c.l.b16 %v971
        %v1004 = vunpack.c.l.b16 %v972
        %v1005 = vunpack.c.l.b16 %v973
        %v1006 = vunpack.c.l.b16 %v974
        %v1007 = vpack.c.b16 %v992, %v991
        %v1008 = vpack.c.b16 %v994, %v993
        %v1009 = vpack.c.b16 %v996, %v995
        %v1010 = vpack.c.b16 %v998, %v997
        %v1011 = vpack.c.b16 %v1000, %v999
        %v1012 = vpack.c.b16 %v1002, %v1001
        %v1013 = vpack.c.b16 %v1004, %v1003
        %v1014 = vpack.c.b16 %v1006, %v1005
        %1023 = vmatprep.subr.bf16.mxu0 0
        %1024 = vmatpush1.bf16.msra.mxu0 %v1007
        %1025 = vmatprep.subr.bf16.mxu0 0
        %1026 = vmatpush1.bf16.msra.mxu0 %v1008
        %1027 = vmatprep.subr.bf16.mxu0 0
        %1028 = vmatpush1.bf16.msra.mxu0 %v1009
        %1029 = vmatprep.subr.bf16.mxu0 0
        %1030 = vmatpush1.bf16.msra.mxu0 %v1010
        %1031 = vmatprep.subr.bf16.mxu0 0
        %1032 = vmatpush1.bf16.msra.mxu0 %v1011
        %1033 = vmatprep.subr.bf16.mxu0 0
        %1034 = vmatpush1.bf16.msra.mxu0 %v1012
        %1035 = vmatprep.subr.bf16.mxu0 0
        %1036 = vmatpush1.bf16.msra.mxu0 %v1013
        %1037 = vmatprep.subr.bf16.mxu0 0
        %1038 = vmatpush1.bf16.msra.mxu0 %v1014
        %1039 = vmatprep.subr.bf16.mxu0 0
        %1040 = vmatpush1.bf16.msra.mxu0 0
        %1041 = vmatprep.subr.bf16.mxu0 0
        %1042 = vmatpush1.bf16.msra.mxu0 0
        %1043 = vmatprep.subr.bf16.mxu0 0
        %1044 = vmatpush1.bf16.msra.mxu0 0
        %1045 = vmatprep.subr.bf16.mxu0 0
        %1046 = vmatpush1.bf16.msra.mxu0 0
        %1047 = vmatprep.subr.bf16.mxu0 0
        %1048 = vmatpush1.bf16.msra.mxu0 0
        %1049 = vmatprep.subr.bf16.mxu0 0
        %1050 = vmatpush1.bf16.msra.mxu0 0
        %1051 = vmatprep.subr.bf16.mxu0 0
        %1052 = vmatpush1.bf16.msra.mxu0 0
        %1053 = vmatprep.subr.bf16.mxu0 0
        %1054 = vmatpush1.bf16.msra.mxu0 0
        %1055 = vmatprep.mubr.bf16.mxu0 0
        %1056 = vmatmul.mubr.bf16.gmra.mrb[0].mxu0 %v958
        %v1057 = vpop.f32.mrb[0].mxu0
        %v1058 = vadd.f32 0.0, %v1057
        %v1059 = vpop.f32.mrb[0].mxu0
        %v1060 = vpop.f32.mrb[0].mxu0
        %v1061 = vadd.f32 0.0, %v1060
        %v1062 = vpop.f32.mrb[0].mxu0
        %1063 = vdwg.mxu0
        %v1064 = vadd.f32 %v848, %v1058
        %v1065 = vadd.f32 %v849, %v1061
        %v1066 = vld [vmem:[%s2] sm:$0x1]
        %v1068 = vlaneseq
        %v1069 = vshrl.u32 %v1068, 7
        %v1070 = vsub.s32 0, %v1069
        %v1071 = vrot.slane %v1066, %v1070
        %v1073 = vmul.f32 %v1071, %v1064
        %v1074 = vadd.f32 %v1073, 0.0
        %v1075 = vpack.c.bf16 %v1065, %v1064
        %s1076 = scalar_lea.vmem [#allocation2], 192
        %v1077 = vld [vmem:[%s1076] sm:$0xff]
        %v1078 = vld [vmem:[%s1076 + $0x8] sm:$0xf]
        %v1079 = vld [vmem:[%s1076 + $0xc] sm:$0xff]
        %v1080 = vld [vmem:[%s1076 + $0x14] sm:$0xf]
        %v1081 = vld [vmem:[%s1076 + $0x18] sm:$0xff]
        %v1082 = vld [vmem:[%s1076 + $0x20] sm:$0xf]
        %v1083 = vld [vmem:[%s1076 + $0x24] sm:$0xff]
        %v1084 = vld [vmem:[%s1076 + $0x2c] sm:$0xf]
        %v1085 = vld [vmem:[%s1076 + $0x30] sm:$0xff]
        %v1086 = vld [vmem:[%s1076 + $0x38] sm:$0xf]
        %v1087 = vld [vmem:[%s1076 + $0x3c] sm:$0xff]
        %v1088 = vld [vmem:[%s1076 + $0x44] sm:$0xf]
        %v1089 = vld [vmem:[%s1076 + $0x48] sm:$0xff]
        %v1090 = vld [vmem:[%s1076 + $0x50] sm:$0xf]
        %v1091 = vld [vmem:[%s1076 + $0x54] sm:$0xff]
        %v1092 = vld [vmem:[%s1076 + $0x5c] sm:$0xf]
        %v1093 = vld [vmem:[%s1076 + $0x60] sm:$0xff]
        %v1094 = vld [vmem:[%s1076 + $0x68] sm:$0xf]
        %v1095 = vld [vmem:[%s1076 + $0x6c] sm:$0xff]
        %v1096 = vld [vmem:[%s1076 + $0x74] sm:$0xf]
        %v1097 = vld [vmem:[%s1076 + $0x78] sm:$0xff]
        %v1098 = vld [vmem:[%s1076 + $0x80] sm:$0xf]
        %v1099 = vld [vmem:[%s1076 + $0x84] sm:$0xff]
        %v1100 = vld [vmem:[%s1076 + $0x8c] sm:$0xf]
        %v1101 = vld [vmem:[%s1076 + $0x90] sm:$0xff]
        %v1102 = vld [vmem:[%s1076 + $0x98] sm:$0xf]
        %v1103 = vld [vmem:[%s1076 + $0x9c] sm:$0xff]
        %v1104 = vld [vmem:[%s1076 + $0xa4] sm:$0xf]
        %v1105 = vld [vmem:[%s1076 + $0xa8] sm:$0xff]
        %v1106 = vld [vmem:[%s1076 + $0xb0] sm:$0xf]
        %v1107 = vld [vmem:[%s1076 + $0xb4] sm:$0xff]
        %v1108 = vld [vmem:[%s1076 + $0xbc] sm:$0xf]
        %v1141 = vunpack.c.l.b16 %v1077
        %v1142 = vunpack.c.h.b16 %v1077
        %v1143 = vunpack.c.l.b16 %v1078
        %v1144 = vunpack.c.l.b16 %v1079
        %v1145 = vunpack.c.h.b16 %v1079
        %v1146 = vunpack.c.l.b16 %v1080
        %v1147 = vunpack.c.l.b16 %v1081
        %v1148 = vunpack.c.h.b16 %v1081
        %v1149 = vunpack.c.l.b16 %v1082
        %v1150 = vunpack.c.l.b16 %v1083
        %v1151 = vunpack.c.h.b16 %v1083
        %v1152 = vunpack.c.l.b16 %v1084
        %v1153 = vunpack.c.l.b16 %v1085
        %v1154 = vunpack.c.h.b16 %v1085
        %v1155 = vunpack.c.l.b16 %v1086
        %v1156 = vunpack.c.l.b16 %v1087
        %v1157 = vunpack.c.h.b16 %v1087
        %v1158 = vunpack.c.l.b16 %v1088
        %v1159 = vunpack.c.l.b16 %v1089
        %v1160 = vunpack.c.h.b16 %v1089
        %v1161 = vunpack.c.l.b16 %v1090
        %v1162 = vunpack.c.l.b16 %v1091
        %v1163 = vunpack.c.h.b16 %v1091
        %v1164 = vunpack.c.l.b16 %v1092
        %v1165 = vunpack.c.l.b16 %v1093
        %v1166 = vunpack.c.h.b16 %v1093
        %v1167 = vunpack.c.l.b16 %v1094
        %v1168 = vunpack.c.l.b16 %v1095
        %v1169 = vunpack.c.h.b16 %v1095
        %v1170 = vunpack.c.l.b16 %v1096
        %v1171 = vunpack.c.l.b16 %v1097
        %v1172 = vunpack.c.h.b16 %v1097
        %v1173 = vunpack.c.l.b16 %v1098
        %v1174 = vunpack.c.l.b16 %v1099
        %v1175 = vunpack.c.h.b16 %v1099
        %v1176 = vunpack.c.l.b16 %v1100
        %v1177 = vunpack.c.l.b16 %v1101
        %v1178 = vunpack.c.h.b16 %v1101
        %v1179 = vunpack.c.l.b16 %v1102
        %v1180 = vunpack.c.l.b16 %v1103
        %v1181 = vunpack.c.h.b16 %v1103
        %v1182 = vunpack.c.l.b16 %v1104
        %v1183 = vunpack.c.l.b16 %v1105
        %v1184 = vunpack.c.h.b16 %v1105
        %v1185 = vunpack.c.l.b16 %v1106
        %v1186 = vunpack.c.l.b16 %v1107
        %v1187 = vunpack.c.h.b16 %v1107
        %v1188 = vunpack.c.l.b16 %v1108
        %v1189 = vpack.c.b16 %v1144, %v1141
        %v1190 = vpack.c.b16 %v1145, %v1142
        %v1191 = vpack.c.b16 %v1146, %v1143
        %v1192 = vpack.c.b16 %v1150, %v1147
        %v1193 = vpack.c.b16 %v1151, %v1148
        %v1194 = vpack.c.b16 %v1152, %v1149
        %v1195 = vpack.c.b16 %v1156, %v1153
        %v1196 = vpack.c.b16 %v1157, %v1154
        %v1197 = vpack.c.b16 %v1158, %v1155
        %v1198 = vpack.c.b16 %v1162, %v1159
        %v1199 = vpack.c.b16 %v1163, %v1160
        %v1200 = vpack.c.b16 %v1164, %v1161
        %v1201 = vpack.c.b16 %v1168, %v1165
        %v1202 = vpack.c.b16 %v1169, %v1166
        %v1203 = vpack.c.b16 %v1170, %v1167
        %v1204 = vpack.c.b16 %v1174, %v1171
        %v1205 = vpack.c.b16 %v1175, %v1172
        %v1206 = vpack.c.b16 %v1176, %v1173
        %v1207 = vpack.c.b16 %v1180, %v1177
        %v1208 = vpack.c.b16 %v1181, %v1178
        %v1209 = vpack.c.b16 %v1182, %v1179
        %v1210 = vpack.c.b16 %v1186, %v1183
        %v1211 = vpack.c.b16 %v1187, %v1184
        %v1212 = vpack.c.b16 %v1188, %v1185
        %1237 = vmatprep.subr.bf16.mxu0 %v1190
        %1238 = vmatpush1.bf16.msra.mxu0 %v1189
        %1239 = vmatprep.subr.bf16.mxu0 %v1193
        %1240 = vmatpush1.bf16.msra.mxu0 %v1192
        %1241 = vmatprep.subr.bf16.mxu0 %v1196
        %1242 = vmatpush1.bf16.msra.mxu0 %v1195
        %1243 = vmatprep.subr.bf16.mxu0 %v1199
        %1244 = vmatpush1.bf16.msra.mxu0 %v1198
        %1245 = vmatprep.subr.bf16.mxu0 %v1202
        %1246 = vmatpush1.bf16.msra.mxu0 %v1201
        %1247 = vmatprep.subr.bf16.mxu0 %v1205
        %1248 = vmatpush1.bf16.msra.mxu0 %v1204
        %1249 = vmatprep.subr.bf16.mxu0 %v1208
        %1250 = vmatpush1.bf16.msra.mxu0 %v1207
        %1251 = vmatprep.subr.bf16.mxu0 %v1211
        %1252 = vmatpush1.bf16.msra.mxu0 %v1210
        %1253 = vmatprep.subr.bf16.mxu0 0
        %1254 = vmatpush1.bf16.msra.mxu0 0
        %1255 = vmatprep.subr.bf16.mxu0 0
        %1256 = vmatpush1.bf16.msra.mxu0 0
        %1257 = vmatprep.subr.bf16.mxu0 0
        %1258 = vmatpush1.bf16.msra.mxu0 0
        %1259 = vmatprep.subr.bf16.mxu0 0
        %1260 = vmatpush1.bf16.msra.mxu0 0
        %1261 = vmatprep.subr.bf16.mxu0 0
        %1262 = vmatpush1.bf16.msra.mxu0 0
        %1263 = vmatprep.subr.bf16.mxu0 0
        %1264 = vmatpush1.bf16.msra.mxu0 0
        %1265 = vmatprep.subr.bf16.mxu0 0
        %1266 = vmatpush1.bf16.msra.mxu0 0
        %1267 = vmatprep.subr.bf16.mxu0 0
        %1268 = vmatpush1.bf16.msra.mxu0 0
        %1269 = vmatprep.mubr.bf16.mxu0 0
        %1270 = vmatmul.mubr.bf16.gmra.mrb[0].mxu0 %v1075
        %v1271 = vpop.f32.mrb[0].mxu0
        %v1272 = vadd.f32 0.0, %v1271
        %v1273 = vpop.f32.mrb[0].mxu0
        %v1274 = vadd.f32 0.0, %v1273
        %v1275 = vpop.f32.mrb[0].mxu0
        %v1276 = vadd.f32 0.0, %v1275
        %v1277 = vpop.f32.mrb[0].mxu0
        %v1278 = vadd.f32 0.0, %v1277
        %1279 = vdwg.mxu0
        %1280 = vmatprep.subr.bf16.mxu0 0
        %1281 = vmatpush1.bf16.msra.mxu0 %v1191
        %1282 = vmatprep.subr.bf16.mxu0 0
        %1283 = vmatpush1.bf16.msra.mxu0 %v1194
        %1284 = vmatprep.subr.bf16.mxu0 0
        %1285 = vmatpush1.bf16.msra.mxu0 %v1197
        %1286 = vmatprep.subr.bf16.mxu0 0
        %1287 = vmatpush1.bf16.msra.mxu0 %v1200
        %1288 = vmatprep.subr.bf16.mxu0 0
        %1289 = vmatpush1.bf16.msra.mxu0 %v1203
        %1290 = vmatprep.subr.bf16.mxu0 0
        %1291 = vmatpush1.bf16.msra.mxu0 %v1206
        %1292 = vmatprep.subr.bf16.mxu0 0
        %1293 = vmatpush1.bf16.msra.mxu0 %v1209
        %1294 = vmatprep.subr.bf16.mxu0 0
        %1295 = vmatpush1.bf16.msra.mxu0 %v1212
        %1296 = vmatprep.subr.bf16.mxu0 0
        %1297 = vmatpush1.bf16.msra.mxu0 0
        %1298 = vmatprep.subr.bf16.mxu0 0
        %1299 = vmatpush1.bf16.msra.mxu0 0
        %1300 = vmatprep.subr.bf16.mxu0 0
        %1301 = vmatpush1.bf16.msra.mxu0 0
        %1302 = vmatprep.subr.bf16.mxu0 0
        %1303 = vmatpush1.bf16.msra.mxu0 0
        %1304 = vmatprep.subr.bf16.mxu0 0
        %1305 = vmatpush1.bf16.msra.mxu0 0
        %1306 = vmatprep.subr.bf16.mxu0 0
        %1307 = vmatpush1.bf16.msra.mxu0 0
        %1308 = vmatprep.subr.bf16.mxu0 0
        %1309 = vmatpush1.bf16.msra.mxu0 0
        %1310 = vmatprep.subr.bf16.mxu0 0
        %1311 = vmatpush1.bf16.msra.mxu0 0
        %1312 = vmatprep.mubr.bf16.mxu0 0
        %1313 = vmatmul.mubr.bf16.gmra.mrb[0].mxu0 %v1075
        %v1314 = vpop.f32.mrb[0].mxu0
        %v1315 = vadd.f32 0.0, %v1314
        %v1316 = vpop.f32.mrb[0].mxu0
        %v1317 = vpop.f32.mrb[0].mxu0
        %v1318 = vadd.f32 0.0, %v1317
        %v1319 = vpop.f32.mrb[0].mxu0
        %1320 = vdwg.mxu0
        %v1321 = vpack.c.bf16 %v1276, %v1272
        %v1322 = vpack.c.bf16 %v1278, %v1274
        %1323 = vmatprep.subr.bf16.mxu0 0
        %1324 = vmatpush1.bf16.xpose.msra.mxu0 %v1322
        %1325 = vmatprep.subr.bf16.mxu0 0
        %1326 = vmatpush1.bf16.xpose.msra.mxu0 0
        %1327 = vmatprep.subr.bf16.mxu0 0
        %1328 = vmatpush1.bf16.xpose.msra.mxu0 0
        %1329 = vmatprep.subr.bf16.mxu0 0
        %1330 = vmatpush1.bf16.xpose.msra.mxu0 0
        %1331 = vmatprep.subr.bf16.mxu0 0
        %1332 = vmatpush1.bf16.xpose.msra.mxu0 0
        %1333 = vmatprep.subr.bf16.mxu0 0
        %1334 = vmatpush1.bf16.xpose.msra.mxu0 0
        %1335 = vmatprep.subr.bf16.mxu0 0
        %1336 = vmatpush1.bf16.xpose.msra.mxu0 0
        %1337 = vmatprep.subr.bf16.mxu0 0
        %1338 = vmatpush1.bf16.xpose.msra.mxu0 0
        %1339 = vmatprep.subr.bf16.mxu0 0
        %1340 = vmatpush1.bf16.xpose.msra.mxu0 0
        %1341 = vmatprep.subr.bf16.mxu0 0
        %1342 = vmatpush1.bf16.xpose.msra.mxu0 0
        %1343 = vmatprep.subr.bf16.mxu0 0
        %1344 = vmatpush1.bf16.xpose.msra.mxu0 0
        %1345 = vmatprep.subr.bf16.mxu0 0
        %1346 = vmatpush1.bf16.xpose.msra.mxu0 0
        %1347 = vmatprep.subr.bf16.mxu0 0
        %1348 = vmatpush1.bf16.xpose.msra.mxu0 0
        %1349 = vmatprep.subr.bf16.mxu0 0
        %1350 = vmatpush1.bf16.xpose.msra.mxu0 0
        %1351 = vmatprep.subr.bf16.mxu0 0
        %1352 = vmatpush1.bf16.xpose.msra.mxu0 0
        %1353 = vmatprep.subr.bf16.mxu0 0
        %1354 = vmatpush1.bf16.xpose.msra.mxu0 0
        %1355 = vmatprep.mubr.bf16.mxu0 0
        %1356 = vmatmul.mubr.bf16.gmra.mrb[0].mxu0 %v1321
        %v1357 = vpop.f32.mrb[0].mxu0
        %v1358 = vadd.f32 %v630, %v1357
        %v1359 = vpop.f32.mrb[0].mxu0
        %v1360 = vpop.f32.mrb[0].mxu0
        %v1361 = vadd.f32 %v630, %v1360
        %v1362 = vpop.f32.mrb[0].mxu0
        %1363 = vdwg.mxu0
        %v1364 = vsel %vm673, %v1358, -inf
        %1365 = vmax.xlane.f32.xlu0 %v1364
        %v1366 = vpop.xlane.xlu0 %1365
        %v1367 = vsel %vm673, %v1361, -inf
        %1368 = vmax.xlane.f32.xlu0 %v1367
        %v1369 = vpop.xlane.xlu0 %1368
        %v1370 = vsub.f32 %v1358, %v1366
        %v1371 = vsub.f32 %v1361, %v1369
        %v1372 = vmul.f32 %v1370, 1.442695
        %v1373 = vpow.pop %v1372
        %v1374 = vmul.f32 %v1371, 1.442695
        %v1375 = vpow.pop %v1374
        %v1376 = vsel %vm673, %v1373, 0.0
        %1377 = vadd.xlane.f32.xlu0 %v1376
        %v1378 = vpop.xlane.xlu0 %1377
        %v1379 = vsel %vm673, %v1375, 0.0
        %1380 = vadd.xlane.f32.xlu0 %v1379
        %v1381 = vpop.xlane.xlu0 %1380
        %v1382 = vrcp.pop %v1378
        %v1383 = vmul.f32 %v1373, %v1382
        %v1384 = vrcp.pop %v1381
        %v1385 = vmul.f32 %v1375, %v1384
        %v1386 = vpack.c.bf16 %v1385, %v1383
        %v1387 = vpack.c.bf16 %v1318, %v1315
        %v1389 = vsel %vm673, %v1386, 0
        %1391 = vmatprep.subr.bf16.mxu0 0
        %1392 = vmatpush1.bf16.msra.mxu0 %v1387
        %1393 = vmatprep.subr.bf16.mxu0 0
        %1394 = vmatpush1.bf16.msra.mxu0 0
        %1395 = vmatprep.subr.bf16.mxu0 0
        %1396 = vmatpush1.bf16.msra.mxu0 0
        %1397 = vmatprep.subr.bf16.mxu0 0
        %1398 = vmatpush1.bf16.msra.mxu0 0
        %1399 = vmatprep.subr.bf16.mxu0 0
        %1400 = vmatpush1.bf16.msra.mxu0 0
        %1401 = vmatprep.subr.bf16.mxu0 0
        %1402 = vmatpush1.bf16.msra.mxu0 0
        %1403 = vmatprep.subr.bf16.mxu0 0
        %1404 = vmatpush1.bf16.msra.mxu0 0
        %1405 = vmatprep.subr.bf16.mxu0 0
        %1406 = vmatpush1.bf16.msra.mxu0 0
        %1407 = vmatprep.subr.bf16.mxu0 0
        %1408 = vmatpush1.bf16.msra.mxu0 0
        %1409 = vmatprep.subr.bf16.mxu0 0
        %1410 = vmatpush1.bf16.msra.mxu0 0
        %1411 = vmatprep.subr.bf16.mxu0 0
        %1412 = vmatpush1.bf16.msra.mxu0 0
        %1413 = vmatprep.subr.bf16.mxu0 0
        %1414 = vmatpush1.bf16.msra.mxu0 0
        %1415 = vmatprep.subr.bf16.mxu0 0
        %1416 = vmatpush1.bf16.msra.mxu0 0
        %1417 = vmatprep.subr.bf16.mxu0 0
        %1418 = vmatpush1.bf16.msra.mxu0 0
        %1419 = vmatprep.subr.bf16.mxu0 0
        %1420 = vmatpush1.bf16.msra.mxu0 0
        %1421 = vmatprep.subr.bf16.mxu0 0
        %1422 = vmatpush1.bf16.msra.mxu0 0
        %1423 = vmatprep.mubr.bf16.mxu0 0
        %1424 = vmatmul.mubr.bf16.gmra.mrb[0].mxu0 %v1389
        %v1425 = vpop.f32.mrb[0].mxu0
        %v1426 = vadd.f32 0.0, %v1425
        %v1427 = vpop.f32.mrb[0].mxu0
        %v1428 = vpop.f32.mrb[0].mxu0
        %v1429 = vadd.f32 0.0, %v1428
        %v1430 = vpop.f32.mrb[0].mxu0
        %1431 = vdwg.mxu0
        %v1432 = vpack.c.bf16 %v1429, %v1426
        %s1433 = scalar_lea.vmem %s4, 64
        %v1434 = vld [vmem:[%s1433] sm:$0xf]
        %v1435 = vld [vmem:[%s1433 + $0x4] sm:$0xf]
        %v1436 = vld [vmem:[%s1433 + $0x8] sm:$0xf]
        %v1437 = vld [vmem:[%s1433 + $0xc] sm:$0xf]
        %v1438 = vld [vmem:[%s1433 + $0x10] sm:$0xf]
        %v1439 = vld [vmem:[%s1433 + $0x14] sm:$0xf]
        %v1440 = vld [vmem:[%s1433 + $0x18] sm:$0xf]
        %v1441 = vld [vmem:[%s1433 + $0x1c] sm:$0xf]
        %v1442 = vld [vmem:[%s1433 + $0x20] sm:$0xf]
        %v1443 = vld [vmem:[%s1433 + $0x24] sm:$0xf]
        %v1444 = vld [vmem:[%s1433 + $0x28] sm:$0xf]
        %v1445 = vld [vmem:[%s1433 + $0x2c] sm:$0xf]
        %v1446 = vld [vmem:[%s1433 + $0x30] sm:$0xf]
        %v1447 = vld [vmem:[%s1433 + $0x34] sm:$0xf]
        %v1448 = vld [vmem:[%s1433 + $0x38] sm:$0xf]
        %v1449 = vld [vmem:[%s1433 + $0x3c] sm:$0xf]
        %v1466 = vunpack.c.l.b16 %v1434
        %v1467 = vunpack.c.l.b16 %v1435
        %v1468 = vunpack.c.l.b16 %v1436
        %v1469 = vunpack.c.l.b16 %v1437
        %v1470 = vunpack.c.l.b16 %v1438
        %v1471 = vunpack.c.l.b16 %v1439
        %v1472 = vunpack.c.l.b16 %v1440
        %v1473 = vunpack.c.l.b16 %v1441
        %v1474 = vunpack.c.l.b16 %v1442
        %v1475 = vunpack.c.l.b16 %v1443
        %v1476 = vunpack.c.l.b16 %v1444
        %v1477 = vunpack.c.l.b16 %v1445
        %v1478 = vunpack.c.l.b16 %v1446
        %v1479 = vunpack.c.l.b16 %v1447
        %v1480 = vunpack.c.l.b16 %v1448
        %v1481 = vunpack.c.l.b16 %v1449
        %v1482 = vpack.c.b16 %v1467, %v1466
        %v1483 = vpack.c.b16 %v1469, %v1468
        %v1484 = vpack.c.b16 %v1471, %v1470
        %v1485 = vpack.c.b16 %v1473, %v1472
        %v1486 = vpack.c.b16 %v1475, %v1474
        %v1487 = vpack.c.b16 %v1477, %v1476
        %v1488 = vpack.c.b16 %v1479, %v1478
        %v1489 = vpack.c.b16 %v1481, %v1480
        %1498 = vmatprep.subr.bf16.mxu0 0
        %1499 = vmatpush1.bf16.msra.mxu0 %v1482
        %1500 = vmatprep.subr.bf16.mxu0 0
        %1501 = vmatpush1.bf16.msra.mxu0 %v1483
        %1502 = vmatprep.subr.bf16.mxu0 0
        %1503 = vmatpush1.bf16.msra.mxu0 %v1484
        %1504 = vmatprep.subr.bf16.mxu0 0
        %1505 = vmatpush1.bf16.msra.mxu0 %v1485
        %1506 = vmatprep.subr.bf16.mxu0 0
        %1507 = vmatpush1.bf16.msra.mxu0 %v1486
        %1508 = vmatprep.subr.bf16.mxu0 0
        %1509 = vmatpush1.bf16.msra.mxu0 %v1487
        %1510 = vmatprep.subr.bf16.mxu0 0
        %1511 = vmatpush1.bf16.msra.mxu0 %v1488
        %1512 = vmatprep.subr.bf16.mxu0 0
        %1513 = vmatpush1.bf16.msra.mxu0 %v1489
        %1514 = vmatprep.subr.bf16.mxu0 0
        %1515 = vmatpush1.bf16.msra.mxu0 0
        %1516 = vmatprep.subr.bf16.mxu0 0
        %1517 = vmatpush1.bf16.msra.mxu0 0
        %1518 = vmatprep.subr.bf16.mxu0 0
        %1519 = vmatpush1.bf16.msra.mxu0 0
        %1520 = vmatprep.subr.bf16.mxu0 0
        %1521 = vmatpush1.bf16.msra.mxu0 0
        %1522 = vmatprep.subr.bf16.mxu0 0
        %1523 = vmatpush1.bf16.msra.mxu0 0
        %1524 = vmatprep.subr.bf16.mxu0 0
        %1525 = vmatpush1.bf16.msra.mxu0 0
        %1526 = vmatprep.subr.bf16.mxu0 0
        %1527 = vmatpush1.bf16.msra.mxu0 0
        %1528 = vmatprep.subr.bf16.mxu0 0
        %1529 = vmatpush1.bf16.msra.mxu0 0
        %1530 = vmatprep.mubr.bf16.mxu0 0
        %1531 = vmatmul.mubr.bf16.gmra.mrb[0].mxu0 %v1432
        %v1532 = vpop.f32.mrb[0].mxu0
        %v1533 = vadd.f32 0.0, %v1532
        %v1534 = vpop.f32.mrb[0].mxu0
        %v1535 = vpop.f32.mrb[0].mxu0
        %v1536 = vadd.f32 0.0, %v1535
        %v1537 = vpop.f32.mrb[0].mxu0
        %1538 = vdwg.mxu0
        %v1539 = vadd.f32 %v1064, %v1533
        %v1540 = vadd.f32 %v1065, %v1536
        %v1541 = vpack.c.bf16 %v1540, %v1539
        %s1542 = scalar_lea.vmem [#allocation4], 64
        %v1543 = vld [vmem:[%s1542] sm:$0xf]
        %v1544 = vld [vmem:[%s1542 + $0x4] sm:$0xf]
        %v1545 = vld [vmem:[%s1542 + $0x8] sm:$0xf]
        %v1546 = vld [vmem:[%s1542 + $0xc] sm:$0xf]
        %v1547 = vld [vmem:[%s1542 + $0x10] sm:$0xf]
        %v1548 = vld [vmem:[%s1542 + $0x14] sm:$0xf]
        %v1549 = vld [vmem:[%s1542 + $0x18] sm:$0xf]
        %v1550 = vld [vmem:[%s1542 + $0x1c] sm:$0xf]
        %v1551 = vld [vmem:[%s1542 + $0x20] sm:$0xf]
        %v1552 = vld [vmem:[%s1542 + $0x24] sm:$0xf]
        %v1553 = vld [vmem:[%s1542 + $0x28] sm:$0xf]
        %v1554 = vld [vmem:[%s1542 + $0x2c] sm:$0xf]
        %v1555 = vld [vmem:[%s1542 + $0x30] sm:$0xf]
        %v1556 = vld [vmem:[%s1542 + $0x34] sm:$0xf]
        %v1557 = vld [vmem:[%s1542 + $0x38] sm:$0xf]
        %v1558 = vld [vmem:[%s1542 + $0x3c] sm:$0xf]
        %v1575 = vunpack.c.l.b16 %v1543
        %v1576 = vunpack.c.l.b16 %v1544
        %v1577 = vunpack.c.l.b16 %v1545
        %v1578 = vunpack.c.l.b16 %v1546
        %v1579 = vunpack.c.l.b16 %v1547
        %v1580 = vunpack.c.l.b16 %v1548
        %v1581 = vunpack.c.l.b16 %v1549
        %v1582 = vunpack.c.l.b16 %v1550
        %v1583 = vunpack.c.l.b16 %v1551
        %v1584 = vunpack.c.l.b16 %v1552
        %v1585 = vunpack.c.l.b16 %v1553
        %v1586 = vunpack.c.l.b16 %v1554
        %v1587 = vunpack.c.l.b16 %v1555
        %v1588 = vunpack.c.l.b16 %v1556
        %v1589 = vunpack.c.l.b16 %v1557
        %v1590 = vunpack.c.l.b16 %v1558
        %v1591 = vpack.c.b16 %v1576, %v1575
        %v1592 = vpack.c.b16 %v1578, %v1577
        %v1593 = vpack.c.b16 %v1580, %v1579
        %v1594 = vpack.c.b16 %v1582, %v1581
        %v1595 = vpack.c.b16 %v1584, %v1583
        %v1596 = vpack.c.b16 %v1586, %v1585
        %v1597 = vpack.c.b16 %v1588, %v1587
        %v1598 = vpack.c.b16 %v1590, %v1589
        %1607 = vmatprep.subr.bf16.mxu0 0
        %1608 = vmatpush1.bf16.msra.mxu0 %v1591
        %1609 = vmatprep.subr.bf16.mxu0 0
        %1610 = vmatpush1.bf16.msra.mxu0 %v1592
        %1611 = vmatprep.subr.bf16.mxu0 0
        %1612 = vmatpush1.bf16.msra.mxu0 %v1593
        %1613 = vmatprep.subr.bf16.mxu0 0
        %1614 = vmatpush1.bf16.msra.mxu0 %v1594
        %1615 = vmatprep.subr.bf16.mxu0 0
        %1616 = vmatpush1.bf16.msra.mxu0 %v1595
        %1617 = vmatprep.subr.bf16.mxu0 0
        %1618 = vmatpush1.bf16.msra.mxu0 %v1596
        %1619 = vmatprep.subr.bf16.mxu0 0
        %1620 = vmatpush1.bf16.msra.mxu0 %v1597
        %1621 = vmatprep.subr.bf16.mxu0 0
        %1622 = vmatpush1.bf16.msra.mxu0 %v1598
        %1623 = vmatprep.subr.bf16.mxu0 0
        %1624 = vmatpush1.bf16.msra.mxu0 0
        %1625 = vmatprep.subr.bf16.mxu0 0
        %1626 = vmatpush1.bf16.msra.mxu0 0
        %1627 = vmatprep.subr.bf16.mxu0 0
        %1628 = vmatpush1.bf16.msra.mxu0 0
        %1629 = vmatprep.subr.bf16.mxu0 0
        %1630 = vmatpush1.bf16.msra.mxu0 0
        %1631 = vmatprep.subr.bf16.mxu0 0
        %1632 = vmatpush1.bf16.msra.mxu0 0
        %1633 = vmatprep.subr.bf16.mxu0 0
        %1634 = vmatpush1.bf16.msra.mxu0 0
        %1635 = vmatprep.subr.bf16.mxu0 0
        %1636 = vmatpush1.bf16.msra.mxu0 0
        %1637 = vmatprep.subr.bf16.mxu0 0
        %1638 = vmatpush1.bf16.msra.mxu0 0
        %1639 = vmatprep.mubr.bf16.mxu0 0
        %1640 = vmatmul.mubr.bf16.gmra.mrb[0].mxu0 %v1541
        %v1641 = vpop.f32.mrb[0].mxu0
        %v1642 = vadd.f32 0.0, %v1641
        %v1643 = vpop.f32.mrb[0].mxu0
        %v1644 = vpop.f32.mrb[0].mxu0
        %v1645 = vadd.f32 0.0, %v1644
        %v1646 = vpop.f32.mrb[0].mxu0
        %1647 = vdwg.mxu0
        %v1648 = vmax.f32 %v1642, 0.0
        %v1649 = vmax.f32 %v1645, 0.0
        %v1650 = vpack.c.bf16 %v1649, %v1648
        %s1651 = scalar_lea.vmem [#allocation6], 64
        %v1652 = vld [vmem:[%s1651] sm:$0xf]
        %v1653 = vld [vmem:[%s1651 + $0x4] sm:$0xf]
        %v1654 = vld [vmem:[%s1651 + $0x8] sm:$0xf]
        %v1655 = vld [vmem:[%s1651 + $0xc] sm:$0xf]
        %v1656 = vld [vmem:[%s1651 + $0x10] sm:$0xf]
        %v1657 = vld [vmem:[%s1651 + $0x14] sm:$0xf]
        %v1658 = vld [vmem:[%s1651 + $0x18] sm:$0xf]
        %v1659 = vld [vmem:[%s1651 + $0x1c] sm:$0xf]
        %v1660 = vld [vmem:[%s1651 + $0x20] sm:$0xf]
        %v1661 = vld [vmem:[%s1651 + $0x24] sm:$0xf]
        %v1662 = vld [vmem:[%s1651 + $0x28] sm:$0xf]
        %v1663 = vld [vmem:[%s1651 + $0x2c] sm:$0xf]
        %v1664 = vld [vmem:[%s1651 + $0x30] sm:$0xf]
        %v1665 = vld [vmem:[%s1651 + $0x34] sm:$0xf]
        %v1666 = vld [vmem:[%s1651 + $0x38] sm:$0xf]
        %v1667 = vld [vmem:[%s1651 + $0x3c] sm:$0xf]
        %v1684 = vunpack.c.l.b16 %v1652
        %v1685 = vunpack.c.l.b16 %v1653
        %v1686 = vunpack.c.l.b16 %v1654
        %v1687 = vunpack.c.l.b16 %v1655
        %v1688 = vunpack.c.l.b16 %v1656
        %v1689 = vunpack.c.l.b16 %v1657
        %v1690 = vunpack.c.l.b16 %v1658
        %v1691 = vunpack.c.l.b16 %v1659
        %v1692 = vunpack.c.l.b16 %v1660
        %v1693 = vunpack.c.l.b16 %v1661
        %v1694 = vunpack.c.l.b16 %v1662
        %v1695 = vunpack.c.l.b16 %v1663
        %v1696 = vunpack.c.l.b16 %v1664
        %v1697 = vunpack.c.l.b16 %v1665
        %v1698 = vunpack.c.l.b16 %v1666
        %v1699 = vunpack.c.l.b16 %v1667
        %v1700 = vpack.c.b16 %v1685, %v1684
        %v1701 = vpack.c.b16 %v1687, %v1686
        %v1702 = vpack.c.b16 %v1689, %v1688
        %v1703 = vpack.c.b16 %v1691, %v1690
        %v1704 = vpack.c.b16 %v1693, %v1692
        %v1705 = vpack.c.b16 %v1695, %v1694
        %v1706 = vpack.c.b16 %v1697, %v1696
        %v1707 = vpack.c.b16 %v1699, %v1698
        %1716 = vmatprep.subr.bf16.mxu0 0
        %1717 = vmatpush1.bf16.msra.mxu0 %v1700
        %1718 = vmatprep.subr.bf16.mxu0 0
        %1719 = vmatpush1.bf16.msra.mxu0 %v1701
        %1720 = vmatprep.subr.bf16.mxu0 0
        %1721 = vmatpush1.bf16.msra.mxu0 %v1702
        %1722 = vmatprep.subr.bf16.mxu0 0
        %1723 = vmatpush1.bf16.msra.mxu0 %v1703
        %1724 = vmatprep.subr.bf16.mxu0 0
        %1725 = vmatpush1.bf16.msra.mxu0 %v1704
        %1726 = vmatprep.subr.bf16.mxu0 0
        %1727 = vmatpush1.bf16.msra.mxu0 %v1705
        %1728 = vmatprep.subr.bf16.mxu0 0
        %1729 = vmatpush1.bf16.msra.mxu0 %v1706
        %1730 = vmatprep.subr.bf16.mxu0 0
        %1731 = vmatpush1.bf16.msra.mxu0 %v1707
        %1732 = vmatprep.subr.bf16.mxu0 0
        %1733 = vmatpush1.bf16.msra.mxu0 0
        %1734 = vmatprep.subr.bf16.mxu0 0
        %1735 = vmatpush1.bf16.msra.mxu0 0
        %1736 = vmatprep.subr.bf16.mxu0 0
        %1737 = vmatpush1.bf16.msra.mxu0 0
        %1738 = vmatprep.subr.bf16.mxu0 0
        %1739 = vmatpush1.bf16.msra.mxu0 0
        %1740 = vmatprep.subr.bf16.mxu0 0
        %1741 = vmatpush1.bf16.msra.mxu0 0
        %1742 = vmatprep.subr.bf16.mxu0 0
        %1743 = vmatpush1.bf16.msra.mxu0 0
        %1744 = vmatprep.subr.bf16.mxu0 0
        %1745 = vmatpush1.bf16.msra.mxu0 0
        %1746 = vmatprep.subr.bf16.mxu0 0
        %1747 = vmatpush1.bf16.msra.mxu0 0
        %1748 = vmatprep.mubr.bf16.mxu0 0
        %1749 = vmatmul.mubr.bf16.gmra.mrb[0].mxu0 %v1650
        %v1750 = vpop.f32.mrb[0].mxu0
        %v1751 = vadd.f32 0.0, %v1750
        %v1752 = vpop.f32.mrb[0].mxu0
        %v1753 = vpop.f32.mrb[0].mxu0
        %v1754 = vadd.f32 0.0, %v1753
        %v1755 = vpop.f32.mrb[0].mxu0
        %1756 = vdwg.mxu0
        %v1757 = vadd.f32 %v1539, %v1751
        %v1758 = vadd.f32 %v1540, %v1754
        %s1759 = scalar_lea.vmem %s2, 1
        %v1760 = vld [vmem:[%s1759] sm:$0x1]
        %v1762 = vlaneseq
        %v1763 = vshrl.u32 %v1762, 7
        %v1764 = vsub.s32 0, %v1763
        %v1765 = vrot.slane %v1760, %v1764
        %v1767 = vmul.f32 %v1765, %v1757
        %v1768 = vadd.f32 %v1074, %v1767
        %v1769 = vpack.c.bf16 %v1758, %v1757
        %s1770 = scalar_lea.vmem [#allocation2], 384
        %v1771 = vld [vmem:[%s1770] sm:$0xff]
        %v1772 = vld [vmem:[%s1770 + $0x8] sm:$0xf]
        %v1773 = vld [vmem:[%s1770 + $0xc] sm:$0xff]
        %v1774 = vld [vmem:[%s1770 + $0x14] sm:$0xf]
        %v1775 = vld [vmem:[%s1770 + $0x18] sm:$0xff]
        %v1776 = vld [vmem:[%s1770 + $0x20] sm:$0xf]
        %v1777 = vld [vmem:[%s1770 + $0x24] sm:$0xff]
        %v1778 = vld [vmem:[%s1770 + $0x2c] sm:$0xf]
        %v1779 = vld [vmem:[%s1770 + $0x30] sm:$0xff]
        %v1780 = vld [vmem:[%s1770 + $0x38] sm:$0xf]
        %v1781 = vld [vmem:[%s1770 + $0x3c] sm:$0xff]
        %v1782 = vld [vmem:[%s1770 + $0x44] sm:$0xf]
        %v1783 = vld [vmem:[%s1770 + $0x48] sm:$0xff]
        %v1784 = vld [vmem:[%s1770 + $0x50] sm:$0xf]
        %v1785 = vld [vmem:[%s1770 + $0x54] sm:$0xff]
        %v1786 = vld [vmem:[%s1770 + $0x5c] sm:$0xf]
        %v1787 = vld [vmem:[%s1770 + $0x60] sm:$0xff]
        %v1788 = vld [vmem:[%s1770 + $0x68] sm:$0xf]
        %v1789 = vld [vmem:[%s1770 + $0x6c] sm:$0xff]
        %v1790 = vld [vmem:[%s1770 + $0x74] sm:$0xf]
        %v1791 = vld [vmem:[%s1770 + $0x78] sm:$0xff]
        %v1792 = vld [vmem:[%s1770 + $0x80] sm:$0xf]
        %v1793 = vld [vmem:[%s1770 + $0x84] sm:$0xff]
        %v1794 = vld [vmem:[%s1770 + $0x8c] sm:$0xf]
        %v1795 = vld [vmem:[%s1770 + $0x90] sm:$0xff]
        %v1796 = vld [vmem:[%s1770 + $0x98] sm:$0xf]
        %v1797 = vld [vmem:[%s1770 + $0x9c] sm:$0xff]
        %v1798 = vld [vmem:[%s1770 + $0xa4] sm:$0xf]
        %v1799 = vld [vmem:[%s1770 + $0xa8] sm:$0xff]
        %v1800 = vld [vmem:[%s1770 + $0xb0] sm:$0xf]
        %v1801 = vld [vmem:[%s1770 + $0xb4] sm:$0xff]
        %v1802 = vld [vmem:[%s1770 + $0xbc] sm:$0xf]
        %v1835 = vunpack.c.l.b16 %v1771
        %v1836 = vunpack.c.h.b16 %v1771
        %v1837 = vunpack.c.l.b16 %v1772
        %v1838 = vunpack.c.l.b16 %v1773
        %v1839 = vunpack.c.h.b16 %v1773
        %v1840 = vunpack.c.l.b16 %v1774
        %v1841 = vunpack.c.l.b16 %v1775
        %v1842 = vunpack.c.h.b16 %v1775
        %v1843 = vunpack.c.l.b16 %v1776
        %v1844 = vunpack.c.l.b16 %v1777
        %v1845 = vunpack.c.h.b16 %v1777
        %v1846 = vunpack.c.l.b16 %v1778
        %v1847 = vunpack.c.l.b16 %v1779
        %v1848 = vunpack.c.h.b16 %v1779
        %v1849 = vunpack.c.l.b16 %v1780
        %v1850 = vunpack.c.l.b16 %v1781
        %v1851 = vunpack.c.h.b16 %v1781
        %v1852 = vunpack.c.l.b16 %v1782
        %v1853 = vunpack.c.l.b16 %v1783
        %v1854 = vunpack.c.h.b16 %v1783
        %v1855 = vunpack.c.l.b16 %v1784
        %v1856 = vunpack.c.l.b16 %v1785
        %v1857 = vunpack.c.h.b16 %v1785
        %v1858 = vunpack.c.l.b16 %v1786
        %v1859 = vunpack.c.l.b16 %v1787
        %v1860 = vunpack.c.h.b16 %v1787
        %v1861 = vunpack.c.l.b16 %v1788
        %v1862 = vunpack.c.l.b16 %v1789
        %v1863 = vunpack.c.h.b16 %v1789
        %v1864 = vunpack.c.l.b16 %v1790
        %v1865 = vunpack.c.l.b16 %v1791
        %v1866 = vunpack.c.h.b16 %v1791
        %v1867 = vunpack.c.l.b16 %v1792
        %v1868 = vunpack.c.l.b16 %v1793
        %v1869 = vunpack.c.h.b16 %v1793
        %v1870 = vunpack.c.l.b16 %v1794
        %v1871 = vunpack.c.l.b16 %v1795
        %v1872 = vunpack.c.h.b16 %v1795
        %v1873 = vunpack.c.l.b16 %v1796
        %v1874 = vunpack.c.l.b16 %v1797
        %v1875 = vunpack.c.h.b16 %v1797
        %v1876 = vunpack.c.l.b16 %v1798
        %v1877 = vunpack.c.l.b16 %v1799
        %v1878 = vunpack.c.h.b16 %v1799
        %v1879 = vunpack.c.l.b16 %v1800
        %v1880 = vunpack.c.l.b16 %v1801
        %v1881 = vunpack.c.h.b16 %v1801
        %v1882 = vunpack.c.l.b16 %v1802
        %v1883 = vpack.c.b16 %v1838, %v1835
        %v1884 = vpack.c.b16 %v1839, %v1836
        %v1885 = vpack.c.b16 %v1840, %v1837
        %v1886 = vpack.c.b16 %v1844, %v1841
        %v1887 = vpack.c.b16 %v1845, %v1842
        %v1888 = vpack.c.b16 %v1846, %v1843
        %v1889 = vpack.c.b16 %v1850, %v1847
        %v1890 = vpack.c.b16 %v1851, %v1848
        %v1891 = vpack.c.b16 %v1852, %v1849
        %v1892 = vpack.c.b16 %v1856, %v1853
        %v1893 = vpack.c.b16 %v1857, %v1854
        %v1894 = vpack.c.b16 %v1858, %v1855
        %v1895 = vpack.c.b16 %v1862, %v1859
        %v1896 = vpack.c.b16 %v1863, %v1860
        %v1897 = vpack.c.b16 %v1864, %v1861
        %v1898 = vpack.c.b16 %v1868, %v1865
        %v1899 = vpack.c.b16 %v1869, %v1866
        %v1900 = vpack.c.b16 %v1870, %v1867
        %v1901 = vpack.c.b16 %v1874, %v1871
        %v1902 = vpack.c.b16 %v1875, %v1872
        %v1903 = vpack.c.b16 %v1876, %v1873
        %v1904 = vpack.c.b16 %v1880, %v1877
        %v1905 = vpack.c.b16 %v1881, %v1878
        %v1906 = vpack.c.b16 %v1882, %v1879
        %1931 = vmatprep.subr.bf16.mxu0 %v1884
        %1932 = vmatpush1.bf16.msra.mxu0 %v1883
        %1933 = vmatprep.subr.bf16.mxu0 %v1887
        %1934 = vmatpush1.bf16.msra.mxu0 %v1886
        %1935 = vmatprep.subr.bf16.mxu0 %v1890
        %1936 = vmatpush1.bf16.msra.mxu0 %v1889
        %1937 = vmatprep.subr.bf16.mxu0 %v1893
        %1938 = vmatpush1.bf16.msra.mxu0 %v1892
        %1939 = vmatprep.subr.bf16.mxu0 %v1896
        %1940 = vmatpush1.bf16.msra.mxu0 %v1895
        %1941 = vmatprep.subr.bf16.mxu0 %v1899
        %1942 = vmatpush1.bf16.msra.mxu0 %v1898
        %1943 = vmatprep.subr.bf16.mxu0 %v1902
        %1944 = vmatpush1.bf16.msra.mxu0 %v1901
        %1945 = vmatprep.subr.bf16.mxu0 %v1905
        %1946 = vmatpush1.bf16.msra.mxu0 %v1904
        %1947 = vmatprep.subr.bf16.mxu0 0
        %1948 = vmatpush1.bf16.msra.mxu0 0
        %1949 = vmatprep.subr.bf16.mxu0 0
        %1950 = vmatpush1.bf16.msra.mxu0 0
        %1951 = vmatprep.subr.bf16.mxu0 0
        %1952 = vmatpush1.bf16.msra.mxu0 0
        %1953 = vmatprep.subr.bf16.mxu0 0
        %1954 = vmatpush1.bf16.msra.mxu0 0
        %1955 = vmatprep.subr.bf16.mxu0 0
        %1956 = vmatpush1.bf16.msra.mxu0 0
        %1957 = vmatprep.subr.bf16.mxu0 0
        %1958 = vmatpush1.bf16.msra.mxu0 0
        %1959 = vmatprep.subr.bf16.mxu0 0
        %1960 = vmatpush1.bf16.msra.mxu0 0
        %1961 = vmatprep.subr.bf16.mxu0 0
        %1962 = vmatpush1.bf16.msra.mxu0 0
        %1963 = vmatprep.mubr.bf16.mxu0 0
        %1964 = vmatmul.mubr.bf16.gmra.mrb[0].mxu0 %v1769
        %v1965 = vpop.f32.mrb[0].mxu0
        %v1966 = vadd.f32 0.0, %v1965
        %v1967 = vpop.f32.mrb[0].mxu0
        %v1968 = vadd.f32 0.0, %v1967
        %v1969 = vpop.f32.mrb[0].mxu0
        %v1970 = vadd.f32 0.0, %v1969
        %v1971 = vpop.f32.mrb[0].mxu0
        %v1972 = vadd.f32 0.0, %v1971
        %1973 = vdwg.mxu0
        %1974 = vmatprep.subr.bf16.mxu0 0
        %1975 = vmatpush1.bf16.msra.mxu0 %v1885
        %1976 = vmatprep.subr.bf16.mxu0 0
        %1977 = vmatpush1.bf16.msra.mxu0 %v1888
        %1978 = vmatprep.subr.bf16.mxu0 0
        %1979 = vmatpush1.bf16.msra.mxu0 %v1891
        %1980 = vmatprep.subr.bf16.mxu0 0
        %1981 = vmatpush1.bf16.msra.mxu0 %v1894
        %1982 = vmatprep.subr.bf16.mxu0 0
        %1983 = vmatpush1.bf16.msra.mxu0 %v1897
        %1984 = vmatprep.subr.bf16.mxu0 0
        %1985 = vmatpush1.bf16.msra.mxu0 %v1900
        %1986 = vmatprep.subr.bf16.mxu0 0
        %1987 = vmatpush1.bf16.msra.mxu0 %v1903
        %1988 = vmatprep.subr.bf16.mxu0 0
        %1989 = vmatpush1.bf16.msra.mxu0 %v1906
        %1990 = vmatprep.subr.bf16.mxu0 0
        %1991 = vmatpush1.bf16.msra.mxu0 0
        %1992 = vmatprep.subr.bf16.mxu0 0
        %1993 = vmatpush1.bf16.msra.mxu0 0
        %1994 = vmatprep.subr.bf16.mxu0 0
        %1995 = vmatpush1.bf16.msra.mxu0 0
        %1996 = vmatprep.subr.bf16.mxu0 0
        %1997 = vmatpush1.bf16.msra.mxu0 0
        %1998 = vmatprep.subr.bf16.mxu0 0
        %1999 = vmatpush1.bf16.msra.mxu0 0
        %2000 = vmatprep.subr.bf16.mxu0 0
        %2001 = vmatpush1.bf16.msra.mxu0 0
        %2002 = vmatprep.subr.bf16.mxu0 0
        %2003 = vmatpush1.bf16.msra.mxu0 0
        %2004 = vmatprep.subr.bf16.mxu0 0
        %2005 = vmatpush1.bf16.msra.mxu0 0
        %2006 = vmatprep.mubr.bf16.mxu0 0
        %2007 = vmatmul.mubr.bf16.gmra.mrb[0].mxu0 %v1769
        %v2008 = vpop.f32.mrb[0].mxu0
        %v2009 = vadd.f32 0.0, %v2008
        %v2010 = vpop.f32.mrb[0].mxu0
        %v2011 = vpop.f32.mrb[0].mxu0
        %v2012 = vadd.f32 0.0, %v2011
        %v2013 = vpop.f32.mrb[0].mxu0
        %2014 = vdwg.mxu0
        %v2015 = vpack.c.bf16 %v1970, %v1966
        %v2016 = vpack.c.bf16 %v1972, %v1968
        %2017 = vmatprep.subr.bf16.mxu0 0
        %2018 = vmatpush1.bf16.xpose.msra.mxu0 %v2016
        %2019 = vmatprep.subr.bf16.mxu0 0
        %2020 = vmatpush1.bf16.xpose.msra.mxu0 0
        %2021 = vmatprep.subr.bf16.mxu0 0
        %2022 = vmatpush1.bf16.xpose.msra.mxu0 0
        %2023 = vmatprep.subr.bf16.mxu0 0
        %2024 = vmatpush1.bf16.xpose.msra.mxu0 0
        %2025 = vmatprep.subr.bf16.mxu0 0
        %2026 = vmatpush1.bf16.xpose.msra.mxu0 0
        %2027 = vmatprep.subr.bf16.mxu0 0
        %2028 = vmatpush1.bf16.xpose.msra.mxu0 0
        %2029 = vmatprep.subr.bf16.mxu0 0
        %2030 = vmatpush1.bf16.xpose.msra.mxu0 0
        %2031 = vmatprep.subr.bf16.mxu0 0
        %2032 = vmatpush1.bf16.xpose.msra.mxu0 0
        %2033 = vmatprep.subr.bf16.mxu0 0
        %2034 = vmatpush1.bf16.xpose.msra.mxu0 0
        %2035 = vmatprep.subr.bf16.mxu0 0
        %2036 = vmatpush1.bf16.xpose.msra.mxu0 0
        %2037 = vmatprep.subr.bf16.mxu0 0
        %2038 = vmatpush1.bf16.xpose.msra.mxu0 0
        %2039 = vmatprep.subr.bf16.mxu0 0
        %2040 = vmatpush1.bf16.xpose.msra.mxu0 0
        %2041 = vmatprep.subr.bf16.mxu0 0
        %2042 = vmatpush1.bf16.xpose.msra.mxu0 0
        %2043 = vmatprep.subr.bf16.mxu0 0
        %2044 = vmatpush1.bf16.xpose.msra.mxu0 0
        %2045 = vmatprep.subr.bf16.mxu0 0
        %2046 = vmatpush1.bf16.xpose.msra.mxu0 0
        %2047 = vmatprep.subr.bf16.mxu0 0
        %2048 = vmatpush1.bf16.xpose.msra.mxu0 0
        %2049 = vmatprep.mubr.bf16.mxu0 0
        %2050 = vmatmul.mubr.bf16.gmra.mrb[0].mxu0 %v2015
        %v2051 = vpop.f32.mrb[0].mxu0
        %v2052 = vadd.f32 %v630, %v2051
        %v2053 = vpop.f32.mrb[0].mxu0
        %v2054 = vpop.f32.mrb[0].mxu0
        %v2055 = vadd.f32 %v630, %v2054
        %v2056 = vpop.f32.mrb[0].mxu0
        %2057 = vdwg.mxu0
        %v2058 = vsel %vm673, %v2052, -inf
        %2059 = vmax.xlane.f32.xlu0 %v2058
        %v2060 = vpop.xlane.xlu0 %2059
        %v2061 = vsel %vm673, %v2055, -inf
        %2062 = vmax.xlane.f32.xlu0 %v2061
        %v2063 = vpop.xlane.xlu0 %2062
        %v2064 = vsub.f32 %v2052, %v2060
        %v2065 = vsub.f32 %v2055, %v2063
        %v2066 = vmul.f32 %v2064, 1.442695
        %v2067 = vpow.pop %v2066
        %v2068 = vmul.f32 %v2065, 1.442695
        %v2069 = vpow.pop %v2068
        %v2070 = vsel %vm673, %v2067, 0.0
        %2071 = vadd.xlane.f32.xlu0 %v2070
        %v2072 = vpop.xlane.xlu0 %2071
        %v2073 = vsel %vm673, %v2069, 0.0
        %2074 = vadd.xlane.f32.xlu0 %v2073
        %v2075 = vpop.xlane.xlu0 %2074
        %v2076 = vrcp.pop %v2072
        %v2077 = vmul.f32 %v2067, %v2076
        %v2078 = vrcp.pop %v2075
        %v2079 = vmul.f32 %v2069, %v2078
        %v2080 = vpack.c.bf16 %v2079, %v2077
        %v2081 = vpack.c.bf16 %v2012, %v2009
        %v2083 = vsel %vm673, %v2080, 0
        %2085 = vmatprep.subr.bf16.mxu0 0
        %2086 = vmatpush1.bf16.msra.mxu0 %v2081
        %2087 = vmatprep.subr.bf16.mxu0 0
        %2088 = vmatpush1.bf16.msra.mxu0 0
        %2089 = vmatprep.subr.bf16.mxu0 0
        %2090 = vmatpush1.bf16.msra.mxu0 0
        %2091 = vmatprep.subr.bf16.mxu0 0
        %2092 = vmatpush1.bf16.msra.mxu0 0
        %2093 = vmatprep.subr.bf16.mxu0 0
        %2094 = vmatpush1.bf16.msra.mxu0 0
        %2095 = vmatprep.subr.bf16.mxu0 0
        %2096 = vmatpush1.bf16.msra.mxu0 0
        %2097 = vmatprep.subr.bf16.mxu0 0
        %2098 = vmatpush1.bf16.msra.mxu0 0
        %2099 = vmatprep.subr.bf16.mxu0 0
        %2100 = vmatpush1.bf16.msra.mxu0 0
        %2101 = vmatprep.subr.bf16.mxu0 0
        %2102 = vmatpush1.bf16.msra.mxu0 0
        %2103 = vmatprep.subr.bf16.mxu0 0
        %2104 = vmatpush1.bf16.msra.mxu0 0
        %2105 = vmatprep.subr.bf16.mxu0 0
        %2106 = vmatpush1.bf16.msra.mxu0 0
        %2107 = vmatprep.subr.bf16.mxu0 0
        %2108 = vmatpush1.bf16.msra.mxu0 0
        %2109 = vmatprep.subr.bf16.mxu0 0
        %2110 = vmatpush1.bf16.msra.mxu0 0
        %2111 = vmatprep.subr.bf16.mxu0 0
        %2112 = vmatpush1.bf16.msra.mxu0 0
        %2113 = vmatprep.subr.bf16.mxu0 0
        %2114 = vmatpush1.bf16.msra.mxu0 0
        %2115 = vmatprep.subr.bf16.mxu0 0
        %2116 = vmatpush1.bf16.msra.mxu0 0
        %2117 = vmatprep.mubr.bf16.mxu0 0
        %2118 = vmatmul.mubr.bf16.gmra.mrb[0].mxu0 %v2083
        %v2119 = vpop.f32.mrb[0].mxu0
        %v2120 = vadd.f32 0.0, %v2119
        %v2121 = vpop.f32.mrb[0].mxu0
        %v2122 = vpop.f32.mrb[0].mxu0
        %v2123 = vadd.f32 0.0, %v2122
        %v2124 = vpop.f32.mrb[0].mxu0
        %2125 = vdwg.mxu0
        %v2126 = vpack.c.bf16 %v2123, %v2120
        %s2127 = scalar_lea.vmem %s4, 128
        %v2128 = vld [vmem:[%s2127] sm:$0xf]
        %v2129 = vld [vmem:[%s2127 + $0x4] sm:$0xf]
        %v2130 = vld [vmem:[%s2127 + $0x8] sm:$0xf]
        %v2131 = vld [vmem:[%s2127 + $0xc] sm:$0xf]
        %v2132 = vld [vmem:[%s2127 + $0x10] sm:$0xf]
        %v2133 = vld [vmem:[%s2127 + $0x14] sm:$0xf]
        %v2134 = vld [vmem:[%s2127 + $0x18] sm:$0xf]
        %v2135 = vld [vmem:[%s2127 + $0x1c] sm:$0xf]
        %v2136 = vld [vmem:[%s2127 + $0x20] sm:$0xf]
        %v2137 = vld [vmem:[%s2127 + $0x24] sm:$0xf]
        %v2138 = vld [vmem:[%s2127 + $0x28] sm:$0xf]
        %v2139 = vld [vmem:[%s2127 + $0x2c] sm:$0xf]
        %v2140 = vld [vmem:[%s2127 + $0x30] sm:$0xf]
        %v2141 = vld [vmem:[%s2127 + $0x34] sm:$0xf]
        %v2142 = vld [vmem:[%s2127 + $0x38] sm:$0xf]
        %v2143 = vld [vmem:[%s2127 + $0x3c] sm:$0xf]
        %v2160 = vunpack.c.l.b16 %v2128
        %v2161 = vunpack.c.l.b16 %v2129
        %v2162 = vunpack.c.l.b16 %v2130
        %v2163 = vunpack.c.l.b16 %v2131
        %v2164 = vunpack.c.l.b16 %v2132
        %v2165 = vunpack.c.l.b16 %v2133
        %v2166 = vunpack.c.l.b16 %v2134
        %v2167 = vunpack.c.l.b16 %v2135
        %v2168 = vunpack.c.l.b16 %v2136
        %v2169 = vunpack.c.l.b16 %v2137
        %v2170 = vunpack.c.l.b16 %v2138
        %v2171 = vunpack.c.l.b16 %v2139
        %v2172 = vunpack.c.l.b16 %v2140
        %v2173 = vunpack.c.l.b16 %v2141
        %v2174 = vunpack.c.l.b16 %v2142
        %v2175 = vunpack.c.l.b16 %v2143
        %v2176 = vpack.c.b16 %v2161, %v2160
        %v2177 = vpack.c.b16 %v2163, %v2162
        %v2178 = vpack.c.b16 %v2165, %v2164
        %v2179 = vpack.c.b16 %v2167, %v2166
        %v2180 = vpack.c.b16 %v2169, %v2168
        %v2181 = vpack.c.b16 %v2171, %v2170
        %v2182 = vpack.c.b16 %v2173, %v2172
        %v2183 = vpack.c.b16 %v2175, %v2174
        %2192 = vmatprep.subr.bf16.mxu0 0
        %2193 = vmatpush1.bf16.msra.mxu0 %v2176
        %2194 = vmatprep.subr.bf16.mxu0 0
        %2195 = vmatpush1.bf16.msra.mxu0 %v2177
        %2196 = vmatprep.subr.bf16.mxu0 0
        %2197 = vmatpush1.bf16.msra.mxu0 %v2178
        %2198 = vmatprep.subr.bf16.mxu0 0
        %2199 = vmatpush1.bf16.msra.mxu0 %v2179
        %2200 = vmatprep.subr.bf16.mxu0 0
        %2201 = vmatpush1.bf16.msra.mxu0 %v2180
        %2202 = vmatprep.subr.bf16.mxu0 0
        %2203 = vmatpush1.bf16.msra.mxu0 %v2181
        %2204 = vmatprep.subr.bf16.mxu0 0
        %2205 = vmatpush1.bf16.msra.mxu0 %v2182
        %2206 = vmatprep.subr.bf16.mxu0 0
        %2207 = vmatpush1.bf16.msra.mxu0 %v2183
        %2208 = vmatprep.subr.bf16.mxu0 0
        %2209 = vmatpush1.bf16.msra.mxu0 0
        %2210 = vmatprep.subr.bf16.mxu0 0
        %2211 = vmatpush1.bf16.msra.mxu0 0
        %2212 = vmatprep.subr.bf16.mxu0 0
        %2213 = vmatpush1.bf16.msra.mxu0 0
        %2214 = vmatprep.subr.bf16.mxu0 0
        %2215 = vmatpush1.bf16.msra.mxu0 0
        %2216 = vmatprep.subr.bf16.mxu0 0
        %2217 = vmatpush1.bf16.msra.mxu0 0
        %2218 = vmatprep.subr.bf16.mxu0 0
        %2219 = vmatpush1.bf16.msra.mxu0 0
        %2220 = vmatprep.subr.bf16.mxu0 0
        %2221 = vmatpush1.bf16.msra.mxu0 0
        %2222 = vmatprep.subr.bf16.mxu0 0
        %2223 = vmatpush1.bf16.msra.mxu0 0
        %2224 = vmatprep.mubr.bf16.mxu0 0
        %2225 = vmatmul.mubr.bf16.gmra.mrb[0].mxu0 %v2126
        %v2226 = vpop.f32.mrb[0].mxu0
        %v2227 = vadd.f32 0.0, %v2226
        %v2228 = vpop.f32.mrb[0].mxu0
        %v2229 = vpop.f32.mrb[0].mxu0
        %v2230 = vadd.f32 0.0, %v2229
        %v2231 = vpop.f32.mrb[0].mxu0
        %2232 = vdwg.mxu0
        %v2233 = vadd.f32 %v1757, %v2227
        %v2234 = vadd.f32 %v1758, %v2230
        %v2235 = vpack.c.bf16 %v2234, %v2233
        %s2236 = scalar_lea.vmem [#allocation4], 128
        %v2237 = vld [vmem:[%s2236] sm:$0xf]
        %v2238 = vld [vmem:[%s2236 + $0x4] sm:$0xf]
        %v2239 = vld [vmem:[%s2236 + $0x8] sm:$0xf]
        %v2240 = vld [vmem:[%s2236 + $0xc] sm:$0xf]
        %v2241 = vld [vmem:[%s2236 + $0x10] sm:$0xf]
        %v2242 = vld [vmem:[%s2236 + $0x14] sm:$0xf]
        %v2243 = vld [vmem:[%s2236 + $0x18] sm:$0xf]
        %v2244 = vld [vmem:[%s2236 + $0x1c] sm:$0xf]
        %v2245 = vld [vmem:[%s2236 + $0x20] sm:$0xf]
        %v2246 = vld [vmem:[%s2236 + $0x24] sm:$0xf]
        %v2247 = vld [vmem:[%s2236 + $0x28] sm:$0xf]
        %v2248 = vld [vmem:[%s2236 + $0x2c] sm:$0xf]
        %v2249 = vld [vmem:[%s2236 + $0x30] sm:$0xf]
        %v2250 = vld [vmem:[%s2236 + $0x34] sm:$0xf]
        %v2251 = vld [vmem:[%s2236 + $0x38] sm:$0xf]
        %v2252 = vld [vmem:[%s2236 + $0x3c] sm:$0xf]
        %v2269 = vunpack.c.l.b16 %v2237
        %v2270 = vunpack.c.l.b16 %v2238
        %v2271 = vunpack.c.l.b16 %v2239
        %v2272 = vunpack.c.l.b16 %v2240
        %v2273 = vunpack.c.l.b16 %v2241
        %v2274 = vunpack.c.l.b16 %v2242
        %v2275 = vunpack.c.l.b16 %v2243
        %v2276 = vunpack.c.l.b16 %v2244
        %v2277 = vunpack.c.l.b16 %v2245
        %v2278 = vunpack.c.l.b16 %v2246
        %v2279 = vunpack.c.l.b16 %v2247
        %v2280 = vunpack.c.l.b16 %v2248
        %v2281 = vunpack.c.l.b16 %v2249
        %v2282 = vunpack.c.l.b16 %v2250
        %v2283 = vunpack.c.l.b16 %v2251
        %v2284 = vunpack.c.l.b16 %v2252
        %v2285 = vpack.c.b16 %v2270, %v2269
        %v2286 = vpack.c.b16 %v2272, %v2271
        %v2287 = vpack.c.b16 %v2274, %v2273
        %v2288 = vpack.c.b16 %v2276, %v2275
        %v2289 = vpack.c.b16 %v2278, %v2277
        %v2290 = vpack.c.b16 %v2280, %v2279
        %v2291 = vpack.c.b16 %v2282, %v2281
        %v2292 = vpack.c.b16 %v2284, %v2283
        %2301 = vmatprep.subr.bf16.mxu0 0
        %2302 = vmatpush1.bf16.msra.mxu0 %v2285
        %2303 = vmatprep.subr.bf16.mxu0 0
        %2304 = vmatpush1.bf16.msra.mxu0 %v2286
        %2305 = vmatprep.subr.bf16.mxu0 0
        %2306 = vmatpush1.bf16.msra.mxu0 %v2287
        %2307 = vmatprep.subr.bf16.mxu0 0
        %2308 = vmatpush1.bf16.msra.mxu0 %v2288
        %2309 = vmatprep.subr.bf16.mxu0 0
        %2310 = vmatpush1.bf16.msra.mxu0 %v2289
        %2311 = vmatprep.subr.bf16.mxu0 0
        %2312 = vmatpush1.bf16.msra.mxu0 %v2290
        %2313 = vmatprep.subr.bf16.mxu0 0
        %2314 = vmatpush1.bf16.msra.mxu0 %v2291
        %2315 = vmatprep.subr.bf16.mxu0 0
        %2316 = vmatpush1.bf16.msra.mxu0 %v2292
        %2317 = vmatprep.subr.bf16.mxu0 0
        %2318 = vmatpush1.bf16.msra.mxu0 0
        %2319 = vmatprep.subr.bf16.mxu0 0
        %2320 = vmatpush1.bf16.msra.mxu0 0
        %2321 = vmatprep.subr.bf16.mxu0 0
        %2322 = vmatpush1.bf16.msra.mxu0 0
        %2323 = vmatprep.subr.bf16.mxu0 0
        %2324 = vmatpush1.bf16.msra.mxu0 0
        %2325 = vmatprep.subr.bf16.mxu0 0
        %2326 = vmatpush1.bf16.msra.mxu0 0
        %2327 = vmatprep.subr.bf16.mxu0 0
        %2328 = vmatpush1.bf16.msra.mxu0 0
        %2329 = vmatprep.subr.bf16.mxu0 0
        %2330 = vmatpush1.bf16.msra.mxu0 0
        %2331 = vmatprep.subr.bf16.mxu0 0
        %2332 = vmatpush1.bf16.msra.mxu0 0
        %2333 = vmatprep.mubr.bf16.mxu0 0
        %2334 = vmatmul.mubr.bf16.gmra.mrb[0].mxu0 %v2235
        %v2335 = vpop.f32.mrb[0].mxu0
        %v2336 = vadd.f32 0.0, %v2335
        %v2337 = vpop.f32.mrb[0].mxu0
        %v2338 = vpop.f32.mrb[0].mxu0
        %v2339 = vadd.f32 0.0, %v2338
        %v2340 = vpop.f32.mrb[0].mxu0
        %2341 = vdwg.mxu0
        %v2342 = vmax.f32 %v2336, 0.0
        %v2343 = vmax.f32 %v2339, 0.0
        %v2344 = vpack.c.bf16 %v2343, %v2342
        %s2345 = scalar_lea.vmem [#allocation6], 128
        %v2346 = vld [vmem:[%s2345] sm:$0xf]
        %v2347 = vld [vmem:[%s2345 + $0x4] sm:$0xf]
        %v2348 = vld [vmem:[%s2345 + $0x8] sm:$0xf]
        %v2349 = vld [vmem:[%s2345 + $0xc] sm:$0xf]
        %v2350 = vld [vmem:[%s2345 + $0x10] sm:$0xf]
        %v2351 = vld [vmem:[%s2345 + $0x14] sm:$0xf]
        %v2352 = vld [vmem:[%s2345 + $0x18] sm:$0xf]
        %v2353 = vld [vmem:[%s2345 + $0x1c] sm:$0xf]
        %v2354 = vld [vmem:[%s2345 + $0x20] sm:$0xf]
        %v2355 = vld [vmem:[%s2345 + $0x24] sm:$0xf]
        %v2356 = vld [vmem:[%s2345 + $0x28] sm:$0xf]
        %v2357 = vld [vmem:[%s2345 + $0x2c] sm:$0xf]
        %v2358 = vld [vmem:[%s2345 + $0x30] sm:$0xf]
        %v2359 = vld [vmem:[%s2345 + $0x34] sm:$0xf]
        %v2360 = vld [vmem:[%s2345 + $0x38] sm:$0xf]
        %v2361 = vld [vmem:[%s2345 + $0x3c] sm:$0xf]
        %v2378 = vunpack.c.l.b16 %v2346
        %v2379 = vunpack.c.l.b16 %v2347
        %v2380 = vunpack.c.l.b16 %v2348
        %v2381 = vunpack.c.l.b16 %v2349
        %v2382 = vunpack.c.l.b16 %v2350
        %v2383 = vunpack.c.l.b16 %v2351
        %v2384 = vunpack.c.l.b16 %v2352
        %v2385 = vunpack.c.l.b16 %v2353
        %v2386 = vunpack.c.l.b16 %v2354
        %v2387 = vunpack.c.l.b16 %v2355
        %v2388 = vunpack.c.l.b16 %v2356
        %v2389 = vunpack.c.l.b16 %v2357
        %v2390 = vunpack.c.l.b16 %v2358
        %v2391 = vunpack.c.l.b16 %v2359
        %v2392 = vunpack.c.l.b16 %v2360
        %v2393 = vunpack.c.l.b16 %v2361
        %v2394 = vpack.c.b16 %v2379, %v2378
        %v2395 = vpack.c.b16 %v2381, %v2380
        %v2396 = vpack.c.b16 %v2383, %v2382
        %v2397 = vpack.c.b16 %v2385, %v2384
        %v2398 = vpack.c.b16 %v2387, %v2386
        %v2399 = vpack.c.b16 %v2389, %v2388
        %v2400 = vpack.c.b16 %v2391, %v2390
        %v2401 = vpack.c.b16 %v2393, %v2392
        %2410 = vmatprep.subr.bf16.mxu0 0
        %2411 = vmatpush1.bf16.msra.mxu0 %v2394
        %2412 = vmatprep.subr.bf16.mxu0 0
        %2413 = vmatpush1.bf16.msra.mxu0 %v2395
        %2414 = vmatprep.subr.bf16.mxu0 0
        %2415 = vmatpush1.bf16.msra.mxu0 %v2396
        %2416 = vmatprep.subr.bf16.mxu0 0
        %2417 = vmatpush1.bf16.msra.mxu0 %v2397
        %2418 = vmatprep.subr.bf16.mxu0 0
        %2419 = vmatpush1.bf16.msra.mxu0 %v2398
        %2420 = vmatprep.subr.bf16.mxu0 0
        %2421 = vmatpush1.bf16.msra.mxu0 %v2399
        %2422 = vmatprep.subr.bf16.mxu0 0
        %2423 = vmatpush1.bf16.msra.mxu0 %v2400
        %2424 = vmatprep.subr.bf16.mxu0 0
        %2425 = vmatpush1.bf16.msra.mxu0 %v2401
        %2426 = vmatprep.subr.bf16.mxu0 0
        %2427 = vmatpush1.bf16.msra.mxu0 0
        %2428 = vmatprep.subr.bf16.mxu0 0
        %2429 = vmatpush1.bf16.msra.mxu0 0
        %2430 = vmatprep.subr.bf16.mxu0 0
        %2431 = vmatpush1.bf16.msra.mxu0 0
        %2432 = vmatprep.subr.bf16.mxu0 0
        %2433 = vmatpush1.bf16.msra.mxu0 0
        %2434 = vmatprep.subr.bf16.mxu0 0
        %2435 = vmatpush1.bf16.msra.mxu0 0
        %2436 = vmatprep.subr.bf16.mxu0 0
        %2437 = vmatpush1.bf16.msra.mxu0 0
        %2438 = vmatprep.subr.bf16.mxu0 0
        %2439 = vmatpush1.bf16.msra.mxu0 0
        %2440 = vmatprep.subr.bf16.mxu0 0
        %2441 = vmatpush1.bf16.msra.mxu0 0
        %2442 = vmatprep.mubr.bf16.mxu0 0
        %2443 = vmatmul.mubr.bf16.gmra.mrb[0].mxu0 %v2344
        %v2444 = vpop.f32.mrb[0].mxu0
        %v2445 = vadd.f32 0.0, %v2444
        %v2446 = vpop.f32.mrb[0].mxu0
        %v2447 = vpop.f32.mrb[0].mxu0
        %v2448 = vadd.f32 0.0, %v2447
        %v2449 = vpop.f32.mrb[0].mxu0
        %2450 = vdwg.mxu0
        %v2451 = vadd.f32 %v2233, %v2445
        %v2452 = vadd.f32 %v2234, %v2448
        %s2453 = scalar_lea.vmem %s2, 2
        %v2454 = vld [vmem:[%s2453] sm:$0x1]
        %v2456 = vlaneseq
        %v2457 = vshrl.u32 %v2456, 7
        %v2458 = vsub.s32 0, %v2457
        %v2459 = vrot.slane %v2454, %v2458
        %v2461 = vmul.f32 %v2459, %v2451
        %v2462 = vadd.f32 %v1768, %v2461
        %v2463 = vpack.c.bf16 %v2452, %v2451
        %s2464 = scalar_lea.vmem [#allocation2], 576
        %v2465 = vld [vmem:[%s2464] sm:$0xff]
        %v2466 = vld [vmem:[%s2464 + $0x8] sm:$0xf]
        %v2467 = vld [vmem:[%s2464 + $0xc] sm:$0xff]
        %v2468 = vld [vmem:[%s2464 + $0x14] sm:$0xf]
        %v2469 = vld [vmem:[%s2464 + $0x18] sm:$0xff]
        %v2470 = vld [vmem:[%s2464 + $0x20] sm:$0xf]
        %v2471 = vld [vmem:[%s2464 + $0x24] sm:$0xff]
        %v2472 = vld [vmem:[%s2464 + $0x2c] sm:$0xf]
        %v2473 = vld [vmem:[%s2464 + $0x30] sm:$0xff]
        %v2474 = vld [vmem:[%s2464 + $0x38] sm:$0xf]
        %v2475 = vld [vmem:[%s2464 + $0x3c] sm:$0xff]
        %v2476 = vld [vmem:[%s2464 + $0x44] sm:$0xf]
        %v2477 = vld [vmem:[%s2464 + $0x48] sm:$0xff]
        %v2478 = vld [vmem:[%s2464 + $0x50] sm:$0xf]
        %v2479 = vld [vmem:[%s2464 + $0x54] sm:$0xff]
        %v2480 = vld [vmem:[%s2464 + $0x5c] sm:$0xf]
        %v2481 = vld [vmem:[%s2464 + $0x60] sm:$0xff]
        %v2482 = vld [vmem:[%s2464 + $0x68] sm:$0xf]
        %v2483 = vld [vmem:[%s2464 + $0x6c] sm:$0xff]
        %v2484 = vld [vmem:[%s2464 + $0x74] sm:$0xf]
        %v2485 = vld [vmem:[%s2464 + $0x78] sm:$0xff]
        %v2486 = vld [vmem:[%s2464 + $0x80] sm:$0xf]
        %v2487 = vld [vmem:[%s2464 + $0x84] sm:$0xff]
        %v2488 = vld [vmem:[%s2464 + $0x8c] sm:$0xf]
        %v2489 = vld [vmem:[%s2464 + $0x90] sm:$0xff]
        %v2490 = vld [vmem:[%s2464 + $0x98] sm:$0xf]
        %v2491 = vld [vmem:[%s2464 + $0x9c] sm:$0xff]
        %v2492 = vld [vmem:[%s2464 + $0xa4] sm:$0xf]
        %v2493 = vld [vmem:[%s2464 + $0xa8] sm:$0xff]
        %v2494 = vld [vmem:[%s2464 + $0xb0] sm:$0xf]
        %v2495 = vld [vmem:[%s2464 + $0xb4] sm:$0xff]
        %v2496 = vld [vmem:[%s2464 + $0xbc] sm:$0xf]
        %v2529 = vunpack.c.l.b16 %v2465
        %v2530 = vunpack.c.h.b16 %v2465
        %v2531 = vunpack.c.l.b16 %v2466
        %v2532 = vunpack.c.l.b16 %v2467
        %v2533 = vunpack.c.h.b16 %v2467
        %v2534 = vunpack.c.l.b16 %v2468
        %v2535 = vunpack.c.l.b16 %v2469
        %v2536 = vunpack.c.h.b16 %v2469
        %v2537 = vunpack.c.l.b16 %v2470
        %v2538 = vunpack.c.l.b16 %v2471
        %v2539 = vunpack.c.h.b16 %v2471
        %v2540 = vunpack.c.l.b16 %v2472
        %v2541 = vunpack.c.l.b16 %v2473
        %v2542 = vunpack.c.h.b16 %v2473
        %v2543 = vunpack.c.l.b16 %v2474
        %v2544 = vunpack.c.l.b16 %v2475
        %v2545 = vunpack.c.h.b16 %v2475
        %v2546 = vunpack.c.l.b16 %v2476
        %v2547 = vunpack.c.l.b16 %v2477
        %v2548 = vunpack.c.h.b16 %v2477
        %v2549 = vunpack.c.l.b16 %v2478
        %v2550 = vunpack.c.l.b16 %v2479
        %v2551 = vunpack.c.h.b16 %v2479
        %v2552 = vunpack.c.l.b16 %v2480
        %v2553 = vunpack.c.l.b16 %v2481
        %v2554 = vunpack.c.h.b16 %v2481
        %v2555 = vunpack.c.l.b16 %v2482
        %v2556 = vunpack.c.l.b16 %v2483
        %v2557 = vunpack.c.h.b16 %v2483
        %v2558 = vunpack.c.l.b16 %v2484
        %v2559 = vunpack.c.l.b16 %v2485
        %v2560 = vunpack.c.h.b16 %v2485
        %v2561 = vunpack.c.l.b16 %v2486
        %v2562 = vunpack.c.l.b16 %v2487
        %v2563 = vunpack.c.h.b16 %v2487
        %v2564 = vunpack.c.l.b16 %v2488
        %v2565 = vunpack.c.l.b16 %v2489
        %v2566 = vunpack.c.h.b16 %v2489
        %v2567 = vunpack.c.l.b16 %v2490
        %v2568 = vunpack.c.l.b16 %v2491
        %v2569 = vunpack.c.h.b16 %v2491
        %v2570 = vunpack.c.l.b16 %v2492
        %v2571 = vunpack.c.l.b16 %v2493
        %v2572 = vunpack.c.h.b16 %v2493
        %v2573 = vunpack.c.l.b16 %v2494
        %v2574 = vunpack.c.l.b16 %v2495
        %v2575 = vunpack.c.h.b16 %v2495
        %v2576 = vunpack.c.l.b16 %v2496
        %v2577 = vpack.c.b16 %v2532, %v2529
        %v2578 = vpack.c.b16 %v2533, %v2530
        %v2579 = vpack.c.b16 %v2534, %v2531
        %v2580 = vpack.c.b16 %v2538, %v2535
        %v2581 = vpack.c.b16 %v2539, %v2536
        %v2582 = vpack.c.b16 %v2540, %v2537
        %v2583 = vpack.c.b16 %v2544, %v2541
        %v2584 = vpack.c.b16 %v2545, %v2542
        %v2585 = vpack.c.b16 %v2546, %v2543
        %v2586 = vpack.c.b16 %v2550, %v2547
        %v2587 = vpack.c.b16 %v2551, %v2548
        %v2588 = vpack.c.b16 %v2552, %v2549
        %v2589 = vpack.c.b16 %v2556, %v2553
        %v2590 = vpack.c.b16 %v2557, %v2554
        %v2591 = vpack.c.b16 %v2558, %v2555
        %v2592 = vpack.c.b16 %v2562, %v2559
        %v2593 = vpack.c.b16 %v2563, %v2560
        %v2594 = vpack.c.b16 %v2564, %v2561
        %v2595 = vpack.c.b16 %v2568, %v2565
        %v2596 = vpack.c.b16 %v2569, %v2566
        %v2597 = vpack.c.b16 %v2570, %v2567
        %v2598 = vpack.c.b16 %v2574, %v2571
        %v2599 = vpack.c.b16 %v2575, %v2572
        %v2600 = vpack.c.b16 %v2576, %v2573
        %2625 = vmatprep.subr.bf16.mxu0 %v2578
        %2626 = vmatpush1.bf16.msra.mxu0 %v2577
        %2627 = vmatprep.subr.bf16.mxu0 %v2581
        %2628 = vmatpush1.bf16.msra.mxu0 %v2580
        %2629 = vmatprep.subr.bf16.mxu0 %v2584
        %2630 = vmatpush1.bf16.msra.mxu0 %v2583
        %2631 = vmatprep.subr.bf16.mxu0 %v2587
        %2632 = vmatpush1.bf16.msra.mxu0 %v2586
        %2633 = vmatprep.subr.bf16.mxu0 %v2590
        %2634 = vmatpush1.bf16.msra.mxu0 %v2589
        %2635 = vmatprep.subr.bf16.mxu0 %v2593
        %2636 = vmatpush1.bf16.msra.mxu0 %v2592
        %2637 = vmatprep.subr.bf16.mxu0 %v2596
        %2638 = vmatpush1.bf16.msra.mxu0 %v2595
        %2639 = vmatprep.subr.bf16.mxu0 %v2599
        %2640 = vmatpush1.bf16.msra.mxu0 %v2598
        %2641 = vmatprep.subr.bf16.mxu0 0
        %2642 = vmatpush1.bf16.msra.mxu0 0
        %2643 = vmatprep.subr.bf16.mxu0 0
        %2644 = vmatpush1.bf16.msra.mxu0 0
        %2645 = vmatprep.subr.bf16.mxu0 0
        %2646 = vmatpush1.bf16.msra.mxu0 0
        %2647 = vmatprep.subr.bf16.mxu0 0
        %2648 = vmatpush1.bf16.msra.mxu0 0
        %2649 = vmatprep.subr.bf16.mxu0 0
        %2650 = vmatpush1.bf16.msra.mxu0 0
        %2651 = vmatprep.subr.bf16.mxu0 0
        %2652 = vmatpush1.bf16.msra.mxu0 0
        %2653 = vmatprep.subr.bf16.mxu0 0
        %2654 = vmatpush1.bf16.msra.mxu0 0
        %2655 = vmatprep.subr.bf16.mxu0 0
        %2656 = vmatpush1.bf16.msra.mxu0 0
        %2657 = vmatprep.mubr.bf16.mxu0 0
        %2658 = vmatmul.mubr.bf16.gmra.mrb[0].mxu0 %v2463
        %v2659 = vpop.f32.mrb[0].mxu0
        %v2660 = vadd.f32 0.0, %v2659
        %v2661 = vpop.f32.mrb[0].mxu0
        %v2662 = vadd.f32 0.0, %v2661
        %v2663 = vpop.f32.mrb[0].mxu0
        %v2664 = vadd.f32 0.0, %v2663
        %v2665 = vpop.f32.mrb[0].mxu0
        %v2666 = vadd.f32 0.0, %v2665
        %2667 = vdwg.mxu0
        %2668 = vmatprep.subr.bf16.mxu0 0
        %2669 = vmatpush1.bf16.msra.mxu0 %v2579
        %2670 = vmatprep.subr.bf16.mxu0 0
        %2671 = vmatpush1.bf16.msra.mxu0 %v2582
        %2672 = vmatprep.subr.bf16.mxu0 0
        %2673 = vmatpush1.bf16.msra.mxu0 %v2585
        %2674 = vmatprep.subr.bf16.mxu0 0
        %2675 = vmatpush1.bf16.msra.mxu0 %v2588
        %2676 = vmatprep.subr.bf16.mxu0 0
        %2677 = vmatpush1.bf16.msra.mxu0 %v2591
        %2678 = vmatprep.subr.bf16.mxu0 0
        %2679 = vmatpush1.bf16.msra.mxu0 %v2594
        %2680 = vmatprep.subr.bf16.mxu0 0
        %2681 = vmatpush1.bf16.msra.mxu0 %v2597
        %2682 = vmatprep.subr.bf16.mxu0 0
        %2683 = vmatpush1.bf16.msra.mxu0 %v2600
        %2684 = vmatprep.subr.bf16.mxu0 0
        %2685 = vmatpush1.bf16.msra.mxu0 0
        %2686 = vmatprep.subr.bf16.mxu0 0
        %2687 = vmatpush1.bf16.msra.mxu0 0
        %2688 = vmatprep.subr.bf16.mxu0 0
        %2689 = vmatpush1.bf16.msra.mxu0 0
        %2690 = vmatprep.subr.bf16.mxu0 0
        %2691 = vmatpush1.bf16.msra.mxu0 0
        %2692 = vmatprep.subr.bf16.mxu0 0
        %2693 = vmatpush1.bf16.msra.mxu0 0
        %2694 = vmatprep.subr.bf16.mxu0 0
        %2695 = vmatpush1.bf16.msra.mxu0 0
        %2696 = vmatprep.subr.bf16.mxu0 0
        %2697 = vmatpush1.bf16.msra.mxu0 0
        %2698 = vmatprep.subr.bf16.mxu0 0
        %2699 = vmatpush1.bf16.msra.mxu0 0
        %2700 = vmatprep.mubr.bf16.mxu0 0
        %2701 = vmatmul.mubr.bf16.gmra.mrb[0].mxu0 %v2463
        %v2702 = vpop.f32.mrb[0].mxu0
        %v2703 = vadd.f32 0.0, %v2702
        %v2704 = vpop.f32.mrb[0].mxu0
        %v2705 = vpop.f32.mrb[0].mxu0
        %v2706 = vadd.f32 0.0, %v2705
        %v2707 = vpop.f32.mrb[0].mxu0
        %2708 = vdwg.mxu0
        %v2709 = vpack.c.bf16 %v2664, %v2660
        %v2710 = vpack.c.bf16 %v2666, %v2662
        %2711 = vmatprep.subr.bf16.mxu0 0
        %2712 = vmatpush1.bf16.xpose.msra.mxu0 %v2710
        %2713 = vmatprep.subr.bf16.mxu0 0
        %2714 = vmatpush1.bf16.xpose.msra.mxu0 0
        %2715 = vmatprep.subr.bf16.mxu0 0
        %2716 = vmatpush1.bf16.xpose.msra.mxu0 0
        %2717 = vmatprep.subr.bf16.mxu0 0
        %2718 = vmatpush1.bf16.xpose.msra.mxu0 0
        %2719 = vmatprep.subr.bf16.mxu0 0
        %2720 = vmatpush1.bf16.xpose.msra.mxu0 0
        %2721 = vmatprep.subr.bf16.mxu0 0
        %2722 = vmatpush1.bf16.xpose.msra.mxu0 0
        %2723 = vmatprep.subr.bf16.mxu0 0
        %2724 = vmatpush1.bf16.xpose.msra.mxu0 0
        %2725 = vmatprep.subr.bf16.mxu0 0
        %2726 = vmatpush1.bf16.xpose.msra.mxu0 0
        %2727 = vmatprep.subr.bf16.mxu0 0
        %2728 = vmatpush1.bf16.xpose.msra.mxu0 0
        %2729 = vmatprep.subr.bf16.mxu0 0
        %2730 = vmatpush1.bf16.xpose.msra.mxu0 0
        %2731 = vmatprep.subr.bf16.mxu0 0
        %2732 = vmatpush1.bf16.xpose.msra.mxu0 0
        %2733 = vmatprep.subr.bf16.mxu0 0
        %2734 = vmatpush1.bf16.xpose.msra.mxu0 0
        %2735 = vmatprep.subr.bf16.mxu0 0
        %2736 = vmatpush1.bf16.xpose.msra.mxu0 0
        %2737 = vmatprep.subr.bf16.mxu0 0
        %2738 = vmatpush1.bf16.xpose.msra.mxu0 0
        %2739 = vmatprep.subr.bf16.mxu0 0
        %2740 = vmatpush1.bf16.xpose.msra.mxu0 0
        %2741 = vmatprep.subr.bf16.mxu0 0
        %2742 = vmatpush1.bf16.xpose.msra.mxu0 0
        %2743 = vmatprep.mubr.bf16.mxu0 0
        %2744 = vmatmul.mubr.bf16.gmra.mrb[0].mxu0 %v2709
        %v2745 = vpop.f32.mrb[0].mxu0
        %v2746 = vadd.f32 %v630, %v2745
        %v2747 = vpop.f32.mrb[0].mxu0
        %v2748 = vpop.f32.mrb[0].mxu0
        %v2749 = vadd.f32 %v630, %v2748
        %v2750 = vpop.f32.mrb[0].mxu0
        %2751 = vdwg.mxu0
        %v2752 = vsel %vm673, %v2746, -inf
        %2753 = vmax.xlane.f32.xlu0 %v2752
        %v2754 = vpop.xlane.xlu0 %2753
        %v2755 = vsel %vm673, %v2749, -inf
        %2756 = vmax.xlane.f32.xlu0 %v2755
        %v2757 = vpop.xlane.xlu0 %2756
        %v2758 = vsub.f32 %v2746, %v2754
        %v2759 = vsub.f32 %v2749, %v2757
        %v2760 = vmul.f32 %v2758, 1.442695
        %v2761 = vpow.pop %v2760
        %v2762 = vmul.f32 %v2759, 1.442695
        %v2763 = vpow.pop %v2762
        %v2764 = vsel %vm673, %v2761, 0.0
        %2765 = vadd.xlane.f32.xlu0 %v2764
        %v2766 = vpop.xlane.xlu0 %2765
        %v2767 = vsel %vm673, %v2763, 0.0
        %2768 = vadd.xlane.f32.xlu0 %v2767
        %v2769 = vpop.xlane.xlu0 %2768
        %v2770 = vrcp.pop %v2766
        %v2771 = vmul.f32 %v2761, %v2770
        %v2772 = vrcp.pop %v2769
        %v2773 = vmul.f32 %v2763, %v2772
        %v2774 = vpack.c.bf16 %v2773, %v2771
        %v2775 = vpack.c.bf16 %v2706, %v2703
        %v2777 = vsel %vm673, %v2774, 0
        %2779 = vmatprep.subr.bf16.mxu0 0
        %2780 = vmatpush1.bf16.msra.mxu0 %v2775
        %2781 = vmatprep.subr.bf16.mxu0 0
        %2782 = vmatpush1.bf16.msra.mxu0 0
        %2783 = vmatprep.subr.bf16.mxu0 0
        %2784 = vmatpush1.bf16.msra.mxu0 0
        %2785 = vmatprep.subr.bf16.mxu0 0
        %2786 = vmatpush1.bf16.msra.mxu0 0
        %2787 = vmatprep.subr.bf16.mxu0 0
        %2788 = vmatpush1.bf16.msra.mxu0 0
        %2789 = vmatprep.subr.bf16.mxu0 0
        %2790 = vmatpush1.bf16.msra.mxu0 0
        %2791 = vmatprep.subr.bf16.mxu0 0
        %2792 = vmatpush1.bf16.msra.mxu0 0
        %2793 = vmatprep.subr.bf16.mxu0 0
        %2794 = vmatpush1.bf16.msra.mxu0 0
        %2795 = vmatprep.subr.bf16.mxu0 0
        %2796 = vmatpush1.bf16.msra.mxu0 0
        %2797 = vmatprep.subr.bf16.mxu0 0
        %2798 = vmatpush1.bf16.msra.mxu0 0
        %2799 = vmatprep.subr.bf16.mxu0 0
        %2800 = vmatpush1.bf16.msra.mxu0 0
        %2801 = vmatprep.subr.bf16.mxu0 0
        %2802 = vmatpush1.bf16.msra.mxu0 0
        %2803 = vmatprep.subr.bf16.mxu0 0
        %2804 = vmatpush1.bf16.msra.mxu0 0
        %2805 = vmatprep.subr.bf16.mxu0 0
        %2806 = vmatpush1.bf16.msra.mxu0 0
        %2807 = vmatprep.subr.bf16.mxu0 0
        %2808 = vmatpush1.bf16.msra.mxu0 0
        %2809 = vmatprep.subr.bf16.mxu0 0
        %2810 = vmatpush1.bf16.msra.mxu0 0
        %2811 = vmatprep.mubr.bf16.mxu0 0
        %2812 = vmatmul.mubr.bf16.gmra.mrb[0].mxu0 %v2777
        %v2813 = vpop.f32.mrb[0].mxu0
        %v2814 = vadd.f32 0.0, %v2813
        %v2815 = vpop.f32.mrb[0].mxu0
        %v2816 = vpop.f32.mrb[0].mxu0
        %v2817 = vadd.f32 0.0, %v2816
        %v2818 = vpop.f32.mrb[0].mxu0
        %2819 = vdwg.mxu0
        %v2820 = vpack.c.bf16 %v2817, %v2814
        %s2821 = scalar_lea.vmem %s4, 192
        %v2822 = vld [vmem:[%s2821] sm:$0xf]
        %v2823 = vld [vmem:[%s2821 + $0x4] sm:$0xf]
        %v2824 = vld [vmem:[%s2821 + $0x8] sm:$0xf]
        %v2825 = vld [vmem:[%s2821 + $0xc] sm:$0xf]
        %v2826 = vld [vmem:[%s2821 + $0x10] sm:$0xf]
        %v2827 = vld [vmem:[%s2821 + $0x14] sm:$0xf]
        %v2828 = vld [vmem:[%s2821 + $0x18] sm:$0xf]
        %v2829 = vld [vmem:[%s2821 + $0x1c] sm:$0xf]
        %v2830 = vld [vmem:[%s2821 + $0x20] sm:$0xf]
        %v2831 = vld [vmem:[%s2821 + $0x24] sm:$0xf]
        %v2832 = vld [vmem:[%s2821 + $0x28] sm:$0xf]
        %v2833 = vld [vmem:[%s2821 + $0x2c] sm:$0xf]
        %v2834 = vld [vmem:[%s2821 + $0x30] sm:$0xf]
        %v2835 = vld [vmem:[%s2821 + $0x34] sm:$0xf]
        %v2836 = vld [vmem:[%s2821 + $0x38] sm:$0xf]
        %v2837 = vld [vmem:[%s2821 + $0x3c] sm:$0xf]
        %v2854 = vunpack.c.l.b16 %v2822
        %v2855 = vunpack.c.l.b16 %v2823
        %v2856 = vunpack.c.l.b16 %v2824
        %v2857 = vunpack.c.l.b16 %v2825
        %v2858 = vunpack.c.l.b16 %v2826
        %v2859 = vunpack.c.l.b16 %v2827
        %v2860 = vunpack.c.l.b16 %v2828
        %v2861 = vunpack.c.l.b16 %v2829
        %v2862 = vunpack.c.l.b16 %v2830
        %v2863 = vunpack.c.l.b16 %v2831
        %v2864 = vunpack.c.l.b16 %v2832
        %v2865 = vunpack.c.l.b16 %v2833
        %v2866 = vunpack.c.l.b16 %v2834
        %v2867 = vunpack.c.l.b16 %v2835
        %v2868 = vunpack.c.l.b16 %v2836
        %v2869 = vunpack.c.l.b16 %v2837
        %v2870 = vpack.c.b16 %v2855, %v2854
        %v2871 = vpack.c.b16 %v2857, %v2856
        %v2872 = vpack.c.b16 %v2859, %v2858
        %v2873 = vpack.c.b16 %v2861, %v2860
        %v2874 = vpack.c.b16 %v2863, %v2862
        %v2875 = vpack.c.b16 %v2865, %v2864
        %v2876 = vpack.c.b16 %v2867, %v2866
        %v2877 = vpack.c.b16 %v2869, %v2868
        %2886 = vmatprep.subr.bf16.mxu0 0
        %2887 = vmatpush1.bf16.msra.mxu0 %v2870
        %2888 = vmatprep.subr.bf16.mxu0 0
        %2889 = vmatpush1.bf16.msra.mxu0 %v2871
        %2890 = vmatprep.subr.bf16.mxu0 0
        %2891 = vmatpush1.bf16.msra.mxu0 %v2872
        %2892 = vmatprep.subr.bf16.mxu0 0
        %2893 = vmatpush1.bf16.msra.mxu0 %v2873
        %2894 = vmatprep.subr.bf16.mxu0 0
        %2895 = vmatpush1.bf16.msra.mxu0 %v2874
        %2896 = vmatprep.subr.bf16.mxu0 0
        %2897 = vmatpush1.bf16.msra.mxu0 %v2875
        %2898 = vmatprep.subr.bf16.mxu0 0
        %2899 = vmatpush1.bf16.msra.mxu0 %v2876
        %2900 = vmatprep.subr.bf16.mxu0 0
        %2901 = vmatpush1.bf16.msra.mxu0 %v2877
        %2902 = vmatprep.subr.bf16.mxu0 0
        %2903 = vmatpush1.bf16.msra.mxu0 0
        %2904 = vmatprep.subr.bf16.mxu0 0
        %2905 = vmatpush1.bf16.msra.mxu0 0
        %2906 = vmatprep.subr.bf16.mxu0 0
        %2907 = vmatpush1.bf16.msra.mxu0 0
        %2908 = vmatprep.subr.bf16.mxu0 0
        %2909 = vmatpush1.bf16.msra.mxu0 0
        %2910 = vmatprep.subr.bf16.mxu0 0
        %2911 = vmatpush1.bf16.msra.mxu0 0
        %2912 = vmatprep.subr.bf16.mxu0 0
        %2913 = vmatpush1.bf16.msra.mxu0 0
        %2914 = vmatprep.subr.bf16.mxu0 0
        %2915 = vmatpush1.bf16.msra.mxu0 0
        %2916 = vmatprep.subr.bf16.mxu0 0
        %2917 = vmatpush1.bf16.msra.mxu0 0
        %2918 = vmatprep.mubr.bf16.mxu0 0
        %2919 = vmatmul.mubr.bf16.gmra.mrb[0].mxu0 %v2820
        %v2920 = vpop.f32.mrb[0].mxu0
        %v2921 = vadd.f32 0.0, %v2920
        %v2922 = vpop.f32.mrb[0].mxu0
        %v2923 = vpop.f32.mrb[0].mxu0
        %v2924 = vadd.f32 0.0, %v2923
        %v2925 = vpop.f32.mrb[0].mxu0
        %2926 = vdwg.mxu0
        %v2927 = vadd.f32 %v2451, %v2921
        %v2928 = vadd.f32 %v2452, %v2924
        %v2929 = vpack.c.bf16 %v2928, %v2927
        %s2930 = scalar_lea.vmem [#allocation4], 192
        %v2931 = vld [vmem:[%s2930] sm:$0xf]
        %v2932 = vld [vmem:[%s2930 + $0x4] sm:$0xf]
        %v2933 = vld [vmem:[%s2930 + $0x8] sm:$0xf]
        %v2934 = vld [vmem:[%s2930 + $0xc] sm:$0xf]
        %v2935 = vld [vmem:[%s2930 + $0x10] sm:$0xf]
        %v2936 = vld [vmem:[%s2930 + $0x14] sm:$0xf]
        %v2937 = vld [vmem:[%s2930 + $0x18] sm:$0xf]
        %v2938 = vld [vmem:[%s2930 + $0x1c] sm:$0xf]
        %v2939 = vld [vmem:[%s2930 + $0x20] sm:$0xf]
        %v2940 = vld [vmem:[%s2930 + $0x24] sm:$0xf]
        %v2941 = vld [vmem:[%s2930 + $0x28] sm:$0xf]
        %v2942 = vld [vmem:[%s2930 + $0x2c] sm:$0xf]
        %v2943 = vld [vmem:[%s2930 + $0x30] sm:$0xf]
        %v2944 = vld [vmem:[%s2930 + $0x34] sm:$0xf]
        %v2945 = vld [vmem:[%s2930 + $0x38] sm:$0xf]
        %v2946 = vld [vmem:[%s2930 + $0x3c] sm:$0xf]
        %v2963 = vunpack.c.l.b16 %v2931
        %v2964 = vunpack.c.l.b16 %v2932
        %v2965 = vunpack.c.l.b16 %v2933
        %v2966 = vunpack.c.l.b16 %v2934
        %v2967 = vunpack.c.l.b16 %v2935
        %v2968 = vunpack.c.l.b16 %v2936
        %v2969 = vunpack.c.l.b16 %v2937
        %v2970 = vunpack.c.l.b16 %v2938
        %v2971 = vunpack.c.l.b16 %v2939
        %v2972 = vunpack.c.l.b16 %v2940
        %v2973 = vunpack.c.l.b16 %v2941
        %v2974 = vunpack.c.l.b16 %v2942
        %v2975 = vunpack.c.l.b16 %v2943
        %v2976 = vunpack.c.l.b16 %v2944
        %v2977 = vunpack.c.l.b16 %v2945
        %v2978 = vunpack.c.l.b16 %v2946
        %v2979 = vpack.c.b16 %v2964, %v2963
        %v2980 = vpack.c.b16 %v2966, %v2965
        %v2981 = vpack.c.b16 %v2968, %v2967
        %v2982 = vpack.c.b16 %v2970, %v2969
        %v2983 = vpack.c.b16 %v2972, %v2971
        %v2984 = vpack.c.b16 %v2974, %v2973
        %v2985 = vpack.c.b16 %v2976, %v2975
        %v2986 = vpack.c.b16 %v2978, %v2977
        %2995 = vmatprep.subr.bf16.mxu0 0
        %2996 = vmatpush1.bf16.msra.mxu0 %v2979
        %2997 = vmatprep.subr.bf16.mxu0 0
        %2998 = vmatpush1.bf16.msra.mxu0 %v2980
        %2999 = vmatprep.subr.bf16.mxu0 0
        %3000 = vmatpush1.bf16.msra.mxu0 %v2981
        %3001 = vmatprep.subr.bf16.mxu0 0
        %3002 = vmatpush1.bf16.msra.mxu0 %v2982
        %3003 = vmatprep.subr.bf16.mxu0 0
        %3004 = vmatpush1.bf16.msra.mxu0 %v2983
        %3005 = vmatprep.subr.bf16.mxu0 0
        %3006 = vmatpush1.bf16.msra.mxu0 %v2984
        %3007 = vmatprep.subr.bf16.mxu0 0
        %3008 = vmatpush1.bf16.msra.mxu0 %v2985
        %3009 = vmatprep.subr.bf16.mxu0 0
        %3010 = vmatpush1.bf16.msra.mxu0 %v2986
        %3011 = vmatprep.subr.bf16.mxu0 0
        %3012 = vmatpush1.bf16.msra.mxu0 0
        %3013 = vmatprep.subr.bf16.mxu0 0
        %3014 = vmatpush1.bf16.msra.mxu0 0
        %3015 = vmatprep.subr.bf16.mxu0 0
        %3016 = vmatpush1.bf16.msra.mxu0 0
        %3017 = vmatprep.subr.bf16.mxu0 0
        %3018 = vmatpush1.bf16.msra.mxu0 0
        %3019 = vmatprep.subr.bf16.mxu0 0
        %3020 = vmatpush1.bf16.msra.mxu0 0
        %3021 = vmatprep.subr.bf16.mxu0 0
        %3022 = vmatpush1.bf16.msra.mxu0 0
        %3023 = vmatprep.subr.bf16.mxu0 0
        %3024 = vmatpush1.bf16.msra.mxu0 0
        %3025 = vmatprep.subr.bf16.mxu0 0
        %3026 = vmatpush1.bf16.msra.mxu0 0
        %3027 = vmatprep.mubr.bf16.mxu0 0
        %3028 = vmatmul.mubr.bf16.gmra.mrb[0].mxu0 %v2929
        %v3029 = vpop.f32.mrb[0].mxu0
        %v3030 = vadd.f32 0.0, %v3029
        %v3031 = vpop.f32.mrb[0].mxu0
        %v3032 = vpop.f32.mrb[0].mxu0
        %v3033 = vadd.f32 0.0, %v3032
        %v3034 = vpop.f32.mrb[0].mxu0
        %3035 = vdwg.mxu0
        %v3036 = vmax.f32 %v3030, 0.0
        %v3037 = vmax.f32 %v3033, 0.0
        %v3038 = vpack.c.bf16 %v3037, %v3036
        %s3039 = scalar_lea.vmem [#allocation6], 192
        %v3040 = vld [vmem:[%s3039] sm:$0xf]
        %v3041 = vld [vmem:[%s3039 + $0x4] sm:$0xf]
        %v3042 = vld [vmem:[%s3039 + $0x8] sm:$0xf]
        %v3043 = vld [vmem:[%s3039 + $0xc] sm:$0xf]
        %v3044 = vld [vmem:[%s3039 + $0x10] sm:$0xf]
        %v3045 = vld [vmem:[%s3039 + $0x14] sm:$0xf]
        %v3046 = vld [vmem:[%s3039 + $0x18] sm:$0xf]
        %v3047 = vld [vmem:[%s3039 + $0x1c] sm:$0xf]
        %v3048 = vld [vmem:[%s3039 + $0x20] sm:$0xf]
        %v3049 = vld [vmem:[%s3039 + $0x24] sm:$0xf]
        %v3050 = vld [vmem:[%s3039 + $0x28] sm:$0xf]
        %v3051 = vld [vmem:[%s3039 + $0x2c] sm:$0xf]
        %v3052 = vld [vmem:[%s3039 + $0x30] sm:$0xf]
        %v3053 = vld [vmem:[%s3039 + $0x34] sm:$0xf]
        %v3054 = vld [vmem:[%s3039 + $0x38] sm:$0xf]
        %v3055 = vld [vmem:[%s3039 + $0x3c] sm:$0xf]
        %v3072 = vunpack.c.l.b16 %v3040
        %v3073 = vunpack.c.l.b16 %v3041
        %v3074 = vunpack.c.l.b16 %v3042
        %v3075 = vunpack.c.l.b16 %v3043
        %v3076 = vunpack.c.l.b16 %v3044
        %v3077 = vunpack.c.l.b16 %v3045
        %v3078 = vunpack.c.l.b16 %v3046
        %v3079 = vunpack.c.l.b16 %v3047
        %v3080 = vunpack.c.l.b16 %v3048
        %v3081 = vunpack.c.l.b16 %v3049
        %v3082 = vunpack.c.l.b16 %v3050
        %v3083 = vunpack.c.l.b16 %v3051
        %v3084 = vunpack.c.l.b16 %v3052
        %v3085 = vunpack.c.l.b16 %v3053
        %v3086 = vunpack.c.l.b16 %v3054
        %v3087 = vunpack.c.l.b16 %v3055
        %v3088 = vpack.c.b16 %v3073, %v3072
        %v3089 = vpack.c.b16 %v3075, %v3074
        %v3090 = vpack.c.b16 %v3077, %v3076
        %v3091 = vpack.c.b16 %v3079, %v3078
        %v3092 = vpack.c.b16 %v3081, %v3080
        %v3093 = vpack.c.b16 %v3083, %v3082
        %v3094 = vpack.c.b16 %v3085, %v3084
        %v3095 = vpack.c.b16 %v3087, %v3086
        %3104 = vmatprep.subr.bf16.mxu0 0
        %3105 = vmatpush1.bf16.msra.mxu0 %v3088
        %3106 = vmatprep.subr.bf16.mxu0 0
        %3107 = vmatpush1.bf16.msra.mxu0 %v3089
        %3108 = vmatprep.subr.bf16.mxu0 0
        %3109 = vmatpush1.bf16.msra.mxu0 %v3090
        %3110 = vmatprep.subr.bf16.mxu0 0
        %3111 = vmatpush1.bf16.msra.mxu0 %v3091
        %3112 = vmatprep.subr.bf16.mxu0 0
        %3113 = vmatpush1.bf16.msra.mxu0 %v3092
        %3114 = vmatprep.subr.bf16.mxu0 0
        %3115 = vmatpush1.bf16.msra.mxu0 %v3093
        %3116 = vmatprep.subr.bf16.mxu0 0
        %3117 = vmatpush1.bf16.msra.mxu0 %v3094
        %3118 = vmatprep.subr.bf16.mxu0 0
        %3119 = vmatpush1.bf16.msra.mxu0 %v3095
        %3120 = vmatprep.subr.bf16.mxu0 0
        %3121 = vmatpush1.bf16.msra.mxu0 0
        %3122 = vmatprep.subr.bf16.mxu0 0
        %3123 = vmatpush1.bf16.msra.mxu0 0
        %3124 = vmatprep.subr.bf16.mxu0 0
        %3125 = vmatpush1.bf16.msra.mxu0 0
        %3126 = vmatprep.subr.bf16.mxu0 0
        %3127 = vmatpush1.bf16.msra.mxu0 0
        %3128 = vmatprep.subr.bf16.mxu0 0
        %3129 = vmatpush1.bf16.msra.mxu0 0
        %3130 = vmatprep.subr.bf16.mxu0 0
        %3131 = vmatpush1.bf16.msra.mxu0 0
        %3132 = vmatprep.subr.bf16.mxu0 0
        %3133 = vmatpush1.bf16.msra.mxu0 0
        %3134 = vmatprep.subr.bf16.mxu0 0
        %3135 = vmatpush1.bf16.msra.mxu0 0
        %3136 = vmatprep.mubr.bf16.mxu0 0
        %3137 = vmatmul.mubr.bf16.gmra.mrb[0].mxu0 %v3038
        %v3138 = vpop.f32.mrb[0].mxu0
        %v3139 = vadd.f32 0.0, %v3138
        %v3140 = vpop.f32.mrb[0].mxu0
        %v3141 = vpop.f32.mrb[0].mxu0
        %v3142 = vadd.f32 0.0, %v3141
        %v3143 = vpop.f32.mrb[0].mxu0
        %3144 = vdwg.mxu0
        %v3145 = vadd.f32 %v2927, %v3139
        %v3146 = vadd.f32 %v2928, %v3142
        %s3147 = scalar_lea.vmem %s2, 3
        %v3148 = vld [vmem:[%s3147] sm:$0x1]
        %v3150 = vlaneseq
        %v3151 = vshrl.u32 %v3150, 7
        %v3152 = vsub.s32 0, %v3151
        %v3153 = vrot.slane %v3148, %v3152
        %v3155 = vmul.f32 %v3153, %v3145
        %v3156 = vadd.f32 %v2462, %v3155
        %3157 = vst [vmem:[%s370] sm:$0xff] %v3145
        %3158 = vst [vmem:[%s370 + $0x8] sm:$0xff] %v3146
        %3159 = vst [vmem:[%s374] sm:$0xff] %v3156
        %p3160 = scmp.lt.s32.totalorder %s22, 1
        %s3161 = scalar_select %p3160, %s22, 1
        %s3162 = smul.addr %s3161, 2
        %s3163 = smul.addr %s3162, 8
        %s3164 = scalar_lea.vmem %s7, %s3163
        %p3165 = scmp.lt.s32.totalorder %s22, 1
        %s3166 = scalar_select %p3165, %s22, 1
        %s3167 = smul.addr %s3166, 8
        %s3168 = scalar_lea.vmem %s8, %s3167
        // Predicated region
        $region61: #{smlb_forward.1} parent=47 // pred_check
          %p3169 = pneg %p197
        $region62: #{smlb_forward.1} parent=47 // pred_check_branch
          %3171 = sbr.rel (%p3169) target = $region64
        $region63: #{smlb_forward.1} parent=47 // pred_region
          _
        $region64: #{smlb_forward.1} parent=47 // pred_fallthru
          _
        // Predicated region
        $region65: #{smlb_forward.1} parent=47 // pred_check
          %p3172 = pneg %p223
        $region66: #{smlb_forward.1} parent=47 // pred_check_branch
          %3174 = sbr.rel (%p3172) target = $region68
        $region67: #{smlb_forward.1} parent=47 // pred_region
          _
        $region68: #{smlb_forward.1} parent=47 // pred_fallthru
          _
      $region48: #{smlb_forward.1} parent=5 // pred_fallthru
        _
      %p3175 = scmp.le.s32.totalorder 2, %s17
      // Predicated region
      $region69: #{smlb_forward.1} parent=5 // pred_check
        %p3176 = pneg %p3175
      $region70: #{smlb_forward.1} parent=5 // pred_check_branch
        %3178 = sbr.rel (%p3176) target = $region72
      $region71: #{smlb_forward.1} parent=5 // pred_region
        %s3179 = ssub.s32 %s17, 2
        // Predicated region
        $region73: #{smlb_forward.1} parent=71 // pred_check
          %p3180 = pneg %p203
        $region74: #{smlb_forward.1} parent=71 // pred_check_branch
          %3182 = sbr.rel (%p3180) target = $region76
        $region75: #{smlb_forward.1} parent=71 // pred_region
          %p3183 = scmp.lt.s32.totalorder %s23, 1
          %s3184 = scalar_select %p3183, %s23, 1
          %s3185 = smul.addr %s3184, 2
          %s3186 = smul.addr %s3185, 8
          %s3187 = scalar_lea.vmem %s7, %s3186
        $region76: #{smlb_forward.1} parent=71 // pred_fallthru
          _
        // Predicated region
        $region77: #{smlb_forward.1} parent=71 // pred_check
          %p3188 = pneg %p229
        $region78: #{smlb_forward.1} parent=71 // pred_check_branch
          %3190 = sbr.rel (%p3188) target = $region80
        $region79: #{smlb_forward.1} parent=71 // pred_region
          %p3191 = scmp.lt.s32.totalorder %s23, 1
          %s3192 = scalar_select %p3191, %s23, 1
          %s3193 = smul.addr %s3192, 8
          %s3194 = scalar_lea.vmem %s8, %s3193
        $region80: #{smlb_forward.1} parent=71 // pred_fallthru
          _
      $region72: #{smlb_forward.1} parent=5 // pred_fallthru
        _
    $region6: #{smlb_forward.1} parent=1 // loop_footer
      %s21 = sadd.s32 1, %s17
    $region7: #{smlb_forward.1} parent=1 // loop_footer_branch
      %16 = sbr.rel target = $region3
    $region8: #{smlb_forward.1} parent=1 // loop_exit
      _
    %3195 = vsyncpa [#allocation3], 1
    %s3196 = scalar_lea.sflag [#allocation3], 1
    %3197 = vsyncpa %s3196, 1
    %3198 = vsyncpa [#allocation5], 1

</llo_original>
